<compile_context>
chip_gen: v7x
topology: tpu7x:2x2x1
jax: 0.10.0
libtpu: 0.0.40
codegen_flags: <defaults>
</compile_context>

<pallas_src>
import functools

import jax
import jax.numpy as jnp
from jax.experimental import pallas as pl
from jax.experimental.pallas import tpu as pltpu


# ----------------------------------------------------------------------------
# chip-generation aware budgets / tiling helpers
# ----------------------------------------------------------------------------
_BUDGET_CACHE = None


def _budget():
    """Per-step working-set target, VMEM limit and M-tile granule per chip."""
    global _BUDGET_CACHE
    if _BUDGET_CACHE is None:
        cap = None
        try:
            info = pltpu.get_tpu_info()
            for attr in ("vmem_capacity_bytes", "vmem_size_bytes", "vmem_bytes"):
                v = getattr(info, attr, None)
                if v:
                    cap = int(v)
                    break
        except Exception:
            cap = None
        if cap is not None and cap > (64 << 20):
            # v5e / v6e: 128 MiB VMEM -> large tiles amortize per-step overhead
            _BUDGET_CACHE = dict(step_bytes=12 << 20, vmem_limit=96 << 20,
                                 granule=128)
        else:
            # v7x (64 MiB / TC, 2 TCs) or unknown: conservative, 256-aligned M
            _BUDGET_CACHE = dict(step_bytes=5 << 20, vmem_limit=48 << 20,
                                 granule=256)
    return _BUDGET_CACHE


def _cparams(semantics):
    return pltpu.CompilerParams(
        dimension_semantics=semantics,
        vmem_limit_bytes=_budget()["vmem_limit"])


def _cdiv(a, b):
    return -(-a // b)


def _choose_m_tiling(m, target_rows, granule):
    """Split M into nt tiles of tm rows (tm a multiple of `granule`, >=2 tiles,
    even tile count when cheap).  Returns (tm, nt, m_pad >= m)."""
    nt = max(2, _cdiv(m, max(granule, int(target_rows))))
    if nt % 2:
        nt += 1                       # even split feeds both v7x TCs / megacore
    tm = _cdiv(_cdiv(m, nt), granule) * granule
    nt = _cdiv(m, tm)
    return tm, nt, tm * nt


def _pad_rows(x, m_pad):
    m = x.shape[0]
    if m_pad == m:
        return x
    return jnp.pad(x, ((0, m_pad - m),) + ((0, 0),) * (x.ndim - 1))


# ----------------------------------------------------------------------------
# Pallas kernels
# ----------------------------------------------------------------------------
def _fused_matmul_bn_relu_kernel(p_ref, w_ref, g_ref, b_ref, o_ref, *, eps, m_rows):
    # One block: P @ W -> BatchNorm (batch stats, centered variance) -> ReLU.
    y = jnp.dot(p_ref[...], w_ref[...], preferred_element_type=jnp.float32)
    mean = jnp.sum(y, axis=0, keepdims=True) / m_rows
    d = y - mean
    var = jnp.sum(d * d, axis=0, keepdims=True) / m_rows        # biased variance
    inv = jax.lax.rsqrt(var + eps)
    o_ref[...] = jnp.maximum(d * (inv * g_ref[...]) + b_ref[...],
                             0.0).astype(o_ref.dtype)


def _matmul_stats_kernel(p_ref, w_ref, s_ref):
    # Tiled pass 1: matmul tile -> per-tile partial sum / sum-of-squares ONLY.
    # (No f32 y is written back to HBM; pass 2 recomputes the matmul.)
    y = jnp.dot(p_ref[...], w_ref[...], preferred_element_type=jnp.float32)
    s = jnp.sum(y, axis=0, keepdims=True)
    sq = jnp.sum(y * y, axis=0, keepdims=True)
    s_ref[...] = jnp.concatenate([s, sq], axis=0)[None]


def _matmul_scale_shift_relu_kernel(p_ref, w_ref, a_ref, b_ref, o_ref):
    # Tiled pass 2: recompute matmul, fuse y*scale + shift -> ReLU, store.
    y = jnp.dot(p_ref[...], w_ref[...], preferred_element_type=jnp.float32)
    o_ref[...] = jnp.maximum(y * a_ref[...] + b_ref[...], 0.0).astype(o_ref.dtype)


def _fused_bn_relu_kernel(y_ref, g_ref, b_ref, o_ref, *, eps, m_rows):
    y = y_ref[...].astype(jnp.float32)
    mean = jnp.sum(y, axis=0, keepdims=True) / m_rows
    d = y - mean
    var = jnp.sum(d * d, axis=0, keepdims=True) / m_rows
    inv = jax.lax.rsqrt(var + eps)
    o_ref[...] = jnp.maximum(d * (inv * g_ref[...]) + b_ref[...],
                             0.0).astype(o_ref.dtype)


def _stats_kernel(y_ref, s_ref):
    y = y_ref[...].astype(jnp.float32)
    s = jnp.sum(y, axis=0, keepdims=True)
    sq = jnp.sum(y * y, axis=0, keepdims=True)
    s_ref[...] = jnp.concatenate([s, sq], axis=0)[None]


def _scale_shift_relu_kernel(y_ref, a_ref, b_ref, o_ref):
    y = y_ref[...].astype(jnp.float32)
    o_ref[...] = jnp.maximum(y * a_ref[...] + b_ref[...], 0.0).astype(o_ref.dtype)


def _matmul_kernel(x_ref, w_ref, o_ref):
    o_ref[...] = jnp.dot(x_ref[...], w_ref[...],
                         preferred_element_type=jnp.float32).astype(o_ref.dtype)


def _matmul_tanh_kernel(x_ref, w_ref, o_ref):
    y = jnp.dot(x_ref[...], w_ref[...], preferred_element_type=jnp.float32)
    o_ref[...] = jnp.tanh(y).astype(o_ref.dtype)


# ----------------------------------------------------------------------------
# Pallas wrappers
# ----------------------------------------------------------------------------
def _bn_scale_shift(stats, g2, b2, m_rows, eps):
    # stats: (nt, 2, C) per-tile partial sums -> per-channel scale/shift.
    total = jnp.sum(stats, axis=0)                              # (2, C) f32
    mean = total[0] / m_rows
    # NOTE: E[y^2] - mean^2 in f32 (clamped).  Conv pre-activations here are
    # ~zero-mean so cancellation is benign; the single-block path uses the
    # exactly-centered form.
    var = jnp.maximum(total[1] / m_rows - mean * mean, 0.0)     # biased variance
    inv = jax.lax.rsqrt(var + eps)
    scale = (g2[0] * inv).reshape(1, -1).astype(jnp.float32)
    shift = (b2[0] - mean * g2[0] * inv).reshape(1, -1).astype(jnp.float32)
    return scale, shift


def matmul_bn_relu_pallas(patches, wmat, g2, b2, eps=1e-5, out_dtype=jnp.bfloat16):
    """im2col-matmul + BatchNorm(batch stats) + ReLU.  bf16 in, out_dtype out."""
    m, k = patches.shape
    c = wmat.shape[1]

    foot = m * k * 2 + k * c * 2 + m * c * 8
    if m <= 256 and foot <= (8 << 20):
        # tiny problem: one fused block (splitting across cores not worth it)
        kern = functools.partial(_fused_matmul_bn_relu_kernel,
                                 eps=eps, m_rows=float(m))
        return pl.pallas_call(
            kern,
            out_shape=jax.ShapeDtypeStruct((m, c), out_dtype),
            grid=(1,),
            in_specs=[
                pl.BlockSpec((m, k), lambda i: (0, 0)),
                pl.BlockSpec((k, c), lambda i: (0, 0)),
                pl.BlockSpec((1, c), lambda i: (0, 0)),
                pl.BlockSpec((1, c), lambda i: (0, 0)),
            ],
            out_specs=pl.BlockSpec((m, c), lambda i: (0, 0)),
            compiler_params=_cparams(("arbitrary",)),
        )(patches, wmat, g2, b2)

    # Two-pass tiled path: pass 1 = stats only, pass 2 recomputes the matmul
    # fused with scale/shift/ReLU (no f32 intermediate ever hits HBM).
    bud = _budget()
    bytes_per_row = 4 * k + 8 * c
    target_rows = (bud["step_bytes"] - 4 * k * c) // max(bytes_per_row, 1)
    tm, nt, m_pad = _choose_m_tiling(m, target_rows, bud["granule"])
    patches_p = _pad_rows(patches, m_pad)        # zero rows: no effect on sums

    stats = pl.pallas_call(
        _matmul_stats_kernel,
        out_shape=jax.ShapeDtypeStruct((nt, 2, c), jnp.float32),
        grid=(nt,),
        in_specs=[
            pl.BlockSpec((tm, k), lambda i: (i, 0)),
            pl.BlockSpec((k, c), lambda i: (0, 0)),
        ],
        out_specs=pl.BlockSpec((1, 2, c), lambda i: (i, 0, 0)),
        compiler_params=_cparams(("parallel",)),
    )(patches_p, wmat)

    scale, shift = _bn_scale_shift(stats, g2, b2, float(m), eps)

    out = pl.pallas_call(
        _matmul_scale_shift_relu_kernel,
        out_shape=jax.ShapeDtypeStruct((m_pad, c), out_dtype),
        grid=(nt,),
        in_specs=[
            pl.BlockSpec((tm, k), lambda i: (i, 0)),
            pl.BlockSpec((k, c), lambda i: (0, 0)),
            pl.BlockSpec((1, c), lambda i: (0, 0)),
            pl.BlockSpec((1, c), lambda i: (0, 0)),
        ],
        out_specs=pl.BlockSpec((tm, c), lambda i: (i, 0)),
        compiler_params=_cparams(("parallel",)),
    )(patches_p, wmat, scale, shift)
    return out[:m]


def bn_relu_pallas(y, g2, b2, eps=1e-5, out_dtype=jnp.bfloat16):
    """BatchNorm(batch stats) + ReLU over a pre-activation matrix y (M, C)."""
    m, c = y.shape
    ybytes = jnp.dtype(y.dtype).itemsize

    if m <= 256 and m * c * (ybytes + 2) <= (8 << 20):
        kern = functools.partial(_fused_bn_relu_kernel, eps=eps, m_rows=float(m))
        return pl.pallas_call(
            kern,
            out_shape=jax.ShapeDtypeStruct((m, c), out_dtype),
            grid=(1,),
            in_specs=[
                pl.BlockSpec((m, c), lambda i: (0, 0)),
                pl.BlockSpec((1, c), lambda i: (0, 0)),
                pl.BlockSpec((1, c), lambda i: (0, 0)),
            ],
            out_specs=pl.BlockSpec((m, c), lambda i: (0, 0)),
            compiler_params=_cparams(("arbitrary",)),
        )(y, g2, b2)

    bud = _budget()
    bytes_per_row = c * (2 * ybytes + 4)
    target_rows = bud["step_bytes"] // max(bytes_per_row, 1)
    tm, nt, m_pad = _choose_m_tiling(m, target_rows, bud["granule"])
    y_p = _pad_rows(y, m_pad)

    stats = pl.pallas_call(
        _stats_kernel,
        out_shape=jax.ShapeDtypeStruct((nt, 2, c), jnp.float32),
        grid=(nt,),
        in_specs=[pl.BlockSpec((tm, c), lambda i: (i, 0))],
        out_specs=pl.BlockSpec((1, 2, c), lambda i: (i, 0, 0)),
        compiler_params=_cparams(("parallel",)),
    )(y_p)

    scale, shift = _bn_scale_shift(stats, g2, b2, float(m), eps)

    out = pl.pallas_call(
        _scale_shift_relu_kernel,
        out_shape=jax.ShapeDtypeStruct((m_pad, c), out_dtype),
        grid=(nt,),
        in_specs=[
            pl.BlockSpec((tm, c), lambda i: (i, 0)),
            pl.BlockSpec((1, c), lambda i: (0, 0)),
            pl.BlockSpec((1, c), lambda i: (0, 0)),
        ],
        out_specs=pl.BlockSpec((tm, c), lambda i: (i, 0)),
        compiler_params=_cparams(("parallel",)),
    )(y_p, scale, shift)
    return out[:m]


def _matmul_call(kernel_fn, x, w, out_dtype):
    m, k = x.shape
    c = w.shape[1]
    if m <= 256:
        return pl.pallas_call(
            kernel_fn,
            out_shape=jax.ShapeDtypeStruct((m, c), out_dtype),
            grid=(1,),
            in_specs=[pl.BlockSpec((m, k), lambda i: (0, 0)),
                      pl.BlockSpec((k, c), lambda i: (0, 0))],
            out_specs=pl.BlockSpec((m, c), lambda i: (0, 0)),
            compiler_params=_cparams(("arbitrary",)),
        )(x, w)

    bud = _budget()
    out_b = jnp.dtype(out_dtype).itemsize
    bytes_per_row = 4 * k + 2 * out_b * c
    target_rows = (bud["step_bytes"] - 4 * k * c) // max(bytes_per_row, 1)
    tm, nt, m_pad = _choose_m_tiling(m, target_rows, bud["granule"])
    x_p = _pad_rows(x, m_pad)
    out = pl.pallas_call(
        kernel_fn,
        out_shape=jax.ShapeDtypeStruct((m_pad, c), out_dtype),
        grid=(nt,),
        in_specs=[pl.BlockSpec((tm, k), lambda i: (i, 0)),
                  pl.BlockSpec((k, c), lambda i: (0, 0))],
        out_specs=pl.BlockSpec((tm, c), lambda i: (i, 0)),
        compiler_params=_cparams(("parallel",)),
    )(x_p, w)
    return out[:m]


def matmul_pallas(x, w, out_dtype=jnp.float32):
    return _matmul_call(_matmul_kernel, x, w, out_dtype)


def matmul_tanh_pallas(x, w, out_dtype=jnp.float32):
    return _matmul_call(_matmul_tanh_kernel, x, w, out_dtype)


# ----------------------------------------------------------------------------
# ConvTranspose2d glue (NHWC bf16, cheap XLA ops around the kernels)
# ----------------------------------------------------------------------------
def _dilate_and_pad_nhwc(x, stride, pad):
    n, h, w, c = x.shape
    if stride > 1:
        xd = jnp.zeros((n, (h - 1) * stride + 1, (w - 1) * stride + 1, c), x.dtype)
        xd = xd.at[:, ::stride, ::stride, :].set(x)
    else:
        xd = x
    if pad:
        xd = jnp.pad(xd, ((0, 0), (pad, pad), (pad, pad), (0, 0)))
    return xd


def _im2col_nhwc(xp, k):
    # xp: (N, Hp, Wp, C) -> patches (N*Ho*Wo, k*k*C), K layout (ki, kj, ci)
    n, hp, wp, c = xp.shape
    ho, wo = hp - k + 1, wp - k + 1
    cols = [xp[:, i:i + ho, j:j + wo, :] for i in range(k) for j in range(k)]
    pat = jnp.stack(cols, axis=3)                  # (N, Ho, Wo, k*k, C)
    return pat.reshape(n * ho * wo, k * k * c), ho, wo


def conv_transpose_bn_relu_block(x_nhwc, layer, eps=1e-5):
    n, h, w, cin = x_nhwc.shape
    cout = layer["cout"]
    if layer["subpixel"]:
        # Sub-pixel / polyphase ConvTranspose2d(k=4, s=2, p=1): one matmul over
        # the (H+1)*(W+1) stride-1 2x2 windows of the 1-padded input with a
        # (4*Cin, 4*Cout) weight (no dilation zeros), depth-to-space interleave
        # in XLA, then tiled BatchNorm + ReLU.
        xp = jnp.pad(x_nhwc, ((0, 0), (1, 1), (1, 1), (0, 0)))
        cols = [xp[:, jh:jh + h + 1, jw:jw + w + 1, :]
                for jh in range(2) for jw in range(2)]
        pat = jnp.stack(cols, axis=3).reshape(n * (h + 1) * (w + 1), 4 * cin)
        py = matmul_pallas(pat, layer["wsub"], out_dtype=jnp.float32)
        ph = py.reshape(n, h + 1, w + 1, 2, 2, cout)      # (..., r_h, r_w, cout)
        # even output rows <- (r_h=1, window q); odd rows <- (r_h=0, window q+1)
        rows = jnp.stack([ph[:, :-1, :, 1], ph[:, 1:, :, 0]], axis=3)
        cells = jnp.stack([rows[:, :, :-1, :, 1], rows[:, :, 1:, :, 0]], axis=4)
        pre = cells.transpose(0, 1, 3, 2, 4, 5).reshape(n * 2 * h * 2 * w, cout)
        flat = bn_relu_pallas(pre, layer["gamma2"], layer["beta2"], eps=eps)
        return flat.reshape(n, 2 * h, 2 * w, cout)

    # generic path (the stride-1 layers here): dilate/pad + bf16 im2col
    # TODO(synk): channels < 128 still produce masked stores; padding cout to
    # 128 and folding into the next layer's weight was judged not worth the
    # extra MXU/HBM work at these channel counts.
    k, s, p = layer["k"], layer["stride"], layer["pad"]
    xp = _dilate_and_pad_nhwc(x_nhwc, s, k - 1 - p)
    patches, ho, wo = _im2col_nhwc(xp, k)
    flat = matmul_bn_relu_pallas(patches, layer["wmat"],
                                 layer["gamma2"], layer["beta2"], eps=eps)
    return flat.reshape(n, ho, wo, cout)


def conv_transpose_tanh_block(x_nhwc, layer):
    # stride == k, padding == 0: non-overlapping transposed conv == plain matmul
    k, cout = layer["k"], layer["cout"]
    n, h, w, cin = x_nhwc.shape
    xf = x_nhwc.reshape(n * h * w, cin)
    flat = matmul_tanh_pallas(xf, layer["wcols"], out_dtype=jnp.float32)
    flat = flat[:, :k * k * cout]                    # drop lane-padding columns
    y6 = flat.reshape(n, h, w, k, k, cout)
    # depth-to-space AND NHWC->NCHW fused into a single transpose of the
    # largest tensor (final decoder output is NCHW).
    return y6.transpose(0, 5, 1, 3, 2, 4).reshape(n, cout, h * k, w * k)


# ----------------------------------------------------------------------------
# Parameters (matches weight_init: xavier_normal_ for conv, N(1, 0.02)/0 for BN)
# ----------------------------------------------------------------------------
def init_decoder_params(key, z_size=2, channel=3, num_filters=64):
    layer_defs = [
        (z_size,          num_filters * 8, 4, 1, 1, True),
        (num_filters * 8, num_filters * 4, 4, 1, 1, True),
        (num_filters * 4, num_filters * 2, 4, 2, 1, True),
        (num_filters * 2, num_filters,     4, 2, 1, True),
        (num_filters,     channel,         5, 5, 0, False),
    ]
    params = []
    for cin, cout, k, s, p, has_bn in layer_defs:
        key, kw, kg = jax.random.split(key, 3)
        # xavier_normal_ on (Cin, Cout, k, k): fan_in = Cout*k*k, fan_out = Cin*k*k
        std = (2.0 / (cout * k * k + cin * k * k)) ** 0.5
        w = std * jax.random.normal(kw, (cin, cout, k, k), jnp.float32)
        gamma = (1.0 + 0.02 * jax.random.normal(kg, (cout,), jnp.float32)) if has_bn else None
        beta = jnp.zeros((cout,), jnp.float32) if has_bn else None
        params.append(dict(w=w, gamma=gamma, beta=beta, stride=s, pad=p))
    return params


def prepare_decoder_params(raw_params):
    """Precompute matmul-ready (bf16) weights / BN params once, outside jit."""
    prep = []
    for lp in raw_params:
        w = lp["w"]
        cin, cout, k, _ = w.shape
        s, p = lp["stride"], lp["pad"]
        if lp["gamma"] is not None:
            layer = dict(kind="bn", k=k, stride=s, pad=p, cout=cout,
                         gamma2=lp["gamma"].reshape(1, cout).astype(jnp.float32),
                         beta2=lp["beta"].reshape(1, cout).astype(jnp.float32),
                         subpixel=(k == 4 and s == 2 and p == 1))
            if layer["subpixel"]:
                # polyphase weights: rows (j_h, j_w, ci), cols (r_h, r_w, co)
                # W_sub[jh,jw,ci,rh,rw,co] = W[ci,co, rh+2*(1-jh), rw+2*(1-jw)]
                wk = w.transpose(2, 3, 0, 1).reshape(2, 2, 2, 2, cin, cout)
                wk = jnp.flip(wk, axis=(0, 2))
                wsub = wk.transpose(0, 2, 4, 1, 3, 5).reshape(4 * cin, 4 * cout)
                layer["wsub"] = wsub.astype(jnp.bfloat16)
            else:
                # direct-conv weight; K layout (ki, kj, ci) matches NHWC im2col
                wmat = jnp.flip(w, axis=(2, 3)).transpose(2, 3, 0, 1)
                layer["wmat"] = wmat.reshape(k * k * cin, cout).astype(jnp.bfloat16)
            prep.append(layer)
        else:
            assert s == k and p == 0                 # non-overlapping case
            wcols = w.transpose(0, 2, 3, 1).reshape(cin, k * k * cout)
            cpad = ((k * k * cout + 127) // 128) * 128   # lane-dense output width
            wcols = jnp.pad(wcols, ((0, 0), (0, cpad - k * k * cout)))
            prep.append(dict(kind="tanh", k=k, cout=cout,
                             wcols=wcols.astype(jnp.bfloat16)))
    return prep


def decoder_forward(z_nchw, prep):
    # single NCHW->NHWC + f32->bf16 conversion at the decoder input;
    # the last (tanh) layer writes NCHW f32 directly.
    x = jnp.transpose(z_nchw, (0, 2, 3, 1)).astype(jnp.bfloat16)
    for layer in prep:
        if layer["kind"] == "bn":
            x = conv_transpose_bn_relu_block(x, layer)
        else:
            x = conv_transpose_tanh_block(x, layer)
    return x


# ----------------------------------------------------------------------------
# Independent reference (lax.conv_general_dilated), matched bf16/f32 precision
# ----------------------------------------------------------------------------
def reference_decoder_forward(z_nchw, raw_params, eps=1e-5):
    x = z_nchw
    for lp in raw_params:
        w = lp["w"]
        k, s, p = w.shape[2], lp["stride"], lp["pad"]
        wt = jnp.flip(w, axis=(2, 3)).transpose(1, 0, 2, 3)     # (Cout, Cin, k, k)
        y = jax.lax.conv_general_dilated(
            x.astype(jnp.bfloat16), wt.astype(jnp.bfloat16),
            window_strides=(1, 1),
            padding=[(k - 1 - p, k - 1 - p)] * 2,
            lhs_dilation=(s, s),
            dimension_numbers=("NCHW", "OIHW", "NCHW"),
            preferred_element_type=jnp.float32)
        if lp["gamma"] is not None:
            mean = jnp.mean(y, axis=(0, 2, 3), keepdims=True)
            var = jnp.mean(jnp.square(y - mean), axis=(0, 2, 3), keepdims=True)
            y = (y - mean) * jax.lax.rsqrt(var + eps)
            x = jnp.maximum(y * lp["gamma"].reshape(1, -1, 1, 1)
                            + lp["beta"].reshape(1, -1, 1, 1), 0.0)
        else:
            x = jnp.tanh(y)
    return x


# ----------------------------------------------------------------------------
if __name__ == "__main__":
    key = jax.random.PRNGKey(0)
    kz, kp = jax.random.split(key)

    # Small shapes: batch=2, z_size=2, 2x2 latent map, num_filters=8
    z = jax.random.normal(kz, (2, 2, 2, 2), jnp.float32)
    raw = init_decoder_params(kp, z_size=2, channel=3, num_filters=8)
    prep = prepare_decoder_params(raw)

    fwd = jax.jit(lambda zz: decoder_forward(zz, prep))
    out = jax.block_until_ready(fwd(z))

    # Spatial trace: 2 -> 3 -> 4 -> 8 -> 16 -> 80
    assert out.shape == (2, 3, 80, 80), out.shape
    assert out.dtype == jnp.float32
    assert bool(jnp.all(jnp.isfinite(out)))
    assert bool(jnp.all(jnp.abs(out) <= 1.0 + 1e-6))   # tanh range

    # End-to-end check vs an independent conv_general_dilated reference
    ref = jax.block_until_ready(jax.jit(
        lambda zz: reference_decoder_forward(zz, raw))(z))
    err = float(jnp.max(jnp.abs(out - ref)))
    assert err < 2e-2, err

    # Exercise the tiled two-pass (recompute) conv+BN path with an awkward M
    # (forces M zero-padding); the tiny demo shapes route to the fused block.
    k1, k2, k3, k4 = jax.random.split(jax.random.PRNGKey(1), 4)
    mt, kt, ct = 600, 96, 48
    pt = jax.random.normal(k1, (mt, kt), jnp.float32).astype(jnp.bfloat16)
    wtest = (0.1 * jax.random.normal(k2, (kt, ct), jnp.float32)).astype(jnp.bfloat16)
    gt = 1.0 + 0.02 * jax.random.normal(k3, (ct,), jnp.float32)
    bt = 0.01 * jax.random.normal(k4, (ct,), jnp.float32)
    got = jax.block_until_ready(
        matmul_bn_relu_pallas(pt, wtest, gt.reshape(1, ct), bt.reshape(1, ct),
                              out_dtype=jnp.float32))
    yr = jnp.dot(pt.astype(jnp.float32), wtest.astype(jnp.float32))
    mr = jnp.mean(yr, axis=0)
    vr = jnp.mean(jnp.square(yr - mr), axis=0)
    want = jnp.maximum((yr - mr) * jax.lax.rsqrt(vr + 1e-5) * gt + bt, 0.0)
    assert float(jnp.max(jnp.abs(got - want))) < 2e-3

    # Exercise the tiled plain-matmul path (used by the sub-pixel phase matmul
    # at larger resolutions), again with M not a multiple of the tile.
    xa = jax.random.normal(k1, (300, 64), jnp.float32).astype(jnp.bfloat16)
    wa = (0.1 * jax.random.normal(k2, (64, 128), jnp.float32)).astype(jnp.bfloat16)
    gm = jax.block_until_ready(matmul_pallas(xa, wa, out_dtype=jnp.float32))
    wantm = jnp.dot(xa.astype(jnp.float32), wa.astype(jnp.float32))
    assert float(jnp.max(jnp.abs(gm - wantm))) < 1e-3

    print("KERNEL_OK")
</pallas_src>

<mosaic_0001>
module attributes {stable_mosaic.version = 11 : i64} {
  func.func @_fused_matmul_bn_relu_kernel(%arg0: i32, %arg1: memref<18x32xbf16, #tpu.memory_space<vmem>>, %arg2: memref<32x64xbf16, #tpu.memory_space<vmem>>, %arg3: memref<1x64xf32, #tpu.memory_space<vmem>>, %arg4: memref<1x64xf32, #tpu.memory_space<vmem>>, %arg5: memref<18x64xbf16, #tpu.memory_space<vmem>>) attributes {dimension_semantics = [#tpu.dimension_semantics<arbitrary>], iteration_bounds = array<i64: 1>, scalar_prefetch = 0 : i64, scratch_operands = 0 : i64, tpu.core_type = #tpu.core_type<tc>, window_params = [{pipeline_mode = #tpu.pipeline_mode<synchronous>, transform_indices = @transform_0, window_bounds = array<i64: 18, 32>}, {pipeline_mode = #tpu.pipeline_mode<synchronous>, transform_indices = @transform_1, window_bounds = array<i64: 32, 64>}, {pipeline_mode = #tpu.pipeline_mode<synchronous>, transform_indices = @transform_2, window_bounds = array<i64: 1, 64>}, {pipeline_mode = #tpu.pipeline_mode<synchronous>, transform_indices = @transform_3, window_bounds = array<i64: 1, 64>}, {pipeline_mode = #tpu.pipeline_mode<synchronous>, transform_indices = @transform_4, window_bounds = array<i64: 18, 64>}]} {
    %c0 = arith.constant 0 : index
    %c0_0 = arith.constant 0 : index
    %0 = vector.load %arg1[%c0, %c0_0] : memref<18x32xbf16, #tpu.memory_space<vmem>>, vector<18x32xbf16>
    %c0_1 = arith.constant 0 : index
    %c0_2 = arith.constant 0 : index
    %1 = vector.load %arg2[%c0_1, %c0_2] : memref<32x64xbf16, #tpu.memory_space<vmem>>, vector<32x64xbf16>
    %cst = arith.constant dense<0.000000e+00> : vector<18x64xf32>
    %2 = tpu.matmul %0, %1, %cst {dimension_numbers = #tpu.dot_dimension_numbers<[1], [0], [0], [1], [0, 0, 1, 1], [], []>} : vector<18x32xbf16>, vector<32x64xbf16>, vector<18x64xf32> -> vector<18x64xf32>
    %cst_3 = arith.constant dense<0.000000e+00> : vector<64xf32>
    %3 = vector.multi_reduction <add>, %2, %cst_3 [0] : vector<18x64xf32> to vector<64xf32>
    %4 = vector.shape_cast %3 : vector<64xf32> to vector<1x64xf32>
    %cst_4 = arith.constant 1.800000e+01 : f32
    %5 = vector.broadcast %cst_4 : f32 to vector<1x64xf32>
    %6 = arith.divf %4, %5 : vector<1x64xf32>
    %7 = vector.broadcast %6 : vector<1x64xf32> to vector<18x64xf32>
    %8 = arith.subf %2, %7 : vector<18x64xf32>
    %9 = arith.mulf %8, %8 : vector<18x64xf32>
    %cst_5 = arith.constant dense<0.000000e+00> : vector<64xf32>
    %10 = vector.multi_reduction <add>, %9, %cst_5 [0] : vector<18x64xf32> to vector<64xf32>
    %11 = vector.shape_cast %10 : vector<64xf32> to vector<1x64xf32>
    %cst_6 = arith.constant 1.800000e+01 : f32
    %12 = vector.broadcast %cst_6 : f32 to vector<1x64xf32>
    %13 = arith.divf %11, %12 : vector<1x64xf32>
    %cst_7 = arith.constant 9.99999974E-6 : f32
    %14 = vector.broadcast %cst_7 : f32 to vector<1x64xf32>
    %15 = arith.addf %13, %14 : vector<1x64xf32>
    %16 = math.rsqrt %15 : vector<1x64xf32>
    %c0_8 = arith.constant 0 : index
    %c0_9 = arith.constant 0 : index
    %17 = vector.load %arg3[%c0_8, %c0_9] : memref<1x64xf32, #tpu.memory_space<vmem>>, vector<1x64xf32>
    %18 = arith.mulf %16, %17 : vector<1x64xf32>
    %19 = vector.broadcast %18 : vector<1x64xf32> to vector<18x64xf32>
    %20 = arith.mulf %8, %19 : vector<18x64xf32>
    %c0_10 = arith.constant 0 : index
    %c0_11 = arith.constant 0 : index
    %21 = vector.load %arg4[%c0_10, %c0_11] : memref<1x64xf32, #tpu.memory_space<vmem>>, vector<1x64xf32>
    %22 = vector.broadcast %21 : vector<1x64xf32> to vector<18x64xf32>
    %23 = arith.addf %20, %22 : vector<18x64xf32>
    %cst_12 = arith.constant 0.000000e+00 : f32
    %24 = vector.broadcast %cst_12 : f32 to vector<18x64xf32>
    %25 = arith.maximumf %23, %24 : vector<18x64xf32>
    %26 = arith.truncf %25 : vector<18x64xf32> to vector<18x64xbf16>
    %c0_13 = arith.constant 0 : index
    %c0_14 = arith.constant 0 : index
    %27 = vector.load %arg5[%c0_13, %c0_14] : memref<18x64xbf16, #tpu.memory_space<vmem>>, vector<18x64xbf16>
    tpu.vector_store %arg5[%c0_13, %c0_14], %26 {strides = array<i32>} : memref<18x64xbf16, #tpu.memory_space<vmem>>, vector<18x64xbf16>,
    return
  }
  func.func @transform_0(%arg0: i32) -> (i32, i32) {
    %c0_i32 = arith.constant 0 : i32
    %c0_i32_0 = arith.constant 0 : i32
    %c0_i32_1 = arith.constant 0 : i32
    return %c0_i32, %c0_i32_0 : i32, i32
  }
  func.func @transform_1(%arg0: i32) -> (i32, i32) {
    %c0_i32 = arith.constant 0 : i32
    %c0_i32_0 = arith.constant 0 : i32
    %c0_i32_1 = arith.constant 0 : i32
    return %c0_i32, %c0_i32_0 : i32, i32
  }
  func.func @transform_2(%arg0: i32) -> (i32, i32) {
    %c0_i32 = arith.constant 0 : i32
    %c0_i32_0 = arith.constant 0 : i32
    %c0_i32_1 = arith.constant 0 : i32
    return %c0_i32, %c0_i32_0 : i32, i32
  }
  func.func @transform_3(%arg0: i32) -> (i32, i32) {
    %c0_i32 = arith.constant 0 : i32
    %c0_i32_0 = arith.constant 0 : i32
    %c0_i32_1 = arith.constant 0 : i32
    return %c0_i32, %c0_i32_0 : i32, i32
  }
  func.func @transform_4(%arg0: i32) -> (i32, i32) {
    %c0_i32 = arith.constant 0 : i32
    %c0_i32_0 = arith.constant 0 : i32
    %c0_i32_1 = arith.constant 0 : i32
    return %c0_i32, %c0_i32_0 : i32, i32
  }
}

module attributes {stable_mosaic.version = 11 : i64} {
  func.func @_fused_matmul_bn_relu_kernel(%arg0: i32, %arg1: memref<32x1024xbf16, #tpu.memory_space<vmem>>, %arg2: memref<1024x32xbf16, #tpu.memory_space<vmem>>, %arg3: memref<1x32xf32, #tpu.memory_space<vmem>>, %arg4: memref<1x32xf32, #tpu.memory_space<vmem>>, %arg5: memref<32x32xbf16, #tpu.memory_space<vmem>>) attributes {dimension_semantics = [#tpu.dimension_semantics<arbitrary>], iteration_bounds = array<i64: 1>, scalar_prefetch = 0 : i64, scratch_operands = 0 : i64, tpu.core_type = #tpu.core_type<tc>, window_params = [{pipeline_mode = #tpu.pipeline_mode<synchronous>, transform_indices = @transform_0, window_bounds = array<i64: 32, 1024>}, {pipeline_mode = #tpu.pipeline_mode<synchronous>, transform_indices = @transform_1, window_bounds = array<i64: 1024, 32>}, {pipeline_mode = #tpu.pipeline_mode<synchronous>, transform_indices = @transform_2, window_bounds = array<i64: 1, 32>}, {pipeline_mode = #tpu.pipeline_mode<synchronous>, transform_indices = @transform_3, window_bounds = array<i64: 1, 32>}, {pipeline_mode = #tpu.pipeline_mode<synchronous>, transform_indices = @transform_4, window_bounds = array<i64: 32, 32>}]} {
    %c0 = arith.constant 0 : index
    %c0_0 = arith.constant 0 : index
    %0 = vector.load %arg1[%c0, %c0_0] : memref<32x1024xbf16, #tpu.memory_space<vmem>>, vector<32x1024xbf16>
    %c0_1 = arith.constant 0 : index
    %c0_2 = arith.constant 0 : index
    %1 = vector.load %arg2[%c0_1, %c0_2] : memref<1024x32xbf16, #tpu.memory_space<vmem>>, vector<1024x32xbf16>
    %cst = arith.constant dense<0.000000e+00> : vector<32x32xf32>
    %2 = tpu.matmul %0, %1, %cst {dimension_numbers = #tpu.dot_dimension_numbers<[1], [0], [0], [1], [0, 0, 1, 1], [], []>} : vector<32x1024xbf16>, vector<1024x32xbf16>, vector<32x32xf32> -> vector<32x32xf32>
    %cst_3 = arith.constant dense<0.000000e+00> : vector<32xf32>
    %3 = vector.multi_reduction <add>, %2, %cst_3 [0] : vector<32x32xf32> to vector<32xf32>
    %4 = vector.shape_cast %3 : vector<32xf32> to vector<1x32xf32>
    %cst_4 = arith.constant 3.200000e+01 : f32
    %5 = vector.broadcast %cst_4 : f32 to vector<1x32xf32>
    %6 = arith.divf %4, %5 : vector<1x32xf32>
    %7 = vector.broadcast %6 : vector<1x32xf32> to vector<32x32xf32>
    %8 = arith.subf %2, %7 : vector<32x32xf32>
    %9 = arith.mulf %8, %8 : vector<32x32xf32>
    %cst_5 = arith.constant dense<0.000000e+00> : vector<32xf32>
    %10 = vector.multi_reduction <add>, %9, %cst_5 [0] : vector<32x32xf32> to vector<32xf32>
    %11 = vector.shape_cast %10 : vector<32xf32> to vector<1x32xf32>
    %cst_6 = arith.constant 3.200000e+01 : f32
    %12 = vector.broadcast %cst_6 : f32 to vector<1x32xf32>
    %13 = arith.divf %11, %12 : vector<1x32xf32>
    %cst_7 = arith.constant 9.99999974E-6 : f32
    %14 = vector.broadcast %cst_7 : f32 to vector<1x32xf32>
    %15 = arith.addf %13, %14 : vector<1x32xf32>
    %16 = math.rsqrt %15 : vector<1x32xf32>
    %c0_8 = arith.constant 0 : index
    %c0_9 = arith.constant 0 : index
    %17 = vector.load %arg3[%c0_8, %c0_9] : memref<1x32xf32, #tpu.memory_space<vmem>>, vector<1x32xf32>
    %18 = arith.mulf %16, %17 : vector<1x32xf32>
    %19 = vector.broadcast %18 : vector<1x32xf32> to vector<32x32xf32>
    %20 = arith.mulf %8, %19 : vector<32x32xf32>
    %c0_10 = arith.constant 0 : index
    %c0_11 = arith.constant 0 : index
    %21 = vector.load %arg4[%c0_10, %c0_11] : memref<1x32xf32, #tpu.memory_space<vmem>>, vector<1x32xf32>
    %22 = vector.broadcast %21 : vector<1x32xf32> to vector<32x32xf32>
    %23 = arith.addf %20, %22 : vector<32x32xf32>
    %cst_12 = arith.constant 0.000000e+00 : f32
    %24 = vector.broadcast %cst_12 : f32 to vector<32x32xf32>
    %25 = arith.maximumf %23, %24 : vector<32x32xf32>
    %26 = arith.truncf %25 : vector<32x32xf32> to vector<32x32xbf16>
    %c0_13 = arith.constant 0 : index
    %c0_14 = arith.constant 0 : index
    %27 = vector.load %arg5[%c0_13, %c0_14] : memref<32x32xbf16, #tpu.memory_space<vmem>>, vector<32x32xbf16>
    tpu.vector_store %arg5[%c0_13, %c0_14], %26 {strides = array<i32>} : memref<32x32xbf16, #tpu.memory_space<vmem>>, vector<32x32xbf16>,
    return
  }
  func.func @transform_0(%arg0: i32) -> (i32, i32) {
    %c0_i32 = arith.constant 0 : i32
    %c0_i32_0 = arith.constant 0 : i32
    %c0_i32_1 = arith.constant 0 : i32
    return %c0_i32, %c0_i32_0 : i32, i32
  }
  func.func @transform_1(%arg0: i32) -> (i32, i32) {
    %c0_i32 = arith.constant 0 : i32
    %c0_i32_0 = arith.constant 0 : i32
    %c0_i32_1 = arith.constant 0 : i32
    return %c0_i32, %c0_i32_0 : i32, i32
  }
  func.func @transform_2(%arg0: i32) -> (i32, i32) {
    %c0_i32 = arith.constant 0 : i32
    %c0_i32_0 = arith.constant 0 : i32
    %c0_i32_1 = arith.constant 0 : i32
    return %c0_i32, %c0_i32_0 : i32, i32
  }
  func.func @transform_3(%arg0: i32) -> (i32, i32) {
    %c0_i32 = arith.constant 0 : i32
    %c0_i32_0 = arith.constant 0 : i32
    %c0_i32_1 = arith.constant 0 : i32
    return %c0_i32, %c0_i32_0 : i32, i32
  }
  func.func @transform_4(%arg0: i32) -> (i32, i32) {
    %c0_i32 = arith.constant 0 : i32
    %c0_i32_0 = arith.constant 0 : i32
    %c0_i32_1 = arith.constant 0 : i32
    return %c0_i32, %c0_i32_0 : i32, i32
  }
}

module attributes {stable_mosaic.version = 11 : i64} {
  func.func @_matmul_kernel(%arg0: i32, %arg1: memref<50x128xbf16, #tpu.memory_space<vmem>>, %arg2: memref<128x64xbf16, #tpu.memory_space<vmem>>, %arg3: memref<50x64xf32, #tpu.memory_space<vmem>>) attributes {dimension_semantics = [#tpu.dimension_semantics<arbitrary>], iteration_bounds = array<i64: 1>, scalar_prefetch = 0 : i64, scratch_operands = 0 : i64, tpu.core_type = #tpu.core_type<tc>, window_params = [{pipeline_mode = #tpu.pipeline_mode<synchronous>, transform_indices = @transform_0, window_bounds = array<i64: 50, 128>}, {pipeline_mode = #tpu.pipeline_mode<synchronous>, transform_indices = @transform_1, window_bounds = array<i64: 128, 64>}, {pipeline_mode = #tpu.pipeline_mode<synchronous>, transform_indices = @transform_2, window_bounds = array<i64: 50, 64>}]} {
    %c0 = arith.constant 0 : index
    %c0_0 = arith.constant 0 : index
    %0 = vector.load %arg1[%c0, %c0_0] : memref<50x128xbf16, #tpu.memory_space<vmem>>, vector<50x128xbf16>
    %c0_1 = arith.constant 0 : index
    %c0_2 = arith.constant 0 : index
    %1 = vector.load %arg2[%c0_1, %c0_2] : memref<128x64xbf16, #tpu.memory_space<vmem>>, vector<128x64xbf16>
    %cst = arith.constant dense<0.000000e+00> : vector<50x64xf32>
    %2 = tpu.matmul %0, %1, %cst {dimension_numbers = #tpu.dot_dimension_numbers<[1], [0], [0], [1], [0, 0, 1, 1], [], []>} : vector<50x128xbf16>, vector<128x64xbf16>, vector<50x64xf32> -> vector<50x64xf32>
    %c0_3 = arith.constant 0 : index
    %c0_4 = arith.constant 0 : index
    %3 = vector.load %arg3[%c0_3, %c0_4] : memref<50x64xf32, #tpu.memory_space<vmem>>, vector<50x64xf32>
    tpu.vector_store %arg3[%c0_3, %c0_4], %2 {strides = array<i32>} : memref<50x64xf32, #tpu.memory_space<vmem>>, vector<50x64xf32>,
    return
  }
  func.func @transform_0(%arg0: i32) -> (i32, i32) {
    %c0_i32 = arith.constant 0 : i32
    %c0_i32_0 = arith.constant 0 : i32
    %c0_i32_1 = arith.constant 0 : i32
    return %c0_i32, %c0_i32_0 : i32, i32
  }
  func.func @transform_1(%arg0: i32) -> (i32, i32) {
    %c0_i32 = arith.constant 0 : i32
    %c0_i32_0 = arith.constant 0 : i32
    %c0_i32_1 = arith.constant 0 : i32
    return %c0_i32, %c0_i32_0 : i32, i32
  }
  func.func @transform_2(%arg0: i32) -> (i32, i32) {
    %c0_i32 = arith.constant 0 : i32
    %c0_i32_0 = arith.constant 0 : i32
    %c0_i32_1 = arith.constant 0 : i32
    return %c0_i32, %c0_i32_0 : i32, i32
  }
}

module attributes {stable_mosaic.version = 11 : i64} {
  func.func @_fused_bn_relu_kernel(%arg0: i32, %arg1: memref<128x16xf32, #tpu.memory_space<vmem>>, %arg2: memref<1x16xf32, #tpu.memory_space<vmem>>, %arg3: memref<1x16xf32, #tpu.memory_space<vmem>>, %arg4: memref<128x16xbf16, #tpu.memory_space<vmem>>) attributes {dimension_semantics = [#tpu.dimension_semantics<arbitrary>], iteration_bounds = array<i64: 1>, scalar_prefetch = 0 : i64, scratch_operands = 0 : i64, tpu.core_type = #tpu.core_type<tc>, window_params = [{pipeline_mode = #tpu.pipeline_mode<synchronous>, transform_indices = @transform_0, window_bounds = array<i64: 128, 16>}, {pipeline_mode = #tpu.pipeline_mode<synchronous>, transform_indices = @transform_1, window_bounds = array<i64: 1, 16>}, {pipeline_mode = #tpu.pipeline_mode<synchronous>, transform_indices = @transform_2, window_bounds = array<i64: 1, 16>}, {pipeline_mode = #tpu.pipeline_mode<synchronous>, transform_indices = @transform_3, window_bounds = array<i64: 128, 16>}]} {
    %c0 = arith.constant 0 : index
    %c0_0 = arith.constant 0 : index
    %0 = vector.load %arg1[%c0, %c0_0] : memref<128x16xf32, #tpu.memory_space<vmem>>, vector<128x16xf32>
    %cst = arith.constant dense<0.000000e+00> : vector<16xf32>
    %1 = vector.multi_reduction <add>, %0, %cst [0] : vector<128x16xf32> to vector<16xf32>
    %2 = vector.shape_cast %1 : vector<16xf32> to vector<1x16xf32>
    %cst_1 = arith.constant 1.280000e+02 : f32
    %3 = vector.broadcast %cst_1 : f32 to vector<1x16xf32>
    %4 = arith.divf %2, %3 : vector<1x16xf32>
    %5 = vector.broadcast %4 : vector<1x16xf32> to vector<128x16xf32>
    %6 = arith.subf %0, %5 : vector<128x16xf32>
    %7 = arith.mulf %6, %6 : vector<128x16xf32>
    %cst_2 = arith.constant dense<0.000000e+00> : vector<16xf32>
    %8 = vector.multi_reduction <add>, %7, %cst_2 [0] : vector<128x16xf32> to vector<16xf32>
    %9 = vector.shape_cast %8 : vector<16xf32> to vector<1x16xf32>
    %cst_3 = arith.constant 1.280000e+02 : f32
    %10 = vector.broadcast %cst_3 : f32 to vector<1x16xf32>
    %11 = arith.divf %9, %10 : vector<1x16xf32>
    %cst_4 = arith.constant 9.99999974E-6 : f32
    %12 = vector.broadcast %cst_4 : f32 to vector<1x16xf32>
    %13 = arith.addf %11, %12 : vector<1x16xf32>
    %14 = math.rsqrt %13 : vector<1x16xf32>
    %c0_5 = arith.constant 0 : index
    %c0_6 = arith.constant 0 : index
    %15 = vector.load %arg2[%c0_5, %c0_6] : memref<1x16xf32, #tpu.memory_space<vmem>>, vector<1x16xf32>
    %16 = arith.mulf %14, %15 : vector<1x16xf32>
    %17 = vector.broadcast %16 : vector<1x16xf32> to vector<128x16xf32>
    %18 = arith.mulf %6, %17 : vector<128x16xf32>
    %c0_7 = arith.constant 0 : index
    %c0_8 = arith.constant 0 : index
    %19 = vector.load %arg3[%c0_7, %c0_8] : memref<1x16xf32, #tpu.memory_space<vmem>>, vector<1x16xf32>
    %20 = vector.broadcast %19 : vector<1x16xf32> to vector<128x16xf32>
    %21 = arith.addf %18, %20 : vector<128x16xf32>
    %cst_9 = arith.constant 0.000000e+00 : f32
    %22 = vector.broadcast %cst_9 : f32 to vector<128x16xf32>
    %23 = arith.maximumf %21, %22 : vector<128x16xf32>
    %24 = arith.truncf %23 : vector<128x16xf32> to vector<128x16xbf16>
    %c0_10 = arith.constant 0 : index
    %c0_11 = arith.constant 0 : index
    %25 = vector.load %arg4[%c0_10, %c0_11] : memref<128x16xbf16, #tpu.memory_space<vmem>>, vector<128x16xbf16>
    tpu.vector_store %arg4[%c0_10, %c0_11], %24 {strides = array<i32>} : memref<128x16xbf16, #tpu.memory_space<vmem>>, vector<128x16xbf16>,
    return
  }
  func.func @transform_0(%arg0: i32) -> (i32, i32) {
    %c0_i32 = arith.constant 0 : i32
    %c0_i32_0 = arith.constant 0 : i32
    %c0_i32_1 = arith.constant 0 : i32
    return %c0_i32, %c0_i32_0 : i32, i32
  }
  func.func @transform_1(%arg0: i32) -> (i32, i32) {
    %c0_i32 = arith.constant 0 : i32
    %c0_i32_0 = arith.constant 0 : i32
    %c0_i32_1 = arith.constant 0 : i32
    return %c0_i32, %c0_i32_0 : i32, i32
  }
  func.func @transform_2(%arg0: i32) -> (i32, i32) {
    %c0_i32 = arith.constant 0 : i32
    %c0_i32_0 = arith.constant 0 : i32
    %c0_i32_1 = arith.constant 0 : i32
    return %c0_i32, %c0_i32_0 : i32, i32
  }
  func.func @transform_3(%arg0: i32) -> (i32, i32) {
    %c0_i32 = arith.constant 0 : i32
    %c0_i32_0 = arith.constant 0 : i32
    %c0_i32_1 = arith.constant 0 : i32
    return %c0_i32, %c0_i32_0 : i32, i32
  }
}

module attributes {stable_mosaic.version = 11 : i64} {
  func.func @_matmul_kernel(%arg0: i32, %arg1: memref<162x64xbf16, #tpu.memory_space<vmem>>, %arg2: memref<64x32xbf16, #tpu.memory_space<vmem>>, %arg3: memref<162x32xf32, #tpu.memory_space<vmem>>) attributes {dimension_semantics = [#tpu.dimension_semantics<arbitrary>], iteration_bounds = array<i64: 1>, scalar_prefetch = 0 : i64, scratch_operands = 0 : i64, tpu.core_type = #tpu.core_type<tc>, window_params = [{pipeline_mode = #tpu.pipeline_mode<synchronous>, transform_indices = @transform_0, window_bounds = array<i64: 162, 64>}, {pipeline_mode = #tpu.pipeline_mode<synchronous>, transform_indices = @transform_1, window_bounds = array<i64: 64, 32>}, {pipeline_mode = #tpu.pipeline_mode<synchronous>, transform_indices = @transform_2, window_bounds = array<i64: 162, 32>}]} {
    %c0 = arith.constant 0 : index
    %c0_0 = arith.constant 0 : index
    %0 = vector.load %arg1[%c0, %c0_0] : memref<162x64xbf16, #tpu.memory_space<vmem>>, vector<162x64xbf16>
    %c0_1 = arith.constant 0 : index
    %c0_2 = arith.constant 0 : index
    %1 = vector.load %arg2[%c0_1, %c0_2] : memref<64x32xbf16, #tpu.memory_space<vmem>>, vector<64x32xbf16>
    %cst = arith.constant dense<0.000000e+00> : vector<162x32xf32>
    %2 = tpu.matmul %0, %1, %cst {dimension_numbers = #tpu.dot_dimension_numbers<[1], [0], [0], [1], [0, 0, 1, 1], [], []>} : vector<162x64xbf16>, vector<64x32xbf16>, vector<162x32xf32> -> vector<162x32xf32>
    %c0_3 = arith.constant 0 : index
    %c0_4 = arith.constant 0 : index
    %3 = vector.load %arg3[%c0_3, %c0_4] : memref<162x32xf32, #tpu.memory_space<vmem>>, vector<162x32xf32>
    tpu.vector_store %arg3[%c0_3, %c0_4], %2 {strides = array<i32>} : memref<162x32xf32, #tpu.memory_space<vmem>>, vector<162x32xf32>,
    return
  }
  func.func @transform_0(%arg0: i32) -> (i32, i32) {
    %c0_i32 = arith.constant 0 : i32
    %c0_i32_0 = arith.constant 0 : i32
    %c0_i32_1 = arith.constant 0 : i32
    return %c0_i32, %c0_i32_0 : i32, i32
  }
  func.func @transform_1(%arg0: i32) -> (i32, i32) {
    %c0_i32 = arith.constant 0 : i32
    %c0_i32_0 = arith.constant 0 : i32
    %c0_i32_1 = arith.constant 0 : i32
    return %c0_i32, %c0_i32_0 : i32, i32
  }
  func.func @transform_2(%arg0: i32) -> (i32, i32) {
    %c0_i32 = arith.constant 0 : i32
    %c0_i32_0 = arith.constant 0 : i32
    %c0_i32_1 = arith.constant 0 : i32
    return %c0_i32, %c0_i32_0 : i32, i32
  }
}

module attributes {stable_mosaic.version = 11 : i64} {
  func.func @_stats_kernel(%arg0: i32, %arg1: memref<256x8xf32, #tpu.memory_space<vmem>>, %arg2: memref<1x2x8xf32, #tpu.memory_space<vmem>>) attributes {dimension_semantics = [#tpu.dimension_semantics<parallel>], iteration_bounds = array<i64: 2>, scalar_prefetch = 0 : i64, scratch_operands = 0 : i64, tpu.core_type = #tpu.core_type<tc>, window_params = [{transform_indices = @transform_0, window_bounds = array<i64: 256, 8>}, {transform_indices = @transform_1, window_bounds = array<i64: 1, 2, 8>}]} {
    %c0 = arith.constant 0 : index
    %c0_0 = arith.constant 0 : index
    %0 = vector.load %arg1[%c0, %c0_0] : memref<256x8xf32, #tpu.memory_space<vmem>>, vector<256x8xf32>
    %cst = arith.constant dense<0.000000e+00> : vector<8xf32>
    %1 = vector.multi_reduction <add>, %0, %cst [0] : vector<256x8xf32> to vector<8xf32>
    %2 = vector.shape_cast %1 : vector<8xf32> to vector<1x8xf32>
    %3 = arith.mulf %0, %0 : vector<256x8xf32>
    %cst_1 = arith.constant dense<0.000000e+00> : vector<8xf32>
    %4 = vector.multi_reduction <add>, %3, %cst_1 [0] : vector<256x8xf32> to vector<8xf32>
    %5 = vector.shape_cast %4 : vector<8xf32> to vector<1x8xf32>
    %6 = tpu.concatenate %2, %5 in 0 : vector<1x8xf32>, vector<1x8xf32> -> vector<2x8xf32>
    %7 = vector.shape_cast %6 : vector<2x8xf32> to vector<1x2x8xf32>
    %c0_2 = arith.constant 0 : index
    %c0_3 = arith.constant 0 : index
    %c0_4 = arith.constant 0 : index
    %8 = vector.load %arg2[%c0_2, %c0_3, %c0_4] : memref<1x2x8xf32, #tpu.memory_space<vmem>>, vector<1x2x8xf32>
    tpu.vector_store %arg2[%c0_2, %c0_3, %c0_4], %7 {strides = array<i32>} : memref<1x2x8xf32, #tpu.memory_space<vmem>>, vector<1x2x8xf32>,
    return
  }
  func.func @transform_0(%arg0: i32) -> (i32, i32) {
    %c0_i32 = arith.constant 0 : i32
    %c0_i32_0 = arith.constant 0 : i32
    return %arg0, %c0_i32 : i32, i32
  }
  func.func @transform_1(%arg0: i32) -> (i32, i32, i32) {
    %c0_i32 = arith.constant 0 : i32
    %c0_i32_0 = arith.constant 0 : i32
    %c0_i32_1 = arith.constant 0 : i32
    return %arg0, %c0_i32, %c0_i32_0 : i32, i32, i32
  }
}

module attributes {stable_mosaic.version = 11 : i64} {
  func.func @_matmul_tanh_kernel(%arg0: i32, %arg1: memref<256x8xbf16, #tpu.memory_space<vmem>>, %arg2: memref<8x128xbf16, #tpu.memory_space<vmem>>, %arg3: memref<256x128xf32, #tpu.memory_space<vmem>>) attributes {dimension_semantics = [#tpu.dimension_semantics<parallel>], iteration_bounds = array<i64: 2>, scalar_prefetch = 0 : i64, scratch_operands = 0 : i64, tpu.core_type = #tpu.core_type<tc>, window_params = [{transform_indices = @transform_0, window_bounds = array<i64: 256, 8>}, {pipeline_mode = #tpu.pipeline_mode<synchronous>, transform_indices = @transform_1, window_bounds = array<i64: 8, 128>}, {transform_indices = @transform_2, window_bounds = array<i64: 256, 128>}]} {
    %c0 = arith.constant 0 : index
    %c0_0 = arith.constant 0 : index
    %0 = vector.load %arg1[%c0, %c0_0] : memref<256x8xbf16, #tpu.memory_space<vmem>>, vector<256x8xbf16>
    %c0_1 = arith.constant 0 : index
    %c0_2 = arith.constant 0 : index
    %1 = vector.load %arg2[%c0_1, %c0_2] : memref<8x128xbf16, #tpu.memory_space<vmem>>, vector<8x128xbf16>
    %cst = arith.constant dense<0.000000e+00> : vector<256x128xf32>
    %2 = tpu.matmul %0, %1, %cst {dimension_numbers = #tpu.dot_dimension_numbers<[1], [0], [0], [1], [0, 0, 1, 1], [], []>} : vector<256x8xbf16>, vector<8x128xbf16>, vector<256x128xf32> -> vector<256x128xf32>
    %3 = math.tanh %2 : vector<256x128xf32>
    %c0_3 = arith.constant 0 : index
    %c0_4 = arith.constant 0 : index
    %4 = vector.load %arg3[%c0_3, %c0_4] : memref<256x128xf32, #tpu.memory_space<vmem>>, vector<256x128xf32>
    tpu.vector_store %arg3[%c0_3, %c0_4], %3 {strides = array<i32>} : memref<256x128xf32, #tpu.memory_space<vmem>>, vector<256x128xf32>,
    return
  }
  func.func @transform_0(%arg0: i32) -> (i32, i32) {
    %c0_i32 = arith.constant 0 : i32
    %c0_i32_0 = arith.constant 0 : i32
    return %arg0, %c0_i32 : i32, i32
  }
  func.func @transform_1(%arg0: i32) -> (i32, i32) {
    %c0_i32 = arith.constant 0 : i32
    %c0_i32_0 = arith.constant 0 : i32
    %c0_i32_1 = arith.constant 0 : i32
    return %c0_i32, %c0_i32_0 : i32, i32
  }
  func.func @transform_2(%arg0: i32) -> (i32, i32) {
    %c0_i32 = arith.constant 0 : i32
    %c0_i32_0 = arith.constant 0 : i32
    return %arg0, %c0_i32 : i32, i32
  }
}

module attributes {stable_mosaic.version = 11 : i64} {
  func.func @_scale_shift_relu_kernel(%arg0: i32, %arg1: memref<256x8xf32, #tpu.memory_space<vmem>>, %arg2: memref<1x8xf32, #tpu.memory_space<vmem>>, %arg3: memref<1x8xf32, #tpu.memory_space<vmem>>, %arg4: memref<256x8xbf16, #tpu.memory_space<vmem>>) attributes {dimension_semantics = [#tpu.dimension_semantics<parallel>], iteration_bounds = array<i64: 2>, scalar_prefetch = 0 : i64, scratch_operands = 0 : i64, tpu.core_type = #tpu.core_type<tc>, window_params = [{transform_indices = @transform_0, window_bounds = array<i64: 256, 8>}, {pipeline_mode = #tpu.pipeline_mode<synchronous>, transform_indices = @transform_1, window_bounds = array<i64: 1, 8>}, {pipeline_mode = #tpu.pipeline_mode<synchronous>, transform_indices = @transform_2, window_bounds = array<i64: 1, 8>}, {transform_indices = @transform_3, window_bounds = array<i64: 256, 8>}]} {
    %c0 = arith.constant 0 : index
    %c0_0 = arith.constant 0 : index
    %0 = vector.load %arg1[%c0, %c0_0] : memref<256x8xf32, #tpu.memory_space<vmem>>, vector<256x8xf32>
    %c0_1 = arith.constant 0 : index
    %c0_2 = arith.constant 0 : index
    %1 = vector.load %arg2[%c0_1, %c0_2] : memref<1x8xf32, #tpu.memory_space<vmem>>, vector<1x8xf32>
    %2 = vector.broadcast %1 : vector<1x8xf32> to vector<256x8xf32>
    %3 = arith.mulf %0, %2 : vector<256x8xf32>
    %c0_3 = arith.constant 0 : index
    %c0_4 = arith.constant 0 : index
    %4 = vector.load %arg3[%c0_3, %c0_4] : memref<1x8xf32, #tpu.memory_space<vmem>>, vector<1x8xf32>
    %5 = vector.broadcast %4 : vector<1x8xf32> to vector<256x8xf32>
    %6 = arith.addf %3, %5 : vector<256x8xf32>
    %cst = arith.constant 0.000000e+00 : f32
    %7 = vector.broadcast %cst : f32 to vector<256x8xf32>
    %8 = arith.maximumf %6, %7 : vector<256x8xf32>
    %9 = arith.truncf %8 : vector<256x8xf32> to vector<256x8xbf16>
    %c0_5 = arith.constant 0 : index
    %c0_6 = arith.constant 0 : index
    %10 = vector.load %arg4[%c0_5, %c0_6] : memref<256x8xbf16, #tpu.memory_space<vmem>>, vector<256x8xbf16>
    tpu.vector_store %arg4[%c0_5, %c0_6], %9 {strides = array<i32>} : memref<256x8xbf16, #tpu.memory_space<vmem>>, vector<256x8xbf16>,
    return
  }
  func.func @transform_0(%arg0: i32) -> (i32, i32) {
    %c0_i32 = arith.constant 0 : i32
    %c0_i32_0 = arith.constant 0 : i32
    return %arg0, %c0_i32 : i32, i32
  }
  func.func @transform_1(%arg0: i32) -> (i32, i32) {
    %c0_i32 = arith.constant 0 : i32
    %c0_i32_0 = arith.constant 0 : i32
    %c0_i32_1 = arith.constant 0 : i32
    return %c0_i32, %c0_i32_0 : i32, i32
  }
  func.func @transform_2(%arg0: i32) -> (i32, i32) {
    %c0_i32 = arith.constant 0 : i32
    %c0_i32_0 = arith.constant 0 : i32
    %c0_i32_1 = arith.constant 0 : i32
    return %c0_i32, %c0_i32_0 : i32, i32
  }
  func.func @transform_3(%arg0: i32) -> (i32, i32) {
    %c0_i32 = arith.constant 0 : i32
    %c0_i32_0 = arith.constant 0 : i32
    return %arg0, %c0_i32 : i32, i32
  }
}

</mosaic_0001>

<llo_original>
// kernel: _lambda_.8
$region0: #{_lambda_.8}
  #allocation0 [shape = 'u32[]', space=smem, size = 0x4, offset = 0x4, fixed_abs, tag = 'smem constant byte address 0x4 - core index']
  #allocation1 [shape = 'u32[144,128]{1,0:T(1,128)}', space=vmem, size = 0x12000, scoped, tag = 'internal scratch']
  %s0 = inlined_call_operand.vmem [shape: bf16[18,32], index: 0, kind: input, shape index: {}]
  %s1 = inlined_call_operand.hbm [shape: bf16[32,64], index: 1, kind: input, shape index: {}]
  %s2 = inlined_call_operand.hbm [shape: f32[1,64], index: 2, kind: input, shape index: {}]
  %s3 = inlined_call_operand.vmem [shape: f32[1,64], index: 3, kind: input, shape index: {}]
  %s4 = inlined_call_operand.vmem [shape: bf16[18,64], index: 4, kind: output, shape index: {}]
  %s5 = sld [smem:[#allocation0]]
  $region34: #{_lambda_.8} parent=0
    _
  %s7 = ssub.s32 1, %s5
  %s8 = scalar_select 0, %s7, %s5
  $region1: #{_lambda_.8} parent=0
    #allocation2 [shape = 'u8[8192]{0}', space=vmem, size = 0x2000, scoped, tag = 'input window, operand 1, single buffered']
    #allocation3 [shape = 's32[1]{0}', space=sflag, size = 0x4, scoped, tag = 'scoped memory for _lambda_.8']
    #allocation4 [shape = 'u8[512]{0}', space=vmem, size = 0x400, scoped, tag = 'input window, operand 2, single buffered']
    #allocation5 [shape = 's32[1]{0}', space=sflag, size = 0x4, scoped, tag = 'scoped memory for _lambda_.8']
    %9 = vsyncpa [#allocation3], 0
    %10 = vsyncpa [#allocation5], 0
    // Predicated region
    $region2: #{_lambda_.8} parent=1 // pred_check
      _
    $region3: #{_lambda_.8} parent=1 // pred_check_branch
      %12 = sbr.rel (0) target = $region5
    $region4: #{_lambda_.8} parent=1 // pred_region
      _
    $region5: #{_lambda_.8} parent=1 // pred_fallthru
      _
    // Predicated region
    $region6: #{_lambda_.8} parent=1 // pred_check
      _
    $region7: #{_lambda_.8} parent=1 // pred_check_branch
      %14 = sbr.rel (0) target = $region9
    $region8: #{_lambda_.8} parent=1 // pred_region
      %s16 = ssub.s32 256, 256
      %17 = vsyncadd [#allocation3], %s16
      %s18 = sshll.u32 [#allocation2], 4
      %s19 = int_to_ptr.vmem [resolvable:$true] %s18
      %24 = dma.hbm_to_vmem [thread:$0]  %s1, 256, %s19, [#allocation3], 64, 64, 4
    $region9: #{_lambda_.8} parent=1 // pred_fallthru
      _
    // Predicated region
    $region10: #{_lambda_.8} parent=1 // pred_check
      _
    $region11: #{_lambda_.8} parent=1 // pred_check_branch
      %26 = sbr.rel (0) target = $region13
    $region12: #{_lambda_.8} parent=1 // pred_region
      %s28 = ssub.s32 16, 16
      %29 = vsyncadd [#allocation5], %s28
      %s31 = sshll.u32 [#allocation4], 4
      %s32 = int_to_ptr.vmem [resolvable:$true] %s31
      %34 = dma.hbm_to_vmem [thread:$0]  %s2, 16, %s32, [#allocation5]
    $region13: #{_lambda_.8} parent=1 // pred_fallthru
      _
    // Predicated region
    $region14: #{_lambda_.8} parent=1 // pred_check
      _
    $region15: #{_lambda_.8} parent=1 // pred_check_branch
      %36 = sbr.rel (0) target = $region17
    $region16: #{_lambda_.8} parent=1 // pred_region
      _
    $region17: #{_lambda_.8} parent=1 // pred_fallthru
      _
    // Predicated region
    $region18: #{_lambda_.8} parent=1 // pred_check
      _
    $region19: #{_lambda_.8} parent=1 // pred_check_branch
      %38 = sbr.rel (0) target = $region21
    $region20: #{_lambda_.8} parent=1 // pred_region
      %39 = dma.done [#allocation3], 256
    $region21: #{_lambda_.8} parent=1 // pred_fallthru
      _
    // Predicated region
    $region22: #{_lambda_.8} parent=1 // pred_check
      _
    $region23: #{_lambda_.8} parent=1 // pred_check_branch
      %41 = sbr.rel (0) target = $region25
    $region24: #{_lambda_.8} parent=1 // pred_region
      %42 = dma.done [#allocation5], 16
    $region25: #{_lambda_.8} parent=1 // pred_fallthru
      _
    %v44 = vld [vmem:[%s0] sm:$0xf]
    %v45 = vld [vmem:[%s0 + $0x4] sm:$0xf]
    %v46 = vld [vmem:[%s0 + $0x8] sm:$0x1]
    %v47 = vld [vmem:[#allocation2] sm:$0xf]
    %v48 = vld [vmem:[#allocation2 + $0x4] sm:$0xf]
    %v49 = vld [vmem:[#allocation2 + $0x8] sm:$0xf]
    %v50 = vld [vmem:[#allocation2 + $0xc] sm:$0xf]
    %v54 = vunpack.c.l.b16 %v44
    %v55 = vunpack.c.l.b16 %v45
    %v56 = vunpack.c.l.b16 %v46
    %v57 = vpack.c.b16 %v55, %v54
    %v58 = vpack.c.b16 %v56, %v56
    %v63 = vunpack.c.l.b16 %v47
    %v64 = vunpack.c.l.b16 %v48
    %v65 = vunpack.c.l.b16 %v49
    %v66 = vunpack.c.l.b16 %v50
    %v67 = vpack.c.b16 %v64, %v63
    %v68 = vpack.c.b16 %v66, %v65
    %vm71 = vcmask 261120
    %v73 = vsel %vm71, %v57, 0
    %v76 = vsel %vm71, %v58, 0
    %78 = vmatprep.subr.bf16.mxu0 0
    %79 = vmatpush1.bf16.msra.mxu0 %v67
    %80 = vmatprep.subr.bf16.mxu0 0
    %81 = vmatpush1.bf16.msra.mxu0 %v68
    %82 = vmatprep.subr.bf16.mxu0 0
    %83 = vmatpush1.bf16.msra.mxu0 0
    %84 = vmatprep.subr.bf16.mxu0 0
    %85 = vmatpush1.bf16.msra.mxu0 0
    %86 = vmatprep.subr.bf16.mxu0 0
    %87 = vmatpush1.bf16.msra.mxu0 0
    %88 = vmatprep.subr.bf16.mxu0 0
    %89 = vmatpush1.bf16.msra.mxu0 0
    %90 = vmatprep.subr.bf16.mxu0 0
    %91 = vmatpush1.bf16.msra.mxu0 0
    %92 = vmatprep.subr.bf16.mxu0 0
    %93 = vmatpush1.bf16.msra.mxu0 0
    %94 = vmatprep.subr.bf16.mxu0 0
    %95 = vmatpush1.bf16.msra.mxu0 0
    %96 = vmatprep.subr.bf16.mxu0 0
    %97 = vmatpush1.bf16.msra.mxu0 0
    %98 = vmatprep.subr.bf16.mxu0 0
    %99 = vmatpush1.bf16.msra.mxu0 0
    %100 = vmatprep.subr.bf16.mxu0 0
    %101 = vmatpush1.bf16.msra.mxu0 0
    %102 = vmatprep.subr.bf16.mxu0 0
    %103 = vmatpush1.bf16.msra.mxu0 0
    %104 = vmatprep.subr.bf16.mxu0 0
    %105 = vmatpush1.bf16.msra.mxu0 0
    %106 = vmatprep.subr.bf16.mxu0 0
    %107 = vmatpush1.bf16.msra.mxu0 0
    %108 = vmatprep.subr.bf16.mxu0 0
    %109 = vmatpush1.bf16.msra.mxu0 0
    %110 = vmatprep.mubr.bf16.mxu0 0
    %111 = vmatmul.mubr.bf16.gmra.mrb[0].mxu0 %v73
    %v112 = vpop.f32.mrb[0].mxu0
    %v113 = vadd.f32 0.0, %v112
    %v114 = vpop.f32.mrb[0].mxu0
    %v115 = vpop.f32.mrb[0].mxu0
    %v116 = vadd.f32 0.0, %v115
    %v117 = vpop.f32.mrb[0].mxu0
    %118 = vmatprep.mubr.bf16.mxu0 0
    %119 = vmatmul.mubr.bf16.gmra.mrb[0].mxu0 %v76
    %v120 = vpop.f32.mrb[0].mxu0
    %v121 = vadd.f32 0.0, %v120
    %v122 = vpop.f32.mrb[0].mxu0
    %v123 = vpop.f32.mrb[0].mxu0
    %v124 = vpop.f32.mrb[0].mxu0
    %125 = vdwg.mxu0
    %vm126 = vcmask 523264
    %v127 = vsel %vm126, %v113, 0.0
    %v128 = vsel %vm126, %v116, 0.0
    %v129 = vadd.f32 %v127, %v128
    %vm130 = vcmask 517120
    %v131 = vsel %vm130, %v121, 0.0
    %v132 = vadd.f32 %v129, %v131
    %v133 = vrot.slane %v132, 4
    %v134 = vadd.f32 %v132, %v133
    %v135 = vrot.slane %v134, 2
    %v136 = vadd.f32 %v134, %v135
    %v137 = vrot.slane %v136, 1
    %v138 = vadd.f32 %v136, %v137
    %v139 = vrcp.pop 18.0
    %v140 = vmul.f32 %v138, %v139
    %v141 = vsub.f32 %v113, %v140
    %v142 = vsub.f32 %v116, %v140
    %v143 = vsub.f32 %v121, %v140
    %v144 = vmul.f32 %v141, %v141
    %v145 = vmul.f32 %v142, %v142
    %v146 = vmul.f32 %v143, %v143
    %v147 = vsel %vm126, %v144, 0.0
    %v148 = vsel %vm126, %v145, 0.0
    %v149 = vadd.f32 %v147, %v148
    %v150 = vsel %vm130, %v146, 0.0
    %v151 = vadd.f32 %v149, %v150
    %v152 = vrot.slane %v151, 4
    %v153 = vadd.f32 %v151, %v152
    %v154 = vrot.slane %v153, 2
    %v155 = vadd.f32 %v153, %v154
    %v156 = vrot.slane %v155, 1
    %v157 = vadd.f32 %v155, %v156
    %v158 = vmul.f32 %v157, %v139
    %v159 = vadd.f32 %v158, 1e-05
    %v160 = vrsqrt.pop %v159
    %v161 = vld [vmem:[#allocation4] sm:$0x1]
    %v162 = vmul.f32 %v160, %v161
    %v163 = vlaneseq
    %v164 = vshrl.u32 %v163, 7
    %v165 = vsub.s32 0, %v164
    %v166 = vrot.slane %v162, %v165
    %v167 = vmul.f32 %v141, %v166
    %v168 = vmul.f32 %v142, %v166
    %v169 = vmul.f32 %v143, %v166
    %v170 = vld [vmem:[%s3] sm:$0x1]
    %v172 = vlaneseq
    %v173 = vshrl.u32 %v172, 7
    %v174 = vsub.s32 0, %v173
    %v175 = vrot.slane %v170, %v174
    %v177 = vadd.f32 %v167, %v175
    %v178 = vadd.f32 %v168, %v175
    %v179 = vadd.f32 %v169, %v175
    %v180 = vmax.f32 %v177, 0.0
    %v181 = vmax.f32 %v178, 0.0
    %v182 = vmax.f32 %v179, 0.0
    %v183 = vpack.c.bf16 %v181, %v180
    %v184 = vpack.c.bf16 %v182, %v182
    %v187 = vunpack.c.l.b16 %v183
    %v188 = vunpack.c.h.b16 %v183
    %v189 = vunpack.c.l.b16 %v184
    %v190 = vpack.c.b16 %v187, %v187
    %v191 = vpack.c.b16 %v188, %v188
    %v192 = vpack.c.b16 %v189, %v189
    %vm196 = vcmask 519168
    %197 = vst.msk [vmem:[%s4] sm:$0xf] %vm196, %v190
    %198 = vst.msk [vmem:[%s4 + $0x4] sm:$0xf] %vm196, %v191
    %vm199 = vcmask 516096
    %200 = vst.msk [vmem:[%s4 + $0x8] sm:$0x1] %vm199, %v192
    // Predicated region
    $region26: #{_lambda_.8} parent=1 // pred_check
      _
    $region27: #{_lambda_.8} parent=1 // pred_check_branch
      %202 = sbr.rel (0) target = $region29
    $region28: #{_lambda_.8} parent=1 // pred_region
      _
    $region29: #{_lambda_.8} parent=1 // pred_fallthru
      _
    // Predicated region
    $region30: #{_lambda_.8} parent=1 // pred_check
      _
    $region31: #{_lambda_.8} parent=1 // pred_check_branch
      %204 = sbr.rel (0) target = $region33
    $region32: #{_lambda_.8} parent=1 // pred_region
      _
    $region33: #{_lambda_.8} parent=1 // pred_fallthru
      _
    %205 = vsyncpa [#allocation3], 1
    %206 = vsyncpa [#allocation5], 1

// kernel: _lambda_.9
$region0: #{_lambda_.9}
  #allocation0 [shape = 'u32[]', space=smem, size = 0x4, offset = 0x4, fixed_abs, tag = 'smem constant byte address 0x4 - core index']
  #allocation1 [shape = 'u32[144,128]{1,0:T(1,128)}', space=vmem, size = 0x12000, scoped, tag = 'internal scratch']
  %s0 = inlined_call_operand.vmem [shape: bf16[32,1024], index: 0, kind: input, shape index: {}]
  %s1 = inlined_call_operand.hbm [shape: bf16[1024,32], index: 1, kind: input, shape index: {}]
  %s2 = inlined_call_operand.hbm [shape: f32[1,32], index: 2, kind: input, shape index: {}]
  %s3 = inlined_call_operand.vmem [shape: f32[1,32], index: 3, kind: input, shape index: {}]
  %s4 = inlined_call_operand.vmem [shape: bf16[32,32], index: 4, kind: output, shape index: {}]
  %s5 = sld [smem:[#allocation0]]
  $region34: #{_lambda_.9} parent=0
    _
  %s7 = ssub.s32 1, %s5
  %s8 = scalar_select 0, %s7, %s5
  $region1: #{_lambda_.9} parent=0
    #allocation2 [shape = 'u8[262144]{0}', space=vmem, size = 0x40000, scoped, tag = 'input window, operand 1, single buffered']
    #allocation3 [shape = 's32[1]{0}', space=sflag, size = 0x4, scoped, tag = 'scoped memory for _lambda_.9']
    #allocation4 [shape = 'u8[512]{0}', space=vmem, size = 0x400, scoped, tag = 'input window, operand 2, single buffered']
    #allocation5 [shape = 's32[1]{0}', space=sflag, size = 0x4, scoped, tag = 'scoped memory for _lambda_.9']
    %9 = vsyncpa [#allocation3], 0
    %10 = vsyncpa [#allocation5], 0
    // Predicated region
    $region2: #{_lambda_.9} parent=1 // pred_check
      _
    $region3: #{_lambda_.9} parent=1 // pred_check_branch
      %12 = sbr.rel (0) target = $region5
    $region4: #{_lambda_.9} parent=1 // pred_region
      _
    $region5: #{_lambda_.9} parent=1 // pred_fallthru
      _
    // Predicated region
    $region6: #{_lambda_.9} parent=1 // pred_check
      _
    $region7: #{_lambda_.9} parent=1 // pred_check_branch
      %14 = sbr.rel (0) target = $region9
    $region8: #{_lambda_.9} parent=1 // pred_region
      %s16 = ssub.s32 8192, 8192
      %17 = vsyncadd [#allocation3], %s16
      %s18 = sshll.u32 [#allocation2], 4
      %s19 = int_to_ptr.vmem [resolvable:$true] %s18
      %24 = dma.hbm_to_vmem [thread:$0]  %s1, 8192, %s19, [#allocation3], 64, 64, 4
    $region9: #{_lambda_.9} parent=1 // pred_fallthru
      _
    // Predicated region
    $region10: #{_lambda_.9} parent=1 // pred_check
      _
    $region11: #{_lambda_.9} parent=1 // pred_check_branch
      %26 = sbr.rel (0) target = $region13
    $region12: #{_lambda_.9} parent=1 // pred_region
      %s28 = ssub.s32 16, 16
      %29 = vsyncadd [#allocation5], %s28
      %s31 = sshll.u32 [#allocation4], 4
      %s32 = int_to_ptr.vmem [resolvable:$true] %s31
      %34 = dma.hbm_to_vmem [thread:$0]  %s2, 16, %s32, [#allocation5]
    $region13: #{_lambda_.9} parent=1 // pred_fallthru
      _
    // Predicated region
    $region14: #{_lambda_.9} parent=1 // pred_check
      _
    $region15: #{_lambda_.9} parent=1 // pred_check_branch
      %36 = sbr.rel (0) target = $region17
    $region16: #{_lambda_.9} parent=1 // pred_region
      _
    $region17: #{_lambda_.9} parent=1 // pred_fallthru
      _
    // Predicated region
    $region18: #{_lambda_.9} parent=1 // pred_check
      _
    $region19: #{_lambda_.9} parent=1 // pred_check_branch
      %38 = sbr.rel (0) target = $region21
    $region20: #{_lambda_.9} parent=1 // pred_region
      %39 = dma.done [#allocation3], 8192
    $region21: #{_lambda_.9} parent=1 // pred_fallthru
      _
    // Predicated region
    $region22: #{_lambda_.9} parent=1 // pred_check
      _
    $region23: #{_lambda_.9} parent=1 // pred_check_branch
      %41 = sbr.rel (0) target = $region25
    $region24: #{_lambda_.9} parent=1 // pred_region
      %42 = dma.done [#allocation5], 16
    $region25: #{_lambda_.9} parent=1 // pred_fallthru
      _
    %v44 = vld [vmem:[%s0] sm:$0xff]
    %v45 = vld [vmem:[%s0 + $0x8] sm:$0xff]
    %v46 = vld [vmem:[%s0 + $0x10] sm:$0xff]
    %v47 = vld [vmem:[%s0 + $0x18] sm:$0xff]
    %v48 = vld [vmem:[%s0 + $0x20] sm:$0xff]
    %v49 = vld [vmem:[%s0 + $0x28] sm:$0xff]
    %v50 = vld [vmem:[%s0 + $0x30] sm:$0xff]
    %v51 = vld [vmem:[%s0 + $0x38] sm:$0xff]
    %v52 = vld [vmem:[%s0 + $0x40] sm:$0xff]
    %v53 = vld [vmem:[%s0 + $0x48] sm:$0xff]
    %v54 = vld [vmem:[%s0 + $0x50] sm:$0xff]
    %v55 = vld [vmem:[%s0 + $0x58] sm:$0xff]
    %v56 = vld [vmem:[%s0 + $0x60] sm:$0xff]
    %v57 = vld [vmem:[%s0 + $0x68] sm:$0xff]
    %v58 = vld [vmem:[%s0 + $0x70] sm:$0xff]
    %v59 = vld [vmem:[%s0 + $0x78] sm:$0xff]
    %v60 = vld [vmem:[#allocation2] sm:$0xf]
    %v61 = vld [vmem:[#allocation2 + $0x4] sm:$0xf]
    %v62 = vld [vmem:[#allocation2 + $0x8] sm:$0xf]
    %v63 = vld [vmem:[#allocation2 + $0xc] sm:$0xf]
    %v64 = vld [vmem:[#allocation2 + $0x10] sm:$0xf]
    %v65 = vld [vmem:[#allocation2 + $0x14] sm:$0xf]
    %v66 = vld [vmem:[#allocation2 + $0x18] sm:$0xf]
    %v67 = vld [vmem:[#allocation2 + $0x1c] sm:$0xf]
    %v68 = vld [vmem:[#allocation2 + $0x20] sm:$0xf]
    %v69 = vld [vmem:[#allocation2 + $0x24] sm:$0xf]
    %v70 = vld [vmem:[#allocation2 + $0x28] sm:$0xf]
    %v71 = vld [vmem:[#allocation2 + $0x2c] sm:$0xf]
    %v72 = vld [vmem:[#allocation2 + $0x30] sm:$0xf]
    %v73 = vld [vmem:[#allocation2 + $0x34] sm:$0xf]
    %v74 = vld [vmem:[#allocation2 + $0x38] sm:$0xf]
    %v75 = vld [vmem:[#allocation2 + $0x3c] sm:$0xf]
    %v76 = vld [vmem:[#allocation2 + $0x40] sm:$0xf]
    %v77 = vld [vmem:[#allocation2 + $0x44] sm:$0xf]
    %v78 = vld [vmem:[#allocation2 + $0x48] sm:$0xf]
    %v79 = vld [vmem:[#allocation2 + $0x4c] sm:$0xf]
    %v80 = vld [vmem:[#allocation2 + $0x50] sm:$0xf]
    %v81 = vld [vmem:[#allocation2 + $0x54] sm:$0xf]
    %v82 = vld [vmem:[#allocation2 + $0x58] sm:$0xf]
    %v83 = vld [vmem:[#allocation2 + $0x5c] sm:$0xf]
    %v84 = vld [vmem:[#allocation2 + $0x60] sm:$0xf]
    %v85 = vld [vmem:[#allocation2 + $0x64] sm:$0xf]
    %v86 = vld [vmem:[#allocation2 + $0x68] sm:$0xf]
    %v87 = vld [vmem:[#allocation2 + $0x6c] sm:$0xf]
    %v88 = vld [vmem:[#allocation2 + $0x70] sm:$0xf]
    %v89 = vld [vmem:[#allocation2 + $0x74] sm:$0xf]
    %v90 = vld [vmem:[#allocation2 + $0x78] sm:$0xf]
    %v91 = vld [vmem:[#allocation2 + $0x7c] sm:$0xf]
    %v92 = vld [vmem:[#allocation2 + $0x80] sm:$0xf]
    %v93 = vld [vmem:[#allocation2 + $0x84] sm:$0xf]
    %v94 = vld [vmem:[#allocation2 + $0x88] sm:$0xf]
    %v95 = vld [vmem:[#allocation2 + $0x8c] sm:$0xf]
    %v96 = vld [vmem:[#allocation2 + $0x90] sm:$0xf]
    %v97 = vld [vmem:[#allocation2 + $0x94] sm:$0xf]
    %v98 = vld [vmem:[#allocation2 + $0x98] sm:$0xf]
    %v99 = vld [vmem:[#allocation2 + $0x9c] sm:$0xf]
    %v100 = vld [vmem:[#allocation2 + $0xa0] sm:$0xf]
    %v101 = vld [vmem:[#allocation2 + $0xa4] sm:$0xf]
    %v102 = vld [vmem:[#allocation2 + $0xa8] sm:$0xf]
    %v103 = vld [vmem:[#allocation2 + $0xac] sm:$0xf]
    %v104 = vld [vmem:[#allocation2 + $0xb0] sm:$0xf]
    %v105 = vld [vmem:[#allocation2 + $0xb4] sm:$0xf]
    %v106 = vld [vmem:[#allocation2 + $0xb8] sm:$0xf]
    %v107 = vld [vmem:[#allocation2 + $0xbc] sm:$0xf]
    %v108 = vld [vmem:[#allocation2 + $0xc0] sm:$0xf]
    %v109 = vld [vmem:[#allocation2 + $0xc4] sm:$0xf]
    %v110 = vld [vmem:[#allocation2 + $0xc8] sm:$0xf]
    %v111 = vld [vmem:[#allocation2 + $0xcc] sm:$0xf]
    %v112 = vld [vmem:[#allocation2 + $0xd0] sm:$0xf]
    %v113 = vld [vmem:[#allocation2 + $0xd4] sm:$0xf]
    %v114 = vld [vmem:[#allocation2 + $0xd8] sm:$0xf]
    %v115 = vld [vmem:[#allocation2 + $0xdc] sm:$0xf]
    %v116 = vld [vmem:[#allocation2 + $0xe0] sm:$0xf]
    %v117 = vld [vmem:[#allocation2 + $0xe4] sm:$0xf]
    %v118 = vld [vmem:[#allocation2 + $0xe8] sm:$0xf]
    %v119 = vld [vmem:[#allocation2 + $0xec] sm:$0xf]
    %v120 = vld [vmem:[#allocation2 + $0xf0] sm:$0xf]
    %v121 = vld [vmem:[#allocation2 + $0xf4] sm:$0xf]
    %v122 = vld [vmem:[#allocation2 + $0xf8] sm:$0xf]
    %v123 = vld [vmem:[#allocation2 + $0xfc] sm:$0xf]
    %v124 = vld [vmem:[#allocation2 + $0x100] sm:$0xf]
    %v125 = vld [vmem:[#allocation2 + $0x104] sm:$0xf]
    %v126 = vld [vmem:[#allocation2 + $0x108] sm:$0xf]
    %v127 = vld [vmem:[#allocation2 + $0x10c] sm:$0xf]
    %v128 = vld [vmem:[#allocation2 + $0x110] sm:$0xf]
    %v129 = vld [vmem:[#allocation2 + $0x114] sm:$0xf]
    %v130 = vld [vmem:[#allocation2 + $0x118] sm:$0xf]
    %v131 = vld [vmem:[#allocation2 + $0x11c] sm:$0xf]
    %v132 = vld [vmem:[#allocation2 + $0x120] sm:$0xf]
    %v133 = vld [vmem:[#allocation2 + $0x124] sm:$0xf]
    %v134 = vld [vmem:[#allocation2 + $0x128] sm:$0xf]
    %v135 = vld [vmem:[#allocation2 + $0x12c] sm:$0xf]
    %v136 = vld [vmem:[#allocation2 + $0x130] sm:$0xf]
    %v137 = vld [vmem:[#allocation2 + $0x134] sm:$0xf]
    %v138 = vld [vmem:[#allocation2 + $0x138] sm:$0xf]
    %v139 = vld [vmem:[#allocation2 + $0x13c] sm:$0xf]
    %v140 = vld [vmem:[#allocation2 + $0x140] sm:$0xf]
    %v141 = vld [vmem:[#allocation2 + $0x144] sm:$0xf]
    %v142 = vld [vmem:[#allocation2 + $0x148] sm:$0xf]
    %v143 = vld [vmem:[#allocation2 + $0x14c] sm:$0xf]
    %v144 = vld [vmem:[#allocation2 + $0x150] sm:$0xf]
    %v145 = vld [vmem:[#allocation2 + $0x154] sm:$0xf]
    %v146 = vld [vmem:[#allocation2 + $0x158] sm:$0xf]
    %v147 = vld [vmem:[#allocation2 + $0x15c] sm:$0xf]
    %v148 = vld [vmem:[#allocation2 + $0x160] sm:$0xf]
    %v149 = vld [vmem:[#allocation2 + $0x164] sm:$0xf]
    %v150 = vld [vmem:[#allocation2 + $0x168] sm:$0xf]
    %v151 = vld [vmem:[#allocation2 + $0x16c] sm:$0xf]
    %v152 = vld [vmem:[#allocation2 + $0x170] sm:$0xf]
    %v153 = vld [vmem:[#allocation2 + $0x174] sm:$0xf]
    %v154 = vld [vmem:[#allocation2 + $0x178] sm:$0xf]
    %v155 = vld [vmem:[#allocation2 + $0x17c] sm:$0xf]
    %v156 = vld [vmem:[#allocation2 + $0x180] sm:$0xf]
    %v157 = vld [vmem:[#allocation2 + $0x184] sm:$0xf]
    %v158 = vld [vmem:[#allocation2 + $0x188] sm:$0xf]
    %v159 = vld [vmem:[#allocation2 + $0x18c] sm:$0xf]
    %v160 = vld [vmem:[#allocation2 + $0x190] sm:$0xf]
    %v161 = vld [vmem:[#allocation2 + $0x194] sm:$0xf]
    %v162 = vld [vmem:[#allocation2 + $0x198] sm:$0xf]
    %v163 = vld [vmem:[#allocation2 + $0x19c] sm:$0xf]
    %v164 = vld [vmem:[#allocation2 + $0x1a0] sm:$0xf]
    %v165 = vld [vmem:[#allocation2 + $0x1a4] sm:$0xf]
    %v166 = vld [vmem:[#allocation2 + $0x1a8] sm:$0xf]
    %v167 = vld [vmem:[#allocation2 + $0x1ac] sm:$0xf]
    %v168 = vld [vmem:[#allocation2 + $0x1b0] sm:$0xf]
    %v169 = vld [vmem:[#allocation2 + $0x1b4] sm:$0xf]
    %v170 = vld [vmem:[#allocation2 + $0x1b8] sm:$0xf]
    %v171 = vld [vmem:[#allocation2 + $0x1bc] sm:$0xf]
    %v172 = vld [vmem:[#allocation2 + $0x1c0] sm:$0xf]
    %v173 = vld [vmem:[#allocation2 + $0x1c4] sm:$0xf]
    %v174 = vld [vmem:[#allocation2 + $0x1c8] sm:$0xf]
    %v175 = vld [vmem:[#allocation2 + $0x1cc] sm:$0xf]
    %v176 = vld [vmem:[#allocation2 + $0x1d0] sm:$0xf]
    %v177 = vld [vmem:[#allocation2 + $0x1d4] sm:$0xf]
    %v178 = vld [vmem:[#allocation2 + $0x1d8] sm:$0xf]
    %v179 = vld [vmem:[#allocation2 + $0x1dc] sm:$0xf]
    %v180 = vld [vmem:[#allocation2 + $0x1e0] sm:$0xf]
    %v181 = vld [vmem:[#allocation2 + $0x1e4] sm:$0xf]
    %v182 = vld [vmem:[#allocation2 + $0x1e8] sm:$0xf]
    %v183 = vld [vmem:[#allocation2 + $0x1ec] sm:$0xf]
    %v184 = vld [vmem:[#allocation2 + $0x1f0] sm:$0xf]
    %v185 = vld [vmem:[#allocation2 + $0x1f4] sm:$0xf]
    %v186 = vld [vmem:[#allocation2 + $0x1f8] sm:$0xf]
    %v187 = vld [vmem:[#allocation2 + $0x1fc] sm:$0xf]
    %v204 = vunpack.c.l.b16 %v44
    %v205 = vunpack.c.h.b16 %v44
    %v206 = vunpack.c.l.b16 %v45
    %v207 = vunpack.c.h.b16 %v45
    %v208 = vunpack.c.l.b16 %v46
    %v209 = vunpack.c.h.b16 %v46
    %v210 = vunpack.c.l.b16 %v47
    %v211 = vunpack.c.h.b16 %v47
    %v212 = vunpack.c.l.b16 %v48
    %v213 = vunpack.c.h.b16 %v48
    %v214 = vunpack.c.l.b16 %v49
    %v215 = vunpack.c.h.b16 %v49
    %v216 = vunpack.c.l.b16 %v50
    %v217 = vunpack.c.h.b16 %v50
    %v218 = vunpack.c.l.b16 %v51
    %v219 = vunpack.c.h.b16 %v51
    %v220 = vunpack.c.l.b16 %v52
    %v221 = vunpack.c.h.b16 %v52
    %v222 = vunpack.c.l.b16 %v53
    %v223 = vunpack.c.h.b16 %v53
    %v224 = vunpack.c.l.b16 %v54
    %v225 = vunpack.c.h.b16 %v54
    %v226 = vunpack.c.l.b16 %v55
    %v227 = vunpack.c.h.b16 %v55
    %v228 = vunpack.c.l.b16 %v56
    %v229 = vunpack.c.h.b16 %v56
    %v230 = vunpack.c.l.b16 %v57
    %v231 = vunpack.c.h.b16 %v57
    %v232 = vunpack.c.l.b16 %v58
    %v233 = vunpack.c.h.b16 %v58
    %v234 = vunpack.c.l.b16 %v59
    %v235 = vunpack.c.h.b16 %v59
    %v236 = vpack.c.b16 %v212, %v204
    %v237 = vpack.c.b16 %v213, %v205
    %v238 = vpack.c.b16 %v214, %v206
    %v239 = vpack.c.b16 %v215, %v207
    %v240 = vpack.c.b16 %v216, %v208
    %v241 = vpack.c.b16 %v217, %v209
    %v242 = vpack.c.b16 %v218, %v210
    %v243 = vpack.c.b16 %v219, %v211
    %v244 = vpack.c.b16 %v228, %v220
    %v245 = vpack.c.b16 %v229, %v221
    %v246 = vpack.c.b16 %v230, %v222
    %v247 = vpack.c.b16 %v231, %v223
    %v248 = vpack.c.b16 %v232, %v224
    %v249 = vpack.c.b16 %v233, %v225
    %v250 = vpack.c.b16 %v234, %v226
    %v251 = vpack.c.b16 %v235, %v227
    %v396 = vunpack.c.l.b16 %v60
    %v397 = vunpack.c.l.b16 %v61
    %v398 = vunpack.c.l.b16 %v62
    %v399 = vunpack.c.l.b16 %v63
    %v400 = vunpack.c.l.b16 %v64
    %v401 = vunpack.c.l.b16 %v65
    %v402 = vunpack.c.l.b16 %v66
    %v403 = vunpack.c.l.b16 %v67
    %v404 = vunpack.c.l.b16 %v68
    %v405 = vunpack.c.l.b16 %v69
    %v406 = vunpack.c.l.b16 %v70
    %v407 = vunpack.c.l.b16 %v71
    %v408 = vunpack.c.l.b16 %v72
    %v409 = vunpack.c.l.b16 %v73
    %v410 = vunpack.c.l.b16 %v74
    %v411 = vunpack.c.l.b16 %v75
    %v412 = vunpack.c.l.b16 %v76
    %v413 = vunpack.c.l.b16 %v77
    %v414 = vunpack.c.l.b16 %v78
    %v415 = vunpack.c.l.b16 %v79
    %v416 = vunpack.c.l.b16 %v80
    %v417 = vunpack.c.l.b16 %v81
    %v418 = vunpack.c.l.b16 %v82
    %v419 = vunpack.c.l.b16 %v83
    %v420 = vunpack.c.l.b16 %v84
    %v421 = vunpack.c.l.b16 %v85
    %v422 = vunpack.c.l.b16 %v86
    %v423 = vunpack.c.l.b16 %v87
    %v424 = vunpack.c.l.b16 %v88
    %v425 = vunpack.c.l.b16 %v89
    %v426 = vunpack.c.l.b16 %v90
    %v427 = vunpack.c.l.b16 %v91
    %v428 = vunpack.c.l.b16 %v92
    %v429 = vunpack.c.l.b16 %v93
    %v430 = vunpack.c.l.b16 %v94
    %v431 = vunpack.c.l.b16 %v95
    %v432 = vunpack.c.l.b16 %v96
    %v433 = vunpack.c.l.b16 %v97
    %v434 = vunpack.c.l.b16 %v98
    %v435 = vunpack.c.l.b16 %v99
    %v436 = vunpack.c.l.b16 %v100
    %v437 = vunpack.c.l.b16 %v101
    %v438 = vunpack.c.l.b16 %v102
    %v439 = vunpack.c.l.b16 %v103
    %v440 = vunpack.c.l.b16 %v104
    %v441 = vunpack.c.l.b16 %v105
    %v442 = vunpack.c.l.b16 %v106
    %v443 = vunpack.c.l.b16 %v107
    %v444 = vunpack.c.l.b16 %v108
    %v445 = vunpack.c.l.b16 %v109
    %v446 = vunpack.c.l.b16 %v110
    %v447 = vunpack.c.l.b16 %v111
    %v448 = vunpack.c.l.b16 %v112
    %v449 = vunpack.c.l.b16 %v113
    %v450 = vunpack.c.l.b16 %v114
    %v451 = vunpack.c.l.b16 %v115
    %v452 = vunpack.c.l.b16 %v116
    %v453 = vunpack.c.l.b16 %v117
    %v454 = vunpack.c.l.b16 %v118
    %v455 = vunpack.c.l.b16 %v119
    %v456 = vunpack.c.l.b16 %v120
    %v457 = vunpack.c.l.b16 %v121
    %v458 = vunpack.c.l.b16 %v122
    %v459 = vunpack.c.l.b16 %v123
    %v460 = vunpack.c.l.b16 %v124
    %v461 = vunpack.c.l.b16 %v125
    %v462 = vunpack.c.l.b16 %v126
    %v463 = vunpack.c.l.b16 %v127
    %v464 = vunpack.c.l.b16 %v128
    %v465 = vunpack.c.l.b16 %v129
    %v466 = vunpack.c.l.b16 %v130
    %v467 = vunpack.c.l.b16 %v131
    %v468 = vunpack.c.l.b16 %v132
    %v469 = vunpack.c.l.b16 %v133
    %v470 = vunpack.c.l.b16 %v134
    %v471 = vunpack.c.l.b16 %v135
    %v472 = vunpack.c.l.b16 %v136
    %v473 = vunpack.c.l.b16 %v137
    %v474 = vunpack.c.l.b16 %v138
    %v475 = vunpack.c.l.b16 %v139
    %v476 = vunpack.c.l.b16 %v140
    %v477 = vunpack.c.l.b16 %v141
    %v478 = vunpack.c.l.b16 %v142
    %v479 = vunpack.c.l.b16 %v143
    %v480 = vunpack.c.l.b16 %v144
    %v481 = vunpack.c.l.b16 %v145
    %v482 = vunpack.c.l.b16 %v146
    %v483 = vunpack.c.l.b16 %v147
    %v484 = vunpack.c.l.b16 %v148
    %v485 = vunpack.c.l.b16 %v149
    %v486 = vunpack.c.l.b16 %v150
    %v487 = vunpack.c.l.b16 %v151
    %v488 = vunpack.c.l.b16 %v152
    %v489 = vunpack.c.l.b16 %v153
    %v490 = vunpack.c.l.b16 %v154
    %v491 = vunpack.c.l.b16 %v155
    %v492 = vunpack.c.l.b16 %v156
    %v493 = vunpack.c.l.b16 %v157
    %v494 = vunpack.c.l.b16 %v158
    %v495 = vunpack.c.l.b16 %v159
    %v496 = vunpack.c.l.b16 %v160
    %v497 = vunpack.c.l.b16 %v161
    %v498 = vunpack.c.l.b16 %v162
    %v499 = vunpack.c.l.b16 %v163
    %v500 = vunpack.c.l.b16 %v164
    %v501 = vunpack.c.l.b16 %v165
    %v502 = vunpack.c.l.b16 %v166
    %v503 = vunpack.c.l.b16 %v167
    %v504 = vunpack.c.l.b16 %v168
    %v505 = vunpack.c.l.b16 %v169
    %v506 = vunpack.c.l.b16 %v170
    %v507 = vunpack.c.l.b16 %v171
    %v508 = vunpack.c.l.b16 %v172
    %v509 = vunpack.c.l.b16 %v173
    %v510 = vunpack.c.l.b16 %v174
    %v511 = vunpack.c.l.b16 %v175
    %v512 = vunpack.c.l.b16 %v176
    %v513 = vunpack.c.l.b16 %v177
    %v514 = vunpack.c.l.b16 %v178
    %v515 = vunpack.c.l.b16 %v179
    %v516 = vunpack.c.l.b16 %v180
    %v517 = vunpack.c.l.b16 %v181
    %v518 = vunpack.c.l.b16 %v182
    %v519 = vunpack.c.l.b16 %v183
    %v520 = vunpack.c.l.b16 %v184
    %v521 = vunpack.c.l.b16 %v185
    %v522 = vunpack.c.l.b16 %v186
    %v523 = vunpack.c.l.b16 %v187
    %v524 = vpack.c.b16 %v397, %v396
    %v525 = vpack.c.b16 %v399, %v398
    %v526 = vpack.c.b16 %v401, %v400
    %v527 = vpack.c.b16 %v403, %v402
    %v528 = vpack.c.b16 %v405, %v404
    %v529 = vpack.c.b16 %v407, %v406
    %v530 = vpack.c.b16 %v409, %v408
    %v531 = vpack.c.b16 %v411, %v410
    %v532 = vpack.c.b16 %v413, %v412
    %v533 = vpack.c.b16 %v415, %v414
    %v534 = vpack.c.b16 %v417, %v416
    %v535 = vpack.c.b16 %v419, %v418
    %v536 = vpack.c.b16 %v421, %v420
    %v537 = vpack.c.b16 %v423, %v422
    %v538 = vpack.c.b16 %v425, %v424
    %v539 = vpack.c.b16 %v427, %v426
    %v540 = vpack.c.b16 %v429, %v428
    %v541 = vpack.c.b16 %v431, %v430
    %v542 = vpack.c.b16 %v433, %v432
    %v543 = vpack.c.b16 %v435, %v434
    %v544 = vpack.c.b16 %v437, %v436
    %v545 = vpack.c.b16 %v439, %v438
    %v546 = vpack.c.b16 %v441, %v440
    %v547 = vpack.c.b16 %v443, %v442
    %v548 = vpack.c.b16 %v445, %v444
    %v549 = vpack.c.b16 %v447, %v446
    %v550 = vpack.c.b16 %v449, %v448
    %v551 = vpack.c.b16 %v451, %v450
    %v552 = vpack.c.b16 %v453, %v452
    %v553 = vpack.c.b16 %v455, %v454
    %v554 = vpack.c.b16 %v457, %v456
    %v555 = vpack.c.b16 %v459, %v458
    %v556 = vpack.c.b16 %v461, %v460
    %v557 = vpack.c.b16 %v463, %v462
    %v558 = vpack.c.b16 %v465, %v464
    %v559 = vpack.c.b16 %v467, %v466
    %v560 = vpack.c.b16 %v469, %v468
    %v561 = vpack.c.b16 %v471, %v470
    %v562 = vpack.c.b16 %v473, %v472
    %v563 = vpack.c.b16 %v475, %v474
    %v564 = vpack.c.b16 %v477, %v476
    %v565 = vpack.c.b16 %v479, %v478
    %v566 = vpack.c.b16 %v481, %v480
    %v567 = vpack.c.b16 %v483, %v482
    %v568 = vpack.c.b16 %v485, %v484
    %v569 = vpack.c.b16 %v487, %v486
    %v570 = vpack.c.b16 %v489, %v488
    %v571 = vpack.c.b16 %v491, %v490
    %v572 = vpack.c.b16 %v493, %v492
    %v573 = vpack.c.b16 %v495, %v494
    %v574 = vpack.c.b16 %v497, %v496
    %v575 = vpack.c.b16 %v499, %v498
    %v576 = vpack.c.b16 %v501, %v500
    %v577 = vpack.c.b16 %v503, %v502
    %v578 = vpack.c.b16 %v505, %v504
    %v579 = vpack.c.b16 %v507, %v506
    %v580 = vpack.c.b16 %v509, %v508
    %v581 = vpack.c.b16 %v511, %v510
    %v582 = vpack.c.b16 %v513, %v512
    %v583 = vpack.c.b16 %v515, %v514
    %v584 = vpack.c.b16 %v517, %v516
    %v585 = vpack.c.b16 %v519, %v518
    %v586 = vpack.c.b16 %v521, %v520
    %v587 = vpack.c.b16 %v523, %v522
    %652 = vmatprep.subr.bf16.mxu0 0
    %653 = vmatpush1.bf16.msra.mxu0 %v524
    %654 = vmatprep.subr.bf16.mxu0 0
    %655 = vmatpush1.bf16.msra.mxu0 %v525
    %656 = vmatprep.subr.bf16.mxu0 0
    %657 = vmatpush1.bf16.msra.mxu0 %v526
    %658 = vmatprep.subr.bf16.mxu0 0
    %659 = vmatpush1.bf16.msra.mxu0 %v527
    %660 = vmatprep.subr.bf16.mxu0 0
    %661 = vmatpush1.bf16.msra.mxu0 %v528
    %662 = vmatprep.subr.bf16.mxu0 0
    %663 = vmatpush1.bf16.msra.mxu0 %v529
    %664 = vmatprep.subr.bf16.mxu0 0
    %665 = vmatpush1.bf16.msra.mxu0 %v530
    %666 = vmatprep.subr.bf16.mxu0 0
    %667 = vmatpush1.bf16.msra.mxu0 %v531
    %668 = vmatprep.subr.bf16.mxu0 0
    %669 = vmatpush1.bf16.msra.mxu0 %v532
    %670 = vmatprep.subr.bf16.mxu0 0
    %671 = vmatpush1.bf16.msra.mxu0 %v533
    %672 = vmatprep.subr.bf16.mxu0 0
    %673 = vmatpush1.bf16.msra.mxu0 %v534
    %674 = vmatprep.subr.bf16.mxu0 0
    %675 = vmatpush1.bf16.msra.mxu0 %v535
    %676 = vmatprep.subr.bf16.mxu0 0
    %677 = vmatpush1.bf16.msra.mxu0 %v536
    %678 = vmatprep.subr.bf16.mxu0 0
    %679 = vmatpush1.bf16.msra.mxu0 %v537
    %680 = vmatprep.subr.bf16.mxu0 0
    %681 = vmatpush1.bf16.msra.mxu0 %v538
    %682 = vmatprep.subr.bf16.mxu0 0
    %683 = vmatpush1.bf16.msra.mxu0 %v539
    %684 = vmatprep.mubr.bf16.mxu0 %v237
    %685 = vmatmul.mubr.bf16.gmra.mrb[0].mxu0 %v236
    %v686 = vpop.f32.mrb[0].mxu0
    %v687 = vadd.f32 0.0, %v686
    %v688 = vpop.f32.mrb[0].mxu0
    %v689 = vpop.f32.mrb[0].mxu0
    %v690 = vadd.f32 0.0, %v689
    %v691 = vpop.f32.mrb[0].mxu0
    %692 = vmatprep.mubr.bf16.mxu0 %v245
    %693 = vmatmul.mubr.bf16.gmra.mrb[0].mxu0 %v244
    %v694 = vpop.f32.mrb[0].mxu0
    %v695 = vadd.f32 0.0, %v694
    %v696 = vpop.f32.mrb[0].mxu0
    %v697 = vpop.f32.mrb[0].mxu0
    %v698 = vadd.f32 0.0, %v697
    %v699 = vpop.f32.mrb[0].mxu0
    %700 = vdwg.mxu0
    %701 = vmatprep.subr.bf16.mxu0 0
    %702 = vmatpush1.bf16.msra.mxu0 %v540
    %703 = vmatprep.subr.bf16.mxu0 0
    %704 = vmatpush1.bf16.msra.mxu0 %v541
    %705 = vmatprep.subr.bf16.mxu0 0
    %706 = vmatpush1.bf16.msra.mxu0 %v542
    %707 = vmatprep.subr.bf16.mxu0 0
    %708 = vmatpush1.bf16.msra.mxu0 %v543
    %709 = vmatprep.subr.bf16.mxu0 0
    %710 = vmatpush1.bf16.msra.mxu0 %v544
    %711 = vmatprep.subr.bf16.mxu0 0
    %712 = vmatpush1.bf16.msra.mxu0 %v545
    %713 = vmatprep.subr.bf16.mxu0 0
    %714 = vmatpush1.bf16.msra.mxu0 %v546
    %715 = vmatprep.subr.bf16.mxu0 0
    %716 = vmatpush1.bf16.msra.mxu0 %v547
    %717 = vmatprep.subr.bf16.mxu0 0
    %718 = vmatpush1.bf16.msra.mxu0 %v548
    %719 = vmatprep.subr.bf16.mxu0 0
    %720 = vmatpush1.bf16.msra.mxu0 %v549
    %721 = vmatprep.subr.bf16.mxu0 0
    %722 = vmatpush1.bf16.msra.mxu0 %v550
    %723 = vmatprep.subr.bf16.mxu0 0
    %724 = vmatpush1.bf16.msra.mxu0 %v551
    %725 = vmatprep.subr.bf16.mxu0 0
    %726 = vmatpush1.bf16.msra.mxu0 %v552
    %727 = vmatprep.subr.bf16.mxu0 0
    %728 = vmatpush1.bf16.msra.mxu0 %v553
    %729 = vmatprep.subr.bf16.mxu0 0
    %730 = vmatpush1.bf16.msra.mxu0 %v554
    %731 = vmatprep.subr.bf16.mxu0 0
    %732 = vmatpush1.bf16.msra.mxu0 %v555
    %733 = vmatprep.mubr.bf16.mxu0 %v239
    %734 = vmatmul.mubr.bf16.gmra.mrb[0].mxu0 %v238
    %v735 = vpop.f32.mrb[0].mxu0
    %v736 = vadd.f32 %v687, %v735
    %v737 = vpop.f32.mrb[0].mxu0
    %v738 = vpop.f32.mrb[0].mxu0
    %v739 = vadd.f32 %v690, %v738
    %v740 = vpop.f32.mrb[0].mxu0
    %741 = vmatprep.mubr.bf16.mxu0 %v247
    %742 = vmatmul.mubr.bf16.gmra.mrb[0].mxu0 %v246
    %v743 = vpop.f32.mrb[0].mxu0
    %v744 = vadd.f32 %v695, %v743
    %v745 = vpop.f32.mrb[0].mxu0
    %v746 = vpop.f32.mrb[0].mxu0
    %v747 = vadd.f32 %v698, %v746
    %v748 = vpop.f32.mrb[0].mxu0
    %749 = vdwg.mxu0
    %750 = vmatprep.subr.bf16.mxu0 0
    %751 = vmatpush1.bf16.msra.mxu0 %v556
    %752 = vmatprep.subr.bf16.mxu0 0
    %753 = vmatpush1.bf16.msra.mxu0 %v557
    %754 = vmatprep.subr.bf16.mxu0 0
    %755 = vmatpush1.bf16.msra.mxu0 %v558
    %756 = vmatprep.subr.bf16.mxu0 0
    %757 = vmatpush1.bf16.msra.mxu0 %v559
    %758 = vmatprep.subr.bf16.mxu0 0
    %759 = vmatpush1.bf16.msra.mxu0 %v560
    %760 = vmatprep.subr.bf16.mxu0 0
    %761 = vmatpush1.bf16.msra.mxu0 %v561
    %762 = vmatprep.subr.bf16.mxu0 0
    %763 = vmatpush1.bf16.msra.mxu0 %v562
    %764 = vmatprep.subr.bf16.mxu0 0
    %765 = vmatpush1.bf16.msra.mxu0 %v563
    %766 = vmatprep.subr.bf16.mxu0 0
    %767 = vmatpush1.bf16.msra.mxu0 %v564
    %768 = vmatprep.subr.bf16.mxu0 0
    %769 = vmatpush1.bf16.msra.mxu0 %v565
    %770 = vmatprep.subr.bf16.mxu0 0
    %771 = vmatpush1.bf16.msra.mxu0 %v566
    %772 = vmatprep.subr.bf16.mxu0 0
    %773 = vmatpush1.bf16.msra.mxu0 %v567
    %774 = vmatprep.subr.bf16.mxu0 0
    %775 = vmatpush1.bf16.msra.mxu0 %v568
    %776 = vmatprep.subr.bf16.mxu0 0
    %777 = vmatpush1.bf16.msra.mxu0 %v569
    %778 = vmatprep.subr.bf16.mxu0 0
    %779 = vmatpush1.bf16.msra.mxu0 %v570
    %780 = vmatprep.subr.bf16.mxu0 0
    %781 = vmatpush1.bf16.msra.mxu0 %v571
    %782 = vmatprep.mubr.bf16.mxu0 %v241
    %783 = vmatmul.mubr.bf16.gmra.mrb[0].mxu0 %v240
    %v784 = vpop.f32.mrb[0].mxu0
    %v785 = vadd.f32 %v736, %v784
    %v786 = vpop.f32.mrb[0].mxu0
    %v787 = vpop.f32.mrb[0].mxu0
    %v788 = vadd.f32 %v739, %v787
    %v789 = vpop.f32.mrb[0].mxu0
    %790 = vmatprep.mubr.bf16.mxu0 %v249
    %791 = vmatmul.mubr.bf16.gmra.mrb[0].mxu0 %v248
    %v792 = vpop.f32.mrb[0].mxu0
    %v793 = vadd.f32 %v744, %v792
    %v794 = vpop.f32.mrb[0].mxu0
    %v795 = vpop.f32.mrb[0].mxu0
    %v796 = vadd.f32 %v747, %v795
    %v797 = vpop.f32.mrb[0].mxu0
    %798 = vdwg.mxu0
    %799 = vmatprep.subr.bf16.mxu0 0
    %800 = vmatpush1.bf16.msra.mxu0 %v572
    %801 = vmatprep.subr.bf16.mxu0 0
    %802 = vmatpush1.bf16.msra.mxu0 %v573
    %803 = vmatprep.subr.bf16.mxu0 0
    %804 = vmatpush1.bf16.msra.mxu0 %v574
    %805 = vmatprep.subr.bf16.mxu0 0
    %806 = vmatpush1.bf16.msra.mxu0 %v575
    %807 = vmatprep.subr.bf16.mxu0 0
    %808 = vmatpush1.bf16.msra.mxu0 %v576
    %809 = vmatprep.subr.bf16.mxu0 0
    %810 = vmatpush1.bf16.msra.mxu0 %v577
    %811 = vmatprep.subr.bf16.mxu0 0
    %812 = vmatpush1.bf16.msra.mxu0 %v578
    %813 = vmatprep.subr.bf16.mxu0 0
    %814 = vmatpush1.bf16.msra.mxu0 %v579
    %815 = vmatprep.subr.bf16.mxu0 0
    %816 = vmatpush1.bf16.msra.mxu0 %v580
    %817 = vmatprep.subr.bf16.mxu0 0
    %818 = vmatpush1.bf16.msra.mxu0 %v581
    %819 = vmatprep.subr.bf16.mxu0 0
    %820 = vmatpush1.bf16.msra.mxu0 %v582
    %821 = vmatprep.subr.bf16.mxu0 0
    %822 = vmatpush1.bf16.msra.mxu0 %v583
    %823 = vmatprep.subr.bf16.mxu0 0
    %824 = vmatpush1.bf16.msra.mxu0 %v584
    %825 = vmatprep.subr.bf16.mxu0 0
    %826 = vmatpush1.bf16.msra.mxu0 %v585
    %827 = vmatprep.subr.bf16.mxu0 0
    %828 = vmatpush1.bf16.msra.mxu0 %v586
    %829 = vmatprep.subr.bf16.mxu0 0
    %830 = vmatpush1.bf16.msra.mxu0 %v587
    %831 = vmatprep.mubr.bf16.mxu0 %v243
    %832 = vmatmul.mubr.bf16.gmra.mrb[0].mxu0 %v242
    %v833 = vpop.f32.mrb[0].mxu0
    %v834 = vadd.f32 %v785, %v833
    %v835 = vpop.f32.mrb[0].mxu0
    %v836 = vpop.f32.mrb[0].mxu0
    %v837 = vadd.f32 %v788, %v836
    %v838 = vpop.f32.mrb[0].mxu0
    %839 = vmatprep.mubr.bf16.mxu0 %v251
    %840 = vmatmul.mubr.bf16.gmra.mrb[0].mxu0 %v250
    %v841 = vpop.f32.mrb[0].mxu0
    %v842 = vadd.f32 %v793, %v841
    %v843 = vpop.f32.mrb[0].mxu0
    %v844 = vpop.f32.mrb[0].mxu0
    %v845 = vadd.f32 %v796, %v844
    %v846 = vpop.f32.mrb[0].mxu0
    %847 = vdwg.mxu0
    %vm848 = vcmask 261120
    %v849 = vsel %vm848, %v834, 0.0
    %v850 = vsel %vm848, %v837, 0.0
    %v851 = vadd.f32 %v849, %v850
    %v852 = vsel %vm848, %v842, 0.0
    %v853 = vadd.f32 %v851, %v852
    %v854 = vsel %vm848, %v845, 0.0
    %v855 = vadd.f32 %v853, %v854
    %v856 = vrot.slane %v855, 4
    %v857 = vadd.f32 %v855, %v856
    %v858 = vrot.slane %v857, 2
    %v859 = vadd.f32 %v857, %v858
    %v860 = vrot.slane %v859, 1
    %v861 = vadd.f32 %v859, %v860
    %v862 = vrcp.pop 32.0
    %v863 = vmul.f32 %v861, %v862
    %v864 = vsub.f32 %v834, %v863
    %v865 = vsub.f32 %v837, %v863
    %v866 = vsub.f32 %v842, %v863
    %v867 = vsub.f32 %v845, %v863
    %v868 = vmul.f32 %v864, %v864
    %v869 = vmul.f32 %v865, %v865
    %v870 = vmul.f32 %v866, %v866
    %v871 = vmul.f32 %v867, %v867
    %v872 = vsel %vm848, %v868, 0.0
    %v873 = vsel %vm848, %v869, 0.0
    %v874 = vadd.f32 %v872, %v873
    %v875 = vsel %vm848, %v870, 0.0
    %v876 = vadd.f32 %v874, %v875
    %v877 = vsel %vm848, %v871, 0.0
    %v878 = vadd.f32 %v876, %v877
    %v879 = vrot.slane %v878, 4
    %v880 = vadd.f32 %v878, %v879
    %v881 = vrot.slane %v880, 2
    %v882 = vadd.f32 %v880, %v881
    %v883 = vrot.slane %v882, 1
    %v884 = vadd.f32 %v882, %v883
    %v885 = vmul.f32 %v884, %v862
    %v886 = vadd.f32 %v885, 1e-05
    %v887 = vrsqrt.pop %v886
    %v888 = vld [vmem:[#allocation4] sm:$0x1]
    %v889 = vmul.f32 %v887, %v888
    %v890 = vlaneseq
    %v891 = vshrl.u32 %v890, 7
    %v892 = vsub.s32 0, %v891
    %v893 = vrot.slane %v889, %v892
    %v894 = vmul.f32 %v864, %v893
    %v895 = vmul.f32 %v865, %v893
    %v896 = vmul.f32 %v866, %v893
    %v897 = vmul.f32 %v867, %v893
    %v898 = vld [vmem:[%s3] sm:$0x1]
    %v900 = vlaneseq
    %v901 = vshrl.u32 %v900, 7
    %v902 = vsub.s32 0, %v901
    %v903 = vrot.slane %v898, %v902
    %v905 = vadd.f32 %v894, %v903
    %v906 = vadd.f32 %v895, %v903
    %v907 = vadd.f32 %v896, %v903
    %v908 = vadd.f32 %v897, %v903
    %v909 = vmax.f32 %v905, 0.0
    %v910 = vmax.f32 %v906, 0.0
    %v911 = vmax.f32 %v907, 0.0
    %v912 = vmax.f32 %v908, 0.0
    %v913 = vpack.c.bf16 %v910, %v909
    %v914 = vpack.c.bf16 %v912, %v911
    %v917 = vunpack.c.l.b16 %v913
    %v918 = vunpack.c.h.b16 %v913
    %v919 = vunpack.c.l.b16 %v914
    %v920 = vunpack.c.h.b16 %v914
    %v921 = vpack.c.b16 %v917, %v917
    %v922 = vpack.c.b16 %v918, %v918
    %v923 = vpack.c.b16 %v919, %v919
    %v924 = vpack.c.b16 %v920, %v920
    %vm929 = vcmask 257024
    %930 = vst.msk [vmem:[%s4] sm:$0xf] %vm929, %v921
    %931 = vst.msk [vmem:[%s4 + $0x4] sm:$0xf] %vm929, %v922
    %932 = vst.msk [vmem:[%s4 + $0x8] sm:$0xf] %vm929, %v923
    %933 = vst.msk [vmem:[%s4 + $0xc] sm:$0xf] %vm929, %v924
    // Predicated region
    $region26: #{_lambda_.9} parent=1 // pred_check
      _
    $region27: #{_lambda_.9} parent=1 // pred_check_branch
      %935 = sbr.rel (0) target = $region29
    $region28: #{_lambda_.9} parent=1 // pred_region
      _
    $region29: #{_lambda_.9} parent=1 // pred_fallthru
      _
    // Predicated region
    $region30: #{_lambda_.9} parent=1 // pred_check
      _
    $region31: #{_lambda_.9} parent=1 // pred_check_branch
      %937 = sbr.rel (0) target = $region33
    $region32: #{_lambda_.9} parent=1 // pred_region
      _
    $region33: #{_lambda_.9} parent=1 // pred_fallthru
      _
    %938 = vsyncpa [#allocation3], 1
    %939 = vsyncpa [#allocation5], 1

// kernel: _lambda_.10
$region0: #{_lambda_.10}
  #allocation0 [shape = 'u32[]', space=smem, size = 0x4, offset = 0x4, fixed_abs, tag = 'smem constant byte address 0x4 - core index']
  #allocation1 [shape = 'u32[144,128]{1,0:T(1,128)}', space=vmem, size = 0x12000, scoped, tag = 'internal scratch']
  %s0 = inlined_call_operand.vmem [shape: bf16[50,128], index: 0, kind: input, shape index: {}]
  %s1 = inlined_call_operand.hbm [shape: bf16[128,64], index: 1, kind: input, shape index: {}]
  %s2 = inlined_call_operand.vmem [shape: f32[50,64], index: 2, kind: output, shape index: {}]
  %s3 = sld [smem:[#allocation0]]
  $region22: #{_lambda_.10} parent=0
    _
  %s5 = ssub.s32 1, %s3
  %s6 = scalar_select 0, %s5, %s3
  $region1: #{_lambda_.10} parent=0
    #allocation2 [shape = 'u8[32768]{0}', space=vmem, size = 0x8000, scoped, tag = 'input window, operand 1, single buffered']
    #allocation3 [shape = 's32[1]{0}', space=sflag, size = 0x4, scoped, tag = 'scoped memory for _lambda_.10']
    %7 = vsyncpa [#allocation3], 0
    // Predicated region
    $region2: #{_lambda_.10} parent=1 // pred_check
      _
    $region3: #{_lambda_.10} parent=1 // pred_check_branch
      %9 = sbr.rel (0) target = $region5
    $region4: #{_lambda_.10} parent=1 // pred_region
      _
    $region5: #{_lambda_.10} parent=1 // pred_fallthru
      _
    // Predicated region
    $region6: #{_lambda_.10} parent=1 // pred_check
      _
    $region7: #{_lambda_.10} parent=1 // pred_check_branch
      %11 = sbr.rel (0) target = $region9
    $region8: #{_lambda_.10} parent=1 // pred_region
      %s13 = ssub.s32 1024, 1024
      %14 = vsyncadd [#allocation3], %s13
      %s15 = sshll.u32 [#allocation2], 4
      %s16 = int_to_ptr.vmem [resolvable:$true] %s15
      %21 = dma.hbm_to_vmem [thread:$0]  %s1, 1024, %s16, [#allocation3], 64, 64, 4
    $region9: #{_lambda_.10} parent=1 // pred_fallthru
      _
    // Predicated region
    $region10: #{_lambda_.10} parent=1 // pred_check
      _
    $region11: #{_lambda_.10} parent=1 // pred_check_branch
      %23 = sbr.rel (0) target = $region13
    $region12: #{_lambda_.10} parent=1 // pred_region
      %24 = dma.done [#allocation3], 1024
    $region13: #{_lambda_.10} parent=1 // pred_fallthru
      _
    %v26 = vld [vmem:[%s0] sm:$0xf]
    %v27 = vld [vmem:[%s0 + $0x4] sm:$0xf]
    %v28 = vld [vmem:[%s0 + $0x8] sm:$0xf]
    %v29 = vld [vmem:[%s0 + $0xc] sm:$0xf]
    %v30 = vld [vmem:[%s0 + $0x10] sm:$0xf]
    %v31 = vld [vmem:[%s0 + $0x14] sm:$0xf]
    %v32 = vld [vmem:[%s0 + $0x18] sm:$0x1]
    %v33 = vld [vmem:[#allocation2] sm:$0xf]
    %v34 = vld [vmem:[#allocation2 + $0x4] sm:$0xf]
    %v35 = vld [vmem:[#allocation2 + $0x8] sm:$0xf]
    %v36 = vld [vmem:[#allocation2 + $0xc] sm:$0xf]
    %v37 = vld [vmem:[#allocation2 + $0x10] sm:$0xf]
    %v38 = vld [vmem:[#allocation2 + $0x14] sm:$0xf]
    %v39 = vld [vmem:[#allocation2 + $0x18] sm:$0xf]
    %v40 = vld [vmem:[#allocation2 + $0x1c] sm:$0xf]
    %v41 = vld [vmem:[#allocation2 + $0x20] sm:$0xf]
    %v42 = vld [vmem:[#allocation2 + $0x24] sm:$0xf]
    %v43 = vld [vmem:[#allocation2 + $0x28] sm:$0xf]
    %v44 = vld [vmem:[#allocation2 + $0x2c] sm:$0xf]
    %v45 = vld [vmem:[#allocation2 + $0x30] sm:$0xf]
    %v46 = vld [vmem:[#allocation2 + $0x34] sm:$0xf]
    %v47 = vld [vmem:[#allocation2 + $0x38] sm:$0xf]
    %v48 = vld [vmem:[#allocation2 + $0x3c] sm:$0xf]
    %v56 = vunpack.c.l.b16 %v26
    %v57 = vunpack.c.l.b16 %v27
    %v58 = vunpack.c.l.b16 %v28
    %v59 = vunpack.c.l.b16 %v29
    %v60 = vunpack.c.l.b16 %v30
    %v61 = vunpack.c.l.b16 %v31
    %v62 = vunpack.c.l.b16 %v32
    %v63 = vpack.c.b16 %v57, %v56
    %v64 = vpack.c.b16 %v59, %v58
    %v65 = vpack.c.b16 %v61, %v60
    %v66 = vpack.c.b16 %v62, %v62
    %v87 = vunpack.c.l.b16 %v33
    %v88 = vunpack.c.l.b16 %v34
    %v89 = vunpack.c.l.b16 %v35
    %v90 = vunpack.c.l.b16 %v36
    %v91 = vunpack.c.l.b16 %v37
    %v92 = vunpack.c.l.b16 %v38
    %v93 = vunpack.c.l.b16 %v39
    %v94 = vunpack.c.l.b16 %v40
    %v95 = vunpack.c.l.b16 %v41
    %v96 = vunpack.c.l.b16 %v42
    %v97 = vunpack.c.l.b16 %v43
    %v98 = vunpack.c.l.b16 %v44
    %v99 = vunpack.c.l.b16 %v45
    %v100 = vunpack.c.l.b16 %v46
    %v101 = vunpack.c.l.b16 %v47
    %v102 = vunpack.c.l.b16 %v48
    %v103 = vpack.c.b16 %v88, %v87
    %v104 = vpack.c.b16 %v90, %v89
    %v105 = vpack.c.b16 %v92, %v91
    %v106 = vpack.c.b16 %v94, %v93
    %v107 = vpack.c.b16 %v96, %v95
    %v108 = vpack.c.b16 %v98, %v97
    %v109 = vpack.c.b16 %v100, %v99
    %v110 = vpack.c.b16 %v102, %v101
    %119 = vmatprep.subr.bf16.mxu0 0
    %120 = vmatpush1.bf16.msra.mxu0 %v103
    %121 = vmatprep.subr.bf16.mxu0 0
    %122 = vmatpush1.bf16.msra.mxu0 %v104
    %123 = vmatprep.subr.bf16.mxu0 0
    %124 = vmatpush1.bf16.msra.mxu0 %v105
    %125 = vmatprep.subr.bf16.mxu0 0
    %126 = vmatpush1.bf16.msra.mxu0 %v106
    %127 = vmatprep.subr.bf16.mxu0 0
    %128 = vmatpush1.bf16.msra.mxu0 %v107
    %129 = vmatprep.subr.bf16.mxu0 0
    %130 = vmatpush1.bf16.msra.mxu0 %v108
    %131 = vmatprep.subr.bf16.mxu0 0
    %132 = vmatpush1.bf16.msra.mxu0 %v109
    %133 = vmatprep.subr.bf16.mxu0 0
    %134 = vmatpush1.bf16.msra.mxu0 %v110
    %135 = vmatprep.subr.bf16.mxu0 0
    %136 = vmatpush1.bf16.msra.mxu0 0
    %137 = vmatprep.subr.bf16.mxu0 0
    %138 = vmatpush1.bf16.msra.mxu0 0
    %139 = vmatprep.subr.bf16.mxu0 0
    %140 = vmatpush1.bf16.msra.mxu0 0
    %141 = vmatprep.subr.bf16.mxu0 0
    %142 = vmatpush1.bf16.msra.mxu0 0
    %143 = vmatprep.subr.bf16.mxu0 0
    %144 = vmatpush1.bf16.msra.mxu0 0
    %145 = vmatprep.subr.bf16.mxu0 0
    %146 = vmatpush1.bf16.msra.mxu0 0
    %147 = vmatprep.subr.bf16.mxu0 0
    %148 = vmatpush1.bf16.msra.mxu0 0
    %149 = vmatprep.subr.bf16.mxu0 0
    %150 = vmatpush1.bf16.msra.mxu0 0
    %151 = vmatprep.mubr.bf16.mxu0 0
    %152 = vmatmul.mubr.bf16.gmra.mrb[0].mxu0 %v63
    %v153 = vpop.f32.mrb[0].mxu0
    %v154 = vadd.f32 0.0, %v153
    %v155 = vpop.f32.mrb[0].mxu0
    %v156 = vpop.f32.mrb[0].mxu0
    %v157 = vadd.f32 0.0, %v156
    %v158 = vpop.f32.mrb[0].mxu0
    %159 = vmatprep.mubr.bf16.mxu0 0
    %160 = vmatmul.mubr.bf16.gmra.mrb[0].mxu0 %v64
    %v161 = vpop.f32.mrb[0].mxu0
    %v162 = vadd.f32 0.0, %v161
    %v163 = vpop.f32.mrb[0].mxu0
    %v164 = vpop.f32.mrb[0].mxu0
    %v165 = vadd.f32 0.0, %v164
    %v166 = vpop.f32.mrb[0].mxu0
    %167 = vmatprep.mubr.bf16.mxu0 0
    %168 = vmatmul.mubr.bf16.gmra.mrb[0].mxu0 %v65
    %v169 = vpop.f32.mrb[0].mxu0
    %v170 = vadd.f32 0.0, %v169
    %v171 = vpop.f32.mrb[0].mxu0
    %v172 = vpop.f32.mrb[0].mxu0
    %v173 = vadd.f32 0.0, %v172
    %v174 = vpop.f32.mrb[0].mxu0
    %175 = vmatprep.mubr.bf16.mxu0 0
    %176 = vmatmul.mubr.bf16.gmra.mrb[0].mxu0 %v66
    %v177 = vpop.f32.mrb[0].mxu0
    %v178 = vadd.f32 0.0, %v177
    %v179 = vpop.f32.mrb[0].mxu0
    %v180 = vpop.f32.mrb[0].mxu0
    %v181 = vpop.f32.mrb[0].mxu0
    %182 = vdwg.mxu0
    %vm183 = vcmask 523264
    %184 = vst.msk [vmem:[%s2] sm:$0xff] %vm183, %v154
    %185 = vst.msk [vmem:[%s2 + $0x8] sm:$0xff] %vm183, %v157
    %186 = vst.msk [vmem:[%s2 + $0x10] sm:$0xff] %vm183, %v162
    %187 = vst.msk [vmem:[%s2 + $0x18] sm:$0xff] %vm183, %v165
    %188 = vst.msk [vmem:[%s2 + $0x20] sm:$0xff] %vm183, %v170
    %189 = vst.msk [vmem:[%s2 + $0x28] sm:$0xff] %vm183, %v173
    %vm190 = vcmask 517120
    %191 = vst.msk [vmem:[%s2 + $0x30] sm:$0x3] %vm190, %v178
    // Predicated region
    $region14: #{_lambda_.10} parent=1 // pred_check
      _
    $region15: #{_lambda_.10} parent=1 // pred_check_branch
      %193 = sbr.rel (0) target = $region17
    $region16: #{_lambda_.10} parent=1 // pred_region
      _
    $region17: #{_lambda_.10} parent=1 // pred_fallthru
      _
    // Predicated region
    $region18: #{_lambda_.10} parent=1 // pred_check
      _
    $region19: #{_lambda_.10} parent=1 // pred_check_branch
      %195 = sbr.rel (0) target = $region21
    $region20: #{_lambda_.10} parent=1 // pred_region
      _
    $region21: #{_lambda_.10} parent=1 // pred_fallthru
      _
    %196 = vsyncpa [#allocation3], 1

// kernel: _lambda_.11
$region0: #{_lambda_.11}
  #allocation0 [shape = 'u32[]', space=smem, size = 0x4, offset = 0x4, fixed_abs, tag = 'smem constant byte address 0x4 - core index']
  #allocation1 [shape = 'u32[144,128]{1,0:T(1,128)}', space=vmem, size = 0x12000, scoped, tag = 'internal scratch']
  %s0 = inlined_call_operand.vmem [shape: f32[128,16], index: 0, kind: input, shape index: {}]
  %s1 = inlined_call_operand.hbm [shape: f32[1,16], index: 1, kind: input, shape index: {}]
  %s2 = inlined_call_operand.vmem [shape: f32[1,16], index: 2, kind: input, shape index: {}]
  %s3 = inlined_call_operand.vmem [shape: bf16[128,16], index: 3, kind: output, shape index: {}]
  %s4 = sld [smem:[#allocation0]]
  $region26: #{_lambda_.11} parent=0
    _
  %s6 = ssub.s32 1, %s4
  %s7 = scalar_select 0, %s6, %s4
  $region1: #{_lambda_.11} parent=0
    #allocation2 [shape = 'u8[512]{0}', space=vmem, size = 0x400, scoped, tag = 'input window, operand 1, single buffered']
    #allocation3 [shape = 's32[1]{0}', space=sflag, size = 0x4, scoped, tag = 'scoped memory for _lambda_.11']
    %8 = vsyncpa [#allocation3], 0
    // Predicated region
    $region2: #{_lambda_.11} parent=1 // pred_check
      _
    $region3: #{_lambda_.11} parent=1 // pred_check_branch
      %10 = sbr.rel (0) target = $region5
    $region4: #{_lambda_.11} parent=1 // pred_region
      _
    $region5: #{_lambda_.11} parent=1 // pred_fallthru
      _
    // Predicated region
    $region6: #{_lambda_.11} parent=1 // pred_check
      _
    $region7: #{_lambda_.11} parent=1 // pred_check_branch
      %12 = sbr.rel (0) target = $region9
    $region8: #{_lambda_.11} parent=1 // pred_region
      %s14 = ssub.s32 16, 16
      %15 = vsyncadd [#allocation3], %s14
      %s17 = sshll.u32 [#allocation2], 4
      %s18 = int_to_ptr.vmem [resolvable:$true] %s17
      %20 = dma.hbm_to_vmem [thread:$0]  %s1, 16, %s18, [#allocation3]
    $region9: #{_lambda_.11} parent=1 // pred_fallthru
      _
    // Predicated region
    $region10: #{_lambda_.11} parent=1 // pred_check
      _
    $region11: #{_lambda_.11} parent=1 // pred_check_branch
      %22 = sbr.rel (0) target = $region13
    $region12: #{_lambda_.11} parent=1 // pred_region
      _
    $region13: #{_lambda_.11} parent=1 // pred_fallthru
      _
    // Predicated region
    $region14: #{_lambda_.11} parent=1 // pred_check
      _
    $region15: #{_lambda_.11} parent=1 // pred_check_branch
      %24 = sbr.rel (0) target = $region17
    $region16: #{_lambda_.11} parent=1 // pred_region
      %25 = dma.done [#allocation3], 16
    $region17: #{_lambda_.11} parent=1 // pred_fallthru
      _
    %v26 = vld [vmem:[%s0] sm:$0xff]
    %v27 = vld [vmem:[%s0 + $0x8] sm:$0xff]
    %v28 = vld [vmem:[%s0 + $0x10] sm:$0xff]
    %v29 = vld [vmem:[%s0 + $0x18] sm:$0xff]
    %v30 = vld [vmem:[%s0 + $0x20] sm:$0xff]
    %v31 = vld [vmem:[%s0 + $0x28] sm:$0xff]
    %v32 = vld [vmem:[%s0 + $0x30] sm:$0xff]
    %v33 = vld [vmem:[%s0 + $0x38] sm:$0xff]
    %v34 = vld [vmem:[%s0 + $0x40] sm:$0xff]
    %v35 = vld [vmem:[%s0 + $0x48] sm:$0xff]
    %v36 = vld [vmem:[%s0 + $0x50] sm:$0xff]
    %v37 = vld [vmem:[%s0 + $0x58] sm:$0xff]
    %v38 = vld [vmem:[%s0 + $0x60] sm:$0xff]
    %v39 = vld [vmem:[%s0 + $0x68] sm:$0xff]
    %v40 = vld [vmem:[%s0 + $0x70] sm:$0xff]
    %v41 = vld [vmem:[%s0 + $0x78] sm:$0xff]
    %vm42 = vcmask 130048
    %v43 = vsel %vm42, %v26, 0.0
    %v44 = vsel %vm42, %v27, 0.0
    %v45 = vadd.f32 %v43, %v44
    %v46 = vsel %vm42, %v28, 0.0
    %v47 = vadd.f32 %v45, %v46
    %v48 = vsel %vm42, %v29, 0.0
    %v49 = vadd.f32 %v47, %v48
    %v50 = vsel %vm42, %v30, 0.0
    %v51 = vadd.f32 %v49, %v50
    %v52 = vsel %vm42, %v31, 0.0
    %v53 = vadd.f32 %v51, %v52
    %v54 = vsel %vm42, %v32, 0.0
    %v55 = vadd.f32 %v53, %v54
    %v56 = vsel %vm42, %v33, 0.0
    %v57 = vadd.f32 %v55, %v56
    %v58 = vsel %vm42, %v34, 0.0
    %v59 = vadd.f32 %v57, %v58
    %v60 = vsel %vm42, %v35, 0.0
    %v61 = vadd.f32 %v59, %v60
    %v62 = vsel %vm42, %v36, 0.0
    %v63 = vadd.f32 %v61, %v62
    %v64 = vsel %vm42, %v37, 0.0
    %v65 = vadd.f32 %v63, %v64
    %v66 = vsel %vm42, %v38, 0.0
    %v67 = vadd.f32 %v65, %v66
    %v68 = vsel %vm42, %v39, 0.0
    %v69 = vadd.f32 %v67, %v68
    %v70 = vsel %vm42, %v40, 0.0
    %v71 = vadd.f32 %v69, %v70
    %v72 = vsel %vm42, %v41, 0.0
    %v73 = vadd.f32 %v71, %v72
    %v74 = vrot.slane %v73, 4
    %v75 = vadd.f32 %v73, %v74
    %v76 = vrot.slane %v75, 2
    %v77 = vadd.f32 %v75, %v76
    %v78 = vrot.slane %v77, 1
    %v79 = vadd.f32 %v77, %v78
    %v80 = vrcp.pop 128.0
    %v81 = vmul.f32 %v79, %v80
    %v82 = vsub.f32 %v26, %v81
    %v83 = vsub.f32 %v27, %v81
    %v84 = vsub.f32 %v28, %v81
    %v85 = vsub.f32 %v29, %v81
    %v86 = vsub.f32 %v30, %v81
    %v87 = vsub.f32 %v31, %v81
    %v88 = vsub.f32 %v32, %v81
    %v89 = vsub.f32 %v33, %v81
    %v90 = vsub.f32 %v34, %v81
    %v91 = vsub.f32 %v35, %v81
    %v92 = vsub.f32 %v36, %v81
    %v93 = vsub.f32 %v37, %v81
    %v94 = vsub.f32 %v38, %v81
    %v95 = vsub.f32 %v39, %v81
    %v96 = vsub.f32 %v40, %v81
    %v97 = vsub.f32 %v41, %v81
    %v98 = vmul.f32 %v82, %v82
    %v99 = vmul.f32 %v83, %v83
    %v100 = vmul.f32 %v84, %v84
    %v101 = vmul.f32 %v85, %v85
    %v102 = vmul.f32 %v86, %v86
    %v103 = vmul.f32 %v87, %v87
    %v104 = vmul.f32 %v88, %v88
    %v105 = vmul.f32 %v89, %v89
    %v106 = vmul.f32 %v90, %v90
    %v107 = vmul.f32 %v91, %v91
    %v108 = vmul.f32 %v92, %v92
    %v109 = vmul.f32 %v93, %v93
    %v110 = vmul.f32 %v94, %v94
    %v111 = vmul.f32 %v95, %v95
    %v112 = vmul.f32 %v96, %v96
    %v113 = vmul.f32 %v97, %v97
    %v114 = vsel %vm42, %v98, 0.0
    %v115 = vsel %vm42, %v99, 0.0
    %v116 = vadd.f32 %v114, %v115
    %v117 = vsel %vm42, %v100, 0.0
    %v118 = vadd.f32 %v116, %v117
    %v119 = vsel %vm42, %v101, 0.0
    %v120 = vadd.f32 %v118, %v119
    %v121 = vsel %vm42, %v102, 0.0
    %v122 = vadd.f32 %v120, %v121
    %v123 = vsel %vm42, %v103, 0.0
    %v124 = vadd.f32 %v122, %v123
    %v125 = vsel %vm42, %v104, 0.0
    %v126 = vadd.f32 %v124, %v125
    %v127 = vsel %vm42, %v105, 0.0
    %v128 = vadd.f32 %v126, %v127
    %v129 = vsel %vm42, %v106, 0.0
    %v130 = vadd.f32 %v128, %v129
    %v131 = vsel %vm42, %v107, 0.0
    %v132 = vadd.f32 %v130, %v131
    %v133 = vsel %vm42, %v108, 0.0
    %v134 = vadd.f32 %v132, %v133
    %v135 = vsel %vm42, %v109, 0.0
    %v136 = vadd.f32 %v134, %v135
    %v137 = vsel %vm42, %v110, 0.0
    %v138 = vadd.f32 %v136, %v137
    %v139 = vsel %vm42, %v111, 0.0
    %v140 = vadd.f32 %v138, %v139
    %v141 = vsel %vm42, %v112, 0.0
    %v142 = vadd.f32 %v140, %v141
    %v143 = vsel %vm42, %v113, 0.0
    %v144 = vadd.f32 %v142, %v143
    %v145 = vrot.slane %v144, 4
    %v146 = vadd.f32 %v144, %v145
    %v147 = vrot.slane %v146, 2
    %v148 = vadd.f32 %v146, %v147
    %v149 = vrot.slane %v148, 1
    %v150 = vadd.f32 %v148, %v149
    %v151 = vmul.f32 %v150, %v80
    %v152 = vadd.f32 %v151, 1e-05
    %v153 = vrsqrt.pop %v152
    %v154 = vld [vmem:[#allocation2] sm:$0x1]
    %v155 = vmul.f32 %v153, %v154
    %v156 = vlaneseq
    %v157 = vshrl.u32 %v156, 7
    %v158 = vsub.s32 0, %v157
    %v159 = vrot.slane %v155, %v158
    %v160 = vmul.f32 %v82, %v159
    %v161 = vmul.f32 %v83, %v159
    %v162 = vmul.f32 %v84, %v159
    %v163 = vmul.f32 %v85, %v159
    %v164 = vmul.f32 %v86, %v159
    %v165 = vmul.f32 %v87, %v159
    %v166 = vmul.f32 %v88, %v159
    %v167 = vmul.f32 %v89, %v159
    %v168 = vmul.f32 %v90, %v159
    %v169 = vmul.f32 %v91, %v159
    %v170 = vmul.f32 %v92, %v159
    %v171 = vmul.f32 %v93, %v159
    %v172 = vmul.f32 %v94, %v159
    %v173 = vmul.f32 %v95, %v159
    %v174 = vmul.f32 %v96, %v159
    %v175 = vmul.f32 %v97, %v159
    %v176 = vld [vmem:[%s2] sm:$0x1]
    %v178 = vlaneseq
    %v179 = vshrl.u32 %v178, 7
    %v180 = vsub.s32 0, %v179
    %v181 = vrot.slane %v176, %v180
    %v183 = vadd.f32 %v160, %v181
    %v184 = vadd.f32 %v161, %v181
    %v185 = vadd.f32 %v162, %v181
    %v186 = vadd.f32 %v163, %v181
    %v187 = vadd.f32 %v164, %v181
    %v188 = vadd.f32 %v165, %v181
    %v189 = vadd.f32 %v166, %v181
    %v190 = vadd.f32 %v167, %v181
    %v191 = vadd.f32 %v168, %v181
    %v192 = vadd.f32 %v169, %v181
    %v193 = vadd.f32 %v170, %v181
    %v194 = vadd.f32 %v171, %v181
    %v195 = vadd.f32 %v172, %v181
    %v196 = vadd.f32 %v173, %v181
    %v197 = vadd.f32 %v174, %v181
    %v198 = vadd.f32 %v175, %v181
    %v199 = vmax.f32 %v183, 0.0
    %v200 = vmax.f32 %v184, 0.0
    %v201 = vmax.f32 %v185, 0.0
    %v202 = vmax.f32 %v186, 0.0
    %v203 = vmax.f32 %v187, 0.0
    %v204 = vmax.f32 %v188, 0.0
    %v205 = vmax.f32 %v189, 0.0
    %v206 = vmax.f32 %v190, 0.0
    %v207 = vmax.f32 %v191, 0.0
    %v208 = vmax.f32 %v192, 0.0
    %v209 = vmax.f32 %v193, 0.0
    %v210 = vmax.f32 %v194, 0.0
    %v211 = vmax.f32 %v195, 0.0
    %v212 = vmax.f32 %v196, 0.0
    %v213 = vmax.f32 %v197, 0.0
    %v214 = vmax.f32 %v198, 0.0
    %v215 = vpack.c.bf16 %v200, %v199
    %v216 = vpack.c.bf16 %v202, %v201
    %v217 = vpack.c.bf16 %v204, %v203
    %v218 = vpack.c.bf16 %v206, %v205
    %v219 = vpack.c.bf16 %v208, %v207
    %v220 = vpack.c.bf16 %v210, %v209
    %v221 = vpack.c.bf16 %v212, %v211
    %v222 = vpack.c.bf16 %v214, %v213
    %v231 = vunpack.c.l.b16 %v215
    %v232 = vunpack.c.h.b16 %v215
    %v233 = vunpack.c.l.b16 %v216
    %v234 = vunpack.c.h.b16 %v216
    %v235 = vunpack.c.l.b16 %v217
    %v236 = vunpack.c.h.b16 %v217
    %v237 = vunpack.c.l.b16 %v218
    %v238 = vunpack.c.h.b16 %v218
    %v239 = vunpack.c.l.b16 %v219
    %v240 = vunpack.c.h.b16 %v219
    %v241 = vunpack.c.l.b16 %v220
    %v242 = vunpack.c.h.b16 %v220
    %v243 = vunpack.c.l.b16 %v221
    %v244 = vunpack.c.h.b16 %v221
    %v245 = vunpack.c.l.b16 %v222
    %v246 = vunpack.c.h.b16 %v222
    %v247 = vpack.c.b16 %v231, %v231
    %v248 = vpack.c.b16 %v232, %v232
    %v249 = vpack.c.b16 %v233, %v233
    %v250 = vpack.c.b16 %v234, %v234
    %v251 = vpack.c.b16 %v235, %v235
    %v252 = vpack.c.b16 %v236, %v236
    %v253 = vpack.c.b16 %v237, %v237
    %v254 = vpack.c.b16 %v238, %v238
    %v255 = vpack.c.b16 %v239, %v239
    %v256 = vpack.c.b16 %v240, %v240
    %v257 = vpack.c.b16 %v241, %v241
    %v258 = vpack.c.b16 %v242, %v242
    %v259 = vpack.c.b16 %v243, %v243
    %v260 = vpack.c.b16 %v244, %v244
    %v261 = vpack.c.b16 %v245, %v245
    %v262 = vpack.c.b16 %v246, %v246
    %vm279 = vcmask 125952
    %280 = vst.msk [vmem:[%s3] sm:$0xf] %vm279, %v247
    %281 = vst.msk [vmem:[%s3 + $0x4] sm:$0xf] %vm279, %v248
    %282 = vst.msk [vmem:[%s3 + $0x8] sm:$0xf] %vm279, %v249
    %283 = vst.msk [vmem:[%s3 + $0xc] sm:$0xf] %vm279, %v250
    %284 = vst.msk [vmem:[%s3 + $0x10] sm:$0xf] %vm279, %v251
    %285 = vst.msk [vmem:[%s3 + $0x14] sm:$0xf] %vm279, %v252
    %286 = vst.msk [vmem:[%s3 + $0x18] sm:$0xf] %vm279, %v253
    %287 = vst.msk [vmem:[%s3 + $0x1c] sm:$0xf] %vm279, %v254
    %288 = vst.msk [vmem:[%s3 + $0x20] sm:$0xf] %vm279, %v255
    %289 = vst.msk [vmem:[%s3 + $0x24] sm:$0xf] %vm279, %v256
    %290 = vst.msk [vmem:[%s3 + $0x28] sm:$0xf] %vm279, %v257
    %291 = vst.msk [vmem:[%s3 + $0x2c] sm:$0xf] %vm279, %v258
    %292 = vst.msk [vmem:[%s3 + $0x30] sm:$0xf] %vm279, %v259
    %293 = vst.msk [vmem:[%s3 + $0x34] sm:$0xf] %vm279, %v260
    %294 = vst.msk [vmem:[%s3 + $0x38] sm:$0xf] %vm279, %v261
    %295 = vst.msk [vmem:[%s3 + $0x3c] sm:$0xf] %vm279, %v262
    // Predicated region
    $region18: #{_lambda_.11} parent=1 // pred_check
      _
    $region19: #{_lambda_.11} parent=1 // pred_check_branch
      %297 = sbr.rel (0) target = $region21
    $region20: #{_lambda_.11} parent=1 // pred_region
      _
    $region21: #{_lambda_.11} parent=1 // pred_fallthru
      _
    // Predicated region
    $region22: #{_lambda_.11} parent=1 // pred_check
      _
    $region23: #{_lambda_.11} parent=1 // pred_check_branch
      %299 = sbr.rel (0) target = $region25
    $region24: #{_lambda_.11} parent=1 // pred_region
      _
    $region25: #{_lambda_.11} parent=1 // pred_fallthru
      _
    %300 = vsyncpa [#allocation3], 1

// kernel: _lambda_.12
$region0: #{_lambda_.12}
  #allocation0 [shape = 'u32[]', space=smem, size = 0x4, offset = 0x4, fixed_abs, tag = 'smem constant byte address 0x4 - core index']
  #allocation1 [shape = 'u32[144,128]{1,0:T(1,128)}', space=vmem, size = 0x12000, scoped, tag = 'internal scratch']
  %s0 = inlined_call_operand.vmem [shape: bf16[162,64], index: 0, kind: input, shape index: {}]
  %s1 = inlined_call_operand.hbm [shape: bf16[64,32], index: 1, kind: input, shape index: {}]
  %s2 = inlined_call_operand.vmem [shape: f32[162,32], index: 2, kind: output, shape index: {}]
  %s3 = sld [smem:[#allocation0]]
  $region22: #{_lambda_.12} parent=0
    _
  %s5 = ssub.s32 1, %s3
  %s6 = scalar_select 0, %s5, %s3
  $region1: #{_lambda_.12} parent=0
    #allocation2 [shape = 'u8[16384]{0}', space=vmem, size = 0x4000, scoped, tag = 'input window, operand 1, single buffered']
    #allocation3 [shape = 's32[1]{0}', space=sflag, size = 0x4, scoped, tag = 'scoped memory for _lambda_.12']
    %7 = vsyncpa [#allocation3], 0
    // Predicated region
    $region2: #{_lambda_.12} parent=1 // pred_check
      _
    $region3: #{_lambda_.12} parent=1 // pred_check_branch
      %9 = sbr.rel (0) target = $region5
    $region4: #{_lambda_.12} parent=1 // pred_region
      _
    $region5: #{_lambda_.12} parent=1 // pred_fallthru
      _
    // Predicated region
    $region6: #{_lambda_.12} parent=1 // pred_check
      _
    $region7: #{_lambda_.12} parent=1 // pred_check_branch
      %11 = sbr.rel (0) target = $region9
    $region8: #{_lambda_.12} parent=1 // pred_region
      %s13 = ssub.s32 512, 512
      %14 = vsyncadd [#allocation3], %s13
      %s15 = sshll.u32 [#allocation2], 4
      %s16 = int_to_ptr.vmem [resolvable:$true] %s15
      %21 = dma.hbm_to_vmem [thread:$0]  %s1, 512, %s16, [#allocation3], 64, 64, 4
    $region9: #{_lambda_.12} parent=1 // pred_fallthru
      _
    // Predicated region
    $region10: #{_lambda_.12} parent=1 // pred_check
      _
    $region11: #{_lambda_.12} parent=1 // pred_check_branch
      %23 = sbr.rel (0) target = $region13
    $region12: #{_lambda_.12} parent=1 // pred_region
      %24 = dma.done [#allocation3], 512
    $region13: #{_lambda_.12} parent=1 // pred_fallthru
      _
    %v26 = vld [vmem:[%s0] sm:$0xf]
    %v27 = vld [vmem:[%s0 + $0x4] sm:$0xf]
    %v28 = vld [vmem:[%s0 + $0x8] sm:$0xf]
    %v29 = vld [vmem:[%s0 + $0xc] sm:$0xf]
    %v30 = vld [vmem:[%s0 + $0x10] sm:$0xf]
    %v31 = vld [vmem:[%s0 + $0x14] sm:$0xf]
    %v32 = vld [vmem:[%s0 + $0x18] sm:$0xf]
    %v33 = vld [vmem:[%s0 + $0x1c] sm:$0xf]
    %v34 = vld [vmem:[%s0 + $0x20] sm:$0xf]
    %v35 = vld [vmem:[%s0 + $0x24] sm:$0xf]
    %v36 = vld [vmem:[%s0 + $0x28] sm:$0xf]
    %v37 = vld [vmem:[%s0 + $0x2c] sm:$0xf]
    %v38 = vld [vmem:[%s0 + $0x30] sm:$0xf]
    %v39 = vld [vmem:[%s0 + $0x34] sm:$0xf]
    %v40 = vld [vmem:[%s0 + $0x38] sm:$0xf]
    %v41 = vld [vmem:[%s0 + $0x3c] sm:$0xf]
    %v42 = vld [vmem:[%s0 + $0x40] sm:$0xf]
    %v43 = vld [vmem:[%s0 + $0x44] sm:$0xf]
    %v44 = vld [vmem:[%s0 + $0x48] sm:$0xf]
    %v45 = vld [vmem:[%s0 + $0x4c] sm:$0xf]
    %v46 = vld [vmem:[%s0 + $0x50] sm:$0x1]
    %v47 = vld [vmem:[#allocation2] sm:$0xf]
    %v48 = vld [vmem:[#allocation2 + $0x4] sm:$0xf]
    %v49 = vld [vmem:[#allocation2 + $0x8] sm:$0xf]
    %v50 = vld [vmem:[#allocation2 + $0xc] sm:$0xf]
    %v51 = vld [vmem:[#allocation2 + $0x10] sm:$0xf]
    %v52 = vld [vmem:[#allocation2 + $0x14] sm:$0xf]
    %v53 = vld [vmem:[#allocation2 + $0x18] sm:$0xf]
    %v54 = vld [vmem:[#allocation2 + $0x1c] sm:$0xf]
    %v76 = vunpack.c.l.b16 %v26
    %v77 = vunpack.c.l.b16 %v27
    %v78 = vunpack.c.l.b16 %v28
    %v79 = vunpack.c.l.b16 %v29
    %v80 = vunpack.c.l.b16 %v30
    %v81 = vunpack.c.l.b16 %v31
    %v82 = vunpack.c.l.b16 %v32
    %v83 = vunpack.c.l.b16 %v33
    %v84 = vunpack.c.l.b16 %v34
    %v85 = vunpack.c.l.b16 %v35
    %v86 = vunpack.c.l.b16 %v36
    %v87 = vunpack.c.l.b16 %v37
    %v88 = vunpack.c.l.b16 %v38
    %v89 = vunpack.c.l.b16 %v39
    %v90 = vunpack.c.l.b16 %v40
    %v91 = vunpack.c.l.b16 %v41
    %v92 = vunpack.c.l.b16 %v42
    %v93 = vunpack.c.l.b16 %v43
    %v94 = vunpack.c.l.b16 %v44
    %v95 = vunpack.c.l.b16 %v45
    %v96 = vunpack.c.l.b16 %v46
    %v97 = vpack.c.b16 %v77, %v76
    %v98 = vpack.c.b16 %v79, %v78
    %v99 = vpack.c.b16 %v81, %v80
    %v100 = vpack.c.b16 %v83, %v82
    %v101 = vpack.c.b16 %v85, %v84
    %v102 = vpack.c.b16 %v87, %v86
    %v103 = vpack.c.b16 %v89, %v88
    %v104 = vpack.c.b16 %v91, %v90
    %v105 = vpack.c.b16 %v93, %v92
    %v106 = vpack.c.b16 %v95, %v94
    %v107 = vpack.c.b16 %v96, %v96
    %v116 = vunpack.c.l.b16 %v47
    %v117 = vunpack.c.l.b16 %v48
    %v118 = vunpack.c.l.b16 %v49
    %v119 = vunpack.c.l.b16 %v50
    %v120 = vunpack.c.l.b16 %v51
    %v121 = vunpack.c.l.b16 %v52
    %v122 = vunpack.c.l.b16 %v53
    %v123 = vunpack.c.l.b16 %v54
    %v124 = vpack.c.b16 %v117, %v116
    %v125 = vpack.c.b16 %v119, %v118
    %v126 = vpack.c.b16 %v121, %v120
    %v127 = vpack.c.b16 %v123, %v122
    %vm132 = vcmask 523264
    %v134 = vsel %vm132, %v97, 0
    %v137 = vsel %vm132, %v98, 0
    %v140 = vsel %vm132, %v99, 0
    %v143 = vsel %vm132, %v100, 0
    %v146 = vsel %vm132, %v101, 0
    %v149 = vsel %vm132, %v102, 0
    %v152 = vsel %vm132, %v103, 0
    %v155 = vsel %vm132, %v104, 0
    %v158 = vsel %vm132, %v105, 0
    %v161 = vsel %vm132, %v106, 0
    %v164 = vsel %vm132, %v107, 0
    %166 = vmatprep.subr.bf16.mxu0 0
    %167 = vmatpush1.bf16.msra.mxu0 %v124
    %168 = vmatprep.subr.bf16.mxu0 0
    %169 = vmatpush1.bf16.msra.mxu0 %v125
    %170 = vmatprep.subr.bf16.mxu0 0
    %171 = vmatpush1.bf16.msra.mxu0 %v126
    %172 = vmatprep.subr.bf16.mxu0 0
    %173 = vmatpush1.bf16.msra.mxu0 %v127
    %174 = vmatprep.subr.bf16.mxu0 0
    %175 = vmatpush1.bf16.msra.mxu0 0
    %176 = vmatprep.subr.bf16.mxu0 0
    %177 = vmatpush1.bf16.msra.mxu0 0
    %178 = vmatprep.subr.bf16.mxu0 0
    %179 = vmatpush1.bf16.msra.mxu0 0
    %180 = vmatprep.subr.bf16.mxu0 0
    %181 = vmatpush1.bf16.msra.mxu0 0
    %182 = vmatprep.subr.bf16.mxu0 0
    %183 = vmatpush1.bf16.msra.mxu0 0
    %184 = vmatprep.subr.bf16.mxu0 0
    %185 = vmatpush1.bf16.msra.mxu0 0
    %186 = vmatprep.subr.bf16.mxu0 0
    %187 = vmatpush1.bf16.msra.mxu0 0
    %188 = vmatprep.subr.bf16.mxu0 0
    %189 = vmatpush1.bf16.msra.mxu0 0
    %190 = vmatprep.subr.bf16.mxu0 0
    %191 = vmatpush1.bf16.msra.mxu0 0
    %192 = vmatprep.subr.bf16.mxu0 0
    %193 = vmatpush1.bf16.msra.mxu0 0
    %194 = vmatprep.subr.bf16.mxu0 0
    %195 = vmatpush1.bf16.msra.mxu0 0
    %196 = vmatprep.subr.bf16.mxu0 0
    %197 = vmatpush1.bf16.msra.mxu0 0
    %198 = vmatprep.mubr.bf16.mxu0 0
    %199 = vmatmul.mubr.bf16.gmra.mrb[0].mxu0 %v134
    %v200 = vpop.f32.mrb[0].mxu0
    %v201 = vadd.f32 0.0, %v200
    %v202 = vpop.f32.mrb[0].mxu0
    %v203 = vpop.f32.mrb[0].mxu0
    %v204 = vadd.f32 0.0, %v203
    %v205 = vpop.f32.mrb[0].mxu0
    %206 = vmatprep.mubr.bf16.mxu0 0
    %207 = vmatmul.mubr.bf16.gmra.mrb[0].mxu0 %v137
    %v208 = vpop.f32.mrb[0].mxu0
    %v209 = vadd.f32 0.0, %v208
    %v210 = vpop.f32.mrb[0].mxu0
    %v211 = vpop.f32.mrb[0].mxu0
    %v212 = vadd.f32 0.0, %v211
    %v213 = vpop.f32.mrb[0].mxu0
    %214 = vmatprep.mubr.bf16.mxu0 0
    %215 = vmatmul.mubr.bf16.gmra.mrb[0].mxu0 %v140
    %v216 = vpop.f32.mrb[0].mxu0
    %v217 = vadd.f32 0.0, %v216
    %v218 = vpop.f32.mrb[0].mxu0
    %v219 = vpop.f32.mrb[0].mxu0
    %v220 = vadd.f32 0.0, %v219
    %v221 = vpop.f32.mrb[0].mxu0
    %222 = vmatprep.mubr.bf16.mxu0 0
    %223 = vmatmul.mubr.bf16.gmra.mrb[0].mxu0 %v143
    %v224 = vpop.f32.mrb[0].mxu0
    %v225 = vadd.f32 0.0, %v224
    %v226 = vpop.f32.mrb[0].mxu0
    %v227 = vpop.f32.mrb[0].mxu0
    %v228 = vadd.f32 0.0, %v227
    %v229 = vpop.f32.mrb[0].mxu0
    %230 = vmatprep.mubr.bf16.mxu0 0
    %231 = vmatmul.mubr.bf16.gmra.mrb[0].mxu0 %v146
    %v232 = vpop.f32.mrb[0].mxu0
    %v233 = vadd.f32 0.0, %v232
    %v234 = vpop.f32.mrb[0].mxu0
    %v235 = vpop.f32.mrb[0].mxu0
    %v236 = vadd.f32 0.0, %v235
    %v237 = vpop.f32.mrb[0].mxu0
    %238 = vmatprep.mubr.bf16.mxu0 0
    %239 = vmatmul.mubr.bf16.gmra.mrb[0].mxu0 %v149
    %v240 = vpop.f32.mrb[0].mxu0
    %v241 = vadd.f32 0.0, %v240
    %v242 = vpop.f32.mrb[0].mxu0
    %v243 = vpop.f32.mrb[0].mxu0
    %v244 = vadd.f32 0.0, %v243
    %v245 = vpop.f32.mrb[0].mxu0
    %246 = vmatprep.mubr.bf16.mxu0 0
    %247 = vmatmul.mubr.bf16.gmra.mrb[0].mxu0 %v152
    %v248 = vpop.f32.mrb[0].mxu0
    %v249 = vadd.f32 0.0, %v248
    %v250 = vpop.f32.mrb[0].mxu0
    %v251 = vpop.f32.mrb[0].mxu0
    %v252 = vadd.f32 0.0, %v251
    %v253 = vpop.f32.mrb[0].mxu0
    %254 = vmatprep.mubr.bf16.mxu0 0
    %255 = vmatmul.mubr.bf16.gmra.mrb[0].mxu0 %v155
    %v256 = vpop.f32.mrb[0].mxu0
    %v257 = vadd.f32 0.0, %v256
    %v258 = vpop.f32.mrb[0].mxu0
    %v259 = vpop.f32.mrb[0].mxu0
    %v260 = vadd.f32 0.0, %v259
    %v261 = vpop.f32.mrb[0].mxu0
    %262 = vmatprep.mubr.bf16.mxu0 0
    %263 = vmatmul.mubr.bf16.gmra.mrb[0].mxu0 %v158
    %v264 = vpop.f32.mrb[0].mxu0
    %v265 = vadd.f32 0.0, %v264
    %v266 = vpop.f32.mrb[0].mxu0
    %v267 = vpop.f32.mrb[0].mxu0
    %v268 = vadd.f32 0.0, %v267
    %v269 = vpop.f32.mrb[0].mxu0
    %270 = vmatprep.mubr.bf16.mxu0 0
    %271 = vmatmul.mubr.bf16.gmra.mrb[0].mxu0 %v161
    %v272 = vpop.f32.mrb[0].mxu0
    %v273 = vadd.f32 0.0, %v272
    %v274 = vpop.f32.mrb[0].mxu0
    %v275 = vpop.f32.mrb[0].mxu0
    %v276 = vadd.f32 0.0, %v275
    %v277 = vpop.f32.mrb[0].mxu0
    %278 = vmatprep.mubr.bf16.mxu0 0
    %279 = vmatmul.mubr.bf16.gmra.mrb[0].mxu0 %v164
    %v280 = vpop.f32.mrb[0].mxu0
    %v281 = vadd.f32 0.0, %v280
    %v282 = vpop.f32.mrb[0].mxu0
    %v283 = vpop.f32.mrb[0].mxu0
    %v284 = vpop.f32.mrb[0].mxu0
    %285 = vdwg.mxu0
    %vm286 = vcmask 261120
    %287 = vst.msk [vmem:[%s2] sm:$0xff] %vm286, %v201
    %288 = vst.msk [vmem:[%s2 + $0x8] sm:$0xff] %vm286, %v204
    %289 = vst.msk [vmem:[%s2 + $0x10] sm:$0xff] %vm286, %v209
    %290 = vst.msk [vmem:[%s2 + $0x18] sm:$0xff] %vm286, %v212
    %291 = vst.msk [vmem:[%s2 + $0x20] sm:$0xff] %vm286, %v217
    %292 = vst.msk [vmem:[%s2 + $0x28] sm:$0xff] %vm286, %v220
    %293 = vst.msk [vmem:[%s2 + $0x30] sm:$0xff] %vm286, %v225
    %294 = vst.msk [vmem:[%s2 + $0x38] sm:$0xff] %vm286, %v228
    %295 = vst.msk [vmem:[%s2 + $0x40] sm:$0xff] %vm286, %v233
    %296 = vst.msk [vmem:[%s2 + $0x48] sm:$0xff] %vm286, %v236
    %297 = vst.msk [vmem:[%s2 + $0x50] sm:$0xff] %vm286, %v241
    %298 = vst.msk [vmem:[%s2 + $0x58] sm:$0xff] %vm286, %v244
    %299 = vst.msk [vmem:[%s2 + $0x60] sm:$0xff] %vm286, %v249
    %300 = vst.msk [vmem:[%s2 + $0x68] sm:$0xff] %vm286, %v252
    %301 = vst.msk [vmem:[%s2 + $0x70] sm:$0xff] %vm286, %v257
    %302 = vst.msk [vmem:[%s2 + $0x78] sm:$0xff] %vm286, %v260
    %303 = vst.msk [vmem:[%s2 + $0x80] sm:$0xff] %vm286, %v265
    %304 = vst.msk [vmem:[%s2 + $0x88] sm:$0xff] %vm286, %v268
    %305 = vst.msk [vmem:[%s2 + $0x90] sm:$0xff] %vm286, %v273
    %306 = vst.msk [vmem:[%s2 + $0x98] sm:$0xff] %vm286, %v276
    %vm307 = vcmask 254976
    %308 = vst.msk [vmem:[%s2 + $0xa0] sm:$0x3] %vm307, %v281
    // Predicated region
    $region14: #{_lambda_.12} parent=1 // pred_check
      _
    $region15: #{_lambda_.12} parent=1 // pred_check_branch
      %310 = sbr.rel (0) target = $region17
    $region16: #{_lambda_.12} parent=1 // pred_region
      _
    $region17: #{_lambda_.12} parent=1 // pred_fallthru
      _
    // Predicated region
    $region18: #{_lambda_.12} parent=1 // pred_check
      _
    $region19: #{_lambda_.12} parent=1 // pred_check_branch
      %312 = sbr.rel (0) target = $region21
    $region20: #{_lambda_.12} parent=1 // pred_region
      _
    $region21: #{_lambda_.12} parent=1 // pred_fallthru
      _
    %313 = vsyncpa [#allocation3], 1

// kernel: squeeze.0
$region0: #{squeeze.0}
  #allocation0 [shape = 's32[1]{0}', space=sflag, size = 0x4, scoped, tag = 'scoped memory for squeeze.0']
  %s0 = inlined_call_operand.vmem [shape: f32[1,8], index: 0, kind: input, shape index: {}]
  %s1 = inlined_call_operand.vmem [shape: f32[1,8], index: 1, kind: input, shape index: {}]
  %s2 = inlined_call_operand.vmem [shape: f32[1,8], index: 2, kind: output, shape index: {}]
  %v3 = vld [vmem:[%s0] sm:$0x1]
  %v4 = vld [vmem:[%s1] sm:$0x1]
  %5 = xla_tuple %v3, %v4
  %6 = xla_tuple %5
  %v7 = vmul.f32 %v3, %v4
  %8 = xla_tuple %v7
  %9 = vst [vmem:[%s2] sm:$0x1] %v7

// kernel: _lambda_.13
$region0: #{_lambda_.13}
  #allocation0 [shape = 'u32[]', space=smem, size = 0x4, offset = 0x4, fixed_abs, tag = 'smem constant byte address 0x4 - core index']
  #allocation1 [shape = 'u32[144,128]{1,0:T(1,128)}', space=vmem, size = 0x12000, scoped, tag = 'internal scratch']
  %s0 = inlined_call_operand.vmem [shape: f32[512,8], index: 0, kind: input, shape index: {}]
  %s1 = inlined_call_operand.vmem [shape: f32[2,2,8], index: 1, kind: output, shape index: {}]
  %s2 = sld [smem:[#allocation0]]
  $region37: #{_lambda_.13} parent=0
    _
  %s4 = ssub.s32 1, %s2
  %s5 = scalar_select 0, %s4, %s2
  loop: start=0, step=1, limit=4
  $region2: #{_lambda_.13} parent=0 // loop_pre_header
    _
  $region3: #{_lambda_.13} parent=0 // loop_header
    %s7 = sphi 0, %s11
    %p8 = scmp.ge.s32.totalorder %s7, 4
    %s17 = sphi 0, %s19
    %s20 = sphi 0, %s17
    %s21 = sphi 0, %s20
    %s37 = sphi 0, %s21
    %s43 = sphi 0, %s45
    %s46 = sphi 0, %s43
    %s47 = sphi 0, %s46
    %s63 = sphi 0, %s47
  $region4: #{_lambda_.13} parent=0 // loop_header_branch
    %10 = sbr.rel (%p8) target = $region8
  $region5: #{_lambda_.13} parent=0 // loop_body
    %s12 = ssub.s32 %s7, 1
    %s13 = ssub.s32 %s7, 2
    %s14 = sadd.s32 %s7, 1
    %s15 = ssub.s32 %s7, %s14
    %p16 = scmp.eq.s32.totalorder %s15, 0
    %s18 = sadd.s32 %s17, 1
    %s19 = scalar_select %p16, %s17, %s18
    %p22 = pneg %p16
    %p23 = scmp.eq.s32.totalorder %s7, 1
    %p24 = por %p22, %p23
    %p25 = scmp.ne.s32.totalorder %s17, %s20
    %p26 = scmp.eq.s32.totalorder %s7, 0
    %p27 = por %p25, %p26
    %p28 = scmp.ne.s32.totalorder %s17, %s20
    %p29 = scmp.eq.s32.totalorder %s12, 1
    %p30 = por %p28, %p29
    %p31 = scmp.ne.s32.totalorder %s20, %s21
    %p32 = scmp.eq.s32.totalorder %s12, 0
    %p33 = por %p31, %p32
    %p34 = scmp.ne.s32.totalorder %s20, %s21
    %p35 = scmp.eq.s32.totalorder %s13, 1
    %p36 = por %p34, %p35
    %p38 = scmp.ne.s32.totalorder %s21, %s37
    %p39 = scmp.eq.s32.totalorder %s13, 0
    %p40 = por %p38, %p39
    %s41 = ssub.s32 %s7, %s14
    %p42 = scmp.eq.s32.totalorder %s41, 0
    %s44 = sadd.s32 %s43, 1
    %s45 = scalar_select %p42, %s43, %s44
    %p48 = pneg %p42
    %p49 = scmp.eq.s32.totalorder %s7, 1
    %p50 = por %p48, %p49
    %p51 = scmp.ne.s32.totalorder %s43, %s46
    %p52 = scmp.eq.s32.totalorder %s7, 0
    %p53 = por %p51, %p52
    %p54 = scmp.ne.s32.totalorder %s43, %s46
    %p55 = scmp.eq.s32.totalorder %s12, 1
    %p56 = por %p54, %p55
    %p57 = scmp.ne.s32.totalorder %s46, %s47
    %p58 = scmp.eq.s32.totalorder %s12, 0
    %p59 = por %p57, %p58
    %p60 = scmp.ne.s32.totalorder %s46, %s47
    %p61 = scmp.eq.s32.totalorder %s13, 1
    %p62 = por %p60, %p61
    %p64 = scmp.ne.s32.totalorder %s47, %s63
    %p65 = scmp.eq.s32.totalorder %s13, 0
    %p66 = por %p64, %p65
    %p67 = scmp.le.s32.totalorder 1, %s7
    %p68 = scmp.lt.s32.totalorder %s7, 3
    %p69 = pnand %p67, %p68
    %p70 = pneg %p69
    // Predicated region
    $region9: #{_lambda_.13} parent=5 // pred_check
      _
    $region10: #{_lambda_.13} parent=5 // pred_check_branch
      %72 = sbr.rel (%p69) target = $region12
    $region11: #{_lambda_.13} parent=5 // pred_region
      %s73 = ssub.s32 %s7, 1
    $region12: #{_lambda_.13} parent=5 // pred_fallthru
      _
    %p74 = scmp.lt.s32.totalorder %s7, 2
    // Predicated region
    $region13: #{_lambda_.13} parent=5 // pred_check
      %p75 = pneg %p74
    $region14: #{_lambda_.13} parent=5 // pred_check_branch
      %77 = sbr.rel (%p75) target = $region16
    $region15: #{_lambda_.13} parent=5 // pred_region
      // Predicated region
      $region17: #{_lambda_.13} parent=15 // pred_check
        %p78 = pneg %p27
      $region18: #{_lambda_.13} parent=15 // pred_check_branch
        %80 = sbr.rel (%p78) target = $region20
      $region19: #{_lambda_.13} parent=15 // pred_region
        %s81 = smul.u32 32, %s7
        %p82 = scmp.lt.s32.totalorder %s81, 63
        %s83 = scalar_select %p82, %s81, 63
        %s84 = smul.addr %s83, 8
        %s85 = scalar_lea.vmem %s0, %s84
        %s86 = smul.u32 32, %s7
      $region20: #{_lambda_.13} parent=15 // pred_fallthru
        _
    $region16: #{_lambda_.13} parent=5 // pred_fallthru
      _
    %p87 = scmp.le.s32.totalorder 1, %s7
    %p88 = scmp.lt.s32.totalorder %s7, 3
    %p89 = pnand %p87, %p88
    %p90 = pneg %p89
    // Predicated region
    $region21: #{_lambda_.13} parent=5 // pred_check
      _
    $region22: #{_lambda_.13} parent=5 // pred_check_branch
      %92 = sbr.rel (%p89) target = $region24
    $region23: #{_lambda_.13} parent=5 // pred_region
      %s93 = ssub.s32 %s7, 1
      %s94 = smul.u32 32, %s12
      %p95 = scmp.lt.s32.totalorder %s94, 63
      %s96 = scalar_select %p95, %s94, 63
      %s97 = smul.addr %s96, 8
      %s98 = scalar_lea.vmem %s0, %s97
      %p99 = pneg %p33
      %p100 = pneg %p30
      %p101 = pneg %p59
      %p102 = pneg %p56
      %p103 = scmp.lt.s32.totalorder %s12, 1
      %s104 = scalar_select %p103, %s12, 1
      %s105 = smul.addr %s104, 2
      %s106 = scalar_lea.vmem %s1, %s105
      %s107 = smul.u32 32, %s12
      %p108 = scmp.lt.s32.totalorder %s107, 63
      %s109 = scalar_select %p108, %s107, 63
      %s110 = smul.addr %s109, 8
      %s111 = scalar_lea.vmem %s0, %s110
      %s112 = smul.u32 32, %s12
      %p113 = scmp.lt.s32.totalorder %s12, 1
      %s114 = scalar_select %p113, %s12, 1
      %s115 = smul.addr %s114, 2
      %s116 = scalar_lea.vmem %s1, %s115
      %v117 = vld [vmem:[%s111] sm:$0xff]
      %v118 = vld [vmem:[%s111 + $0x8] sm:$0xff]
      %v119 = vld [vmem:[%s111 + $0x10] sm:$0xff]
      %v120 = vld [vmem:[%s111 + $0x18] sm:$0xff]
      %v121 = vld [vmem:[%s111 + $0x20] sm:$0xff]
      %v122 = vld [vmem:[%s111 + $0x28] sm:$0xff]
      %v123 = vld [vmem:[%s111 + $0x30] sm:$0xff]
      %v124 = vld [vmem:[%s111 + $0x38] sm:$0xff]
      %v125 = vld [vmem:[%s111 + $0x40] sm:$0xff]
      %v126 = vld [vmem:[%s111 + $0x48] sm:$0xff]
      %v127 = vld [vmem:[%s111 + $0x50] sm:$0xff]
      %v128 = vld [vmem:[%s111 + $0x58] sm:$0xff]
      %v129 = vld [vmem:[%s111 + $0x60] sm:$0xff]
      %v130 = vld [vmem:[%s111 + $0x68] sm:$0xff]
      %v131 = vld [vmem:[%s111 + $0x70] sm:$0xff]
      %v132 = vld [vmem:[%s111 + $0x78] sm:$0xff]
      %v133 = vld [vmem:[%s111 + $0x80] sm:$0xff]
      %v134 = vld [vmem:[%s111 + $0x88] sm:$0xff]
      %v135 = vld [vmem:[%s111 + $0x90] sm:$0xff]
      %v136 = vld [vmem:[%s111 + $0x98] sm:$0xff]
      %v137 = vld [vmem:[%s111 + $0xa0] sm:$0xff]
      %v138 = vld [vmem:[%s111 + $0xa8] sm:$0xff]
      %v139 = vld [vmem:[%s111 + $0xb0] sm:$0xff]
      %v140 = vld [vmem:[%s111 + $0xb8] sm:$0xff]
      %v141 = vld [vmem:[%s111 + $0xc0] sm:$0xff]
      %v142 = vld [vmem:[%s111 + $0xc8] sm:$0xff]
      %v143 = vld [vmem:[%s111 + $0xd0] sm:$0xff]
      %v144 = vld [vmem:[%s111 + $0xd8] sm:$0xff]
      %v145 = vld [vmem:[%s111 + $0xe0] sm:$0xff]
      %v146 = vld [vmem:[%s111 + $0xe8] sm:$0xff]
      %v147 = vld [vmem:[%s111 + $0xf0] sm:$0xff]
      %v148 = vld [vmem:[%s111 + $0xf8] sm:$0xff]
      %vm149 = vcmask 64512
      %v150 = vsel %vm149, %v117, 0.0
      %v151 = vsel %vm149, %v118, 0.0
      %v152 = vadd.f32 %v150, %v151
      %v153 = vsel %vm149, %v119, 0.0
      %v154 = vadd.f32 %v152, %v153
      %v155 = vsel %vm149, %v120, 0.0
      %v156 = vadd.f32 %v154, %v155
      %v157 = vsel %vm149, %v121, 0.0
      %v158 = vadd.f32 %v156, %v157
      %v159 = vsel %vm149, %v122, 0.0
      %v160 = vadd.f32 %v158, %v159
      %v161 = vsel %vm149, %v123, 0.0
      %v162 = vadd.f32 %v160, %v161
      %v163 = vsel %vm149, %v124, 0.0
      %v164 = vadd.f32 %v162, %v163
      %v165 = vsel %vm149, %v125, 0.0
      %v166 = vadd.f32 %v164, %v165
      %v167 = vsel %vm149, %v126, 0.0
      %v168 = vadd.f32 %v166, %v167
      %v169 = vsel %vm149, %v127, 0.0
      %v170 = vadd.f32 %v168, %v169
      %v171 = vsel %vm149, %v128, 0.0
      %v172 = vadd.f32 %v170, %v171
      %v173 = vsel %vm149, %v129, 0.0
      %v174 = vadd.f32 %v172, %v173
      %v175 = vsel %vm149, %v130, 0.0
      %v176 = vadd.f32 %v174, %v175
      %v177 = vsel %vm149, %v131, 0.0
      %v178 = vadd.f32 %v176, %v177
      %v179 = vsel %vm149, %v132, 0.0
      %v180 = vadd.f32 %v178, %v179
      %v181 = vsel %vm149, %v133, 0.0
      %v182 = vadd.f32 %v180, %v181
      %v183 = vsel %vm149, %v134, 0.0
      %v184 = vadd.f32 %v182, %v183
      %v185 = vsel %vm149, %v135, 0.0
      %v186 = vadd.f32 %v184, %v185
      %v187 = vsel %vm149, %v136, 0.0
      %v188 = vadd.f32 %v186, %v187
      %v189 = vsel %vm149, %v137, 0.0
      %v190 = vadd.f32 %v188, %v189
      %v191 = vsel %vm149, %v138, 0.0
      %v192 = vadd.f32 %v190, %v191
      %v193 = vsel %vm149, %v139, 0.0
      %v194 = vadd.f32 %v192, %v193
      %v195 = vsel %vm149, %v140, 0.0
      %v196 = vadd.f32 %v194, %v195
      %v197 = vsel %vm149, %v141, 0.0
      %v198 = vadd.f32 %v196, %v197
      %v199 = vsel %vm149, %v142, 0.0
      %v200 = vadd.f32 %v198, %v199
      %v201 = vsel %vm149, %v143, 0.0
      %v202 = vadd.f32 %v200, %v201
      %v203 = vsel %vm149, %v144, 0.0
      %v204 = vadd.f32 %v202, %v203
      %v205 = vsel %vm149, %v145, 0.0
      %v206 = vadd.f32 %v204, %v205
      %v207 = vsel %vm149, %v146, 0.0
      %v208 = vadd.f32 %v206, %v207
      %v209 = vsel %vm149, %v147, 0.0
      %v210 = vadd.f32 %v208, %v209
      %v211 = vsel %vm149, %v148, 0.0
      %v212 = vadd.f32 %v210, %v211
      %v213 = vrot.slane %v212, 4
      %v214 = vadd.f32 %v212, %v213
      %v215 = vrot.slane %v214, 2
      %v216 = vadd.f32 %v214, %v215
      %v217 = vrot.slane %v216, 1
      %v218 = vadd.f32 %v216, %v217
      %v219 = vmul.f32 %v117, %v117
      %v220 = vmul.f32 %v118, %v118
      %v221 = vmul.f32 %v119, %v119
      %v222 = vmul.f32 %v120, %v120
      %v223 = vmul.f32 %v121, %v121
      %v224 = vmul.f32 %v122, %v122
      %v225 = vmul.f32 %v123, %v123
      %v226 = vmul.f32 %v124, %v124
      %v227 = vmul.f32 %v125, %v125
      %v228 = vmul.f32 %v126, %v126
      %v229 = vmul.f32 %v127, %v127
      %v230 = vmul.f32 %v128, %v128
      %v231 = vmul.f32 %v129, %v129
      %v232 = vmul.f32 %v130, %v130
      %v233 = vmul.f32 %v131, %v131
      %v234 = vmul.f32 %v132, %v132
      %v235 = vmul.f32 %v133, %v133
      %v236 = vmul.f32 %v134, %v134
      %v237 = vmul.f32 %v135, %v135
      %v238 = vmul.f32 %v136, %v136
      %v239 = vmul.f32 %v137, %v137
      %v240 = vmul.f32 %v138, %v138
      %v241 = vmul.f32 %v139, %v139
      %v242 = vmul.f32 %v140, %v140
      %v243 = vmul.f32 %v141, %v141
      %v244 = vmul.f32 %v142, %v142
      %v245 = vmul.f32 %v143, %v143
      %v246 = vmul.f32 %v144, %v144
      %v247 = vmul.f32 %v145, %v145
      %v248 = vmul.f32 %v146, %v146
      %v249 = vmul.f32 %v147, %v147
      %v250 = vmul.f32 %v148, %v148
      %v251 = vsel %vm149, %v219, 0.0
      %v252 = vsel %vm149, %v220, 0.0
      %v253 = vadd.f32 %v251, %v252
      %v254 = vsel %vm149, %v221, 0.0
      %v255 = vadd.f32 %v253, %v254
      %v256 = vsel %vm149, %v222, 0.0
      %v257 = vadd.f32 %v255, %v256
      %v258 = vsel %vm149, %v223, 0.0
      %v259 = vadd.f32 %v257, %v258
      %v260 = vsel %vm149, %v224, 0.0
      %v261 = vadd.f32 %v259, %v260
      %v262 = vsel %vm149, %v225, 0.0
      %v263 = vadd.f32 %v261, %v262
      %v264 = vsel %vm149, %v226, 0.0
      %v265 = vadd.f32 %v263, %v264
      %v266 = vsel %vm149, %v227, 0.0
      %v267 = vadd.f32 %v265, %v266
      %v268 = vsel %vm149, %v228, 0.0
      %v269 = vadd.f32 %v267, %v268
      %v270 = vsel %vm149, %v229, 0.0
      %v271 = vadd.f32 %v269, %v270
      %v272 = vsel %vm149, %v230, 0.0
      %v273 = vadd.f32 %v271, %v272
      %v274 = vsel %vm149, %v231, 0.0
      %v275 = vadd.f32 %v273, %v274
      %v276 = vsel %vm149, %v232, 0.0
      %v277 = vadd.f32 %v275, %v276
      %v278 = vsel %vm149, %v233, 0.0
      %v279 = vadd.f32 %v277, %v278
      %v280 = vsel %vm149, %v234, 0.0
      %v281 = vadd.f32 %v279, %v280
      %v282 = vsel %vm149, %v235, 0.0
      %v283 = vadd.f32 %v281, %v282
      %v284 = vsel %vm149, %v236, 0.0
      %v285 = vadd.f32 %v283, %v284
      %v286 = vsel %vm149, %v237, 0.0
      %v287 = vadd.f32 %v285, %v286
      %v288 = vsel %vm149, %v238, 0.0
      %v289 = vadd.f32 %v287, %v288
      %v290 = vsel %vm149, %v239, 0.0
      %v291 = vadd.f32 %v289, %v290
      %v292 = vsel %vm149, %v240, 0.0
      %v293 = vadd.f32 %v291, %v292
      %v294 = vsel %vm149, %v241, 0.0
      %v295 = vadd.f32 %v293, %v294
      %v296 = vsel %vm149, %v242, 0.0
      %v297 = vadd.f32 %v295, %v296
      %v298 = vsel %vm149, %v243, 0.0
      %v299 = vadd.f32 %v297, %v298
      %v300 = vsel %vm149, %v244, 0.0
      %v301 = vadd.f32 %v299, %v300
      %v302 = vsel %vm149, %v245, 0.0
      %v303 = vadd.f32 %v301, %v302
      %v304 = vsel %vm149, %v246, 0.0
      %v305 = vadd.f32 %v303, %v304
      %v306 = vsel %vm149, %v247, 0.0
      %v307 = vadd.f32 %v305, %v306
      %v308 = vsel %vm149, %v248, 0.0
      %v309 = vadd.f32 %v307, %v308
      %v310 = vsel %vm149, %v249, 0.0
      %v311 = vadd.f32 %v309, %v310
      %v312 = vsel %vm149, %v250, 0.0
      %v313 = vadd.f32 %v311, %v312
      %v314 = vrot.slane %v313, 4
      %v315 = vadd.f32 %v313, %v314
      %v316 = vrot.slane %v315, 2
      %v317 = vadd.f32 %v315, %v316
      %v318 = vrot.slane %v317, 1
      %v319 = vadd.f32 %v317, %v318
      %vm320 = vcmask 1040384
      %v321 = vsel %vm320, %v218, %v319
      %vm322 = vcmask 58368
      %323 = vst.msk [vmem:[%s116] sm:$0x3] %vm322, %v321
      %p324 = scmp.lt.s32.totalorder %s12, 1
      %s325 = scalar_select %p324, %s12, 1
      %s326 = smul.addr %s325, 2
      %s327 = scalar_lea.vmem %s1, %s326
      // Predicated region
      $region25: #{_lambda_.13} parent=23 // pred_check
        %p328 = pneg %p56
      $region26: #{_lambda_.13} parent=23 // pred_check_branch
        %330 = sbr.rel (%p328) target = $region28
      $region27: #{_lambda_.13} parent=23 // pred_region
        _
      $region28: #{_lambda_.13} parent=23 // pred_fallthru
        _
    $region24: #{_lambda_.13} parent=5 // pred_fallthru
      _
    %p331 = scmp.le.s32.totalorder 2, %s7
    // Predicated region
    $region29: #{_lambda_.13} parent=5 // pred_check
      %p332 = pneg %p331
    $region30: #{_lambda_.13} parent=5 // pred_check_branch
      %334 = sbr.rel (%p332) target = $region32
    $region31: #{_lambda_.13} parent=5 // pred_region
      %s335 = ssub.s32 %s7, 2
      // Predicated region
      $region33: #{_lambda_.13} parent=31 // pred_check
        %p336 = pneg %p62
      $region34: #{_lambda_.13} parent=31 // pred_check_branch
        %338 = sbr.rel (%p336) target = $region36
      $region35: #{_lambda_.13} parent=31 // pred_region
        %p339 = scmp.lt.s32.totalorder %s13, 1
        %s340 = scalar_select %p339, %s13, 1
        %s341 = smul.addr %s340, 2
        %s342 = scalar_lea.vmem %s1, %s341
      $region36: #{_lambda_.13} parent=31 // pred_fallthru
        _
    $region32: #{_lambda_.13} parent=5 // pred_fallthru
      _
  $region6: #{_lambda_.13} parent=0 // loop_footer
    %s11 = sadd.s32 1, %s7
  $region7: #{_lambda_.13} parent=0 // loop_footer_branch
    %6 = sbr.rel target = $region3
  $region8: #{_lambda_.13} parent=0 // loop_exit
    _

// kernel: _lambda_.15
$region0: #{_lambda_.15}
  #allocation0 [shape = 'u32[]', space=smem, size = 0x4, offset = 0x4, fixed_abs, tag = 'smem constant byte address 0x4 - core index']
  #allocation1 [shape = 'u32[144,128]{1,0:T(1,128)}', space=vmem, size = 0x12000, scoped, tag = 'internal scratch']
  %s0 = inlined_call_operand.vmem [shape: bf16[512,8], index: 0, kind: input, shape index: {}]
  %s1 = inlined_call_operand.vmem [shape: bf16[8,128], index: 1, kind: input, shape index: {}]
  %s2 = inlined_call_operand.vmem [shape: f32[512,128], index: 2, kind: output, shape index: {}]
  %s3 = sld [smem:[#allocation0]]
  $region41: #{_lambda_.15} parent=0
    _
  %s5 = ssub.s32 1, %s3
  %s6 = scalar_select 0, %s5, %s3
  loop: start=0, step=1, limit=4
  $region2: #{_lambda_.15} parent=0 // loop_pre_header
    _
  $region3: #{_lambda_.15} parent=0 // loop_header
    %s8 = sphi 0, %s12
    %p9 = scmp.ge.s32.totalorder %s8, 4
    %s18 = sphi 0, %s20
    %s21 = sphi 0, %s18
    %s22 = sphi 0, %s21
    %s38 = sphi 0, %s22
    %s42 = sphi 0, %s42
    %s44 = sphi 0, %s42
    %s45 = sphi 0, %s44
    %s59 = sphi 0, %s45
    %s65 = sphi 0, %s67
    %s68 = sphi 0, %s65
    %s69 = sphi 0, %s68
    %s85 = sphi 0, %s69
  $region4: #{_lambda_.15} parent=0 // loop_header_branch
    %11 = sbr.rel (%p9) target = $region8
  $region5: #{_lambda_.15} parent=0 // loop_body
    %s13 = ssub.s32 %s8, 1
    %s14 = ssub.s32 %s8, 2
    %s15 = sadd.s32 %s8, 1
    %s16 = ssub.s32 %s8, %s15
    %p17 = scmp.eq.s32.totalorder %s16, 0
    %s19 = sadd.s32 %s18, 1
    %s20 = scalar_select %p17, %s18, %s19
    %p23 = pneg %p17
    %p24 = scmp.eq.s32.totalorder %s8, 1
    %p25 = por %p23, %p24
    %p26 = scmp.ne.s32.totalorder %s18, %s21
    %p27 = scmp.eq.s32.totalorder %s8, 0
    %p28 = por %p26, %p27
    %p29 = scmp.ne.s32.totalorder %s18, %s21
    %p30 = scmp.eq.s32.totalorder %s13, 1
    %p31 = por %p29, %p30
    %p32 = scmp.ne.s32.totalorder %s21, %s22
    %p33 = scmp.eq.s32.totalorder %s13, 0
    %p34 = por %p32, %p33
    %p35 = scmp.ne.s32.totalorder %s21, %s22
    %p36 = scmp.eq.s32.totalorder %s14, 1
    %p37 = por %p35, %p36
    %p39 = scmp.ne.s32.totalorder %s22, %s38
    %p40 = scmp.eq.s32.totalorder %s14, 0
    %p41 = por %p39, %p40
    %s43 = sadd.s32 %s42, 1
    %p46 = scmp.eq.s32.totalorder %s8, 1
    %p47 = scmp.ne.s32.totalorder %s42, %s44
    %p48 = scmp.eq.s32.totalorder %s8, 0
    %p49 = por %p47, %p48
    %p50 = scmp.ne.s32.totalorder %s42, %s44
    %p51 = scmp.eq.s32.totalorder %s13, 1
    %p52 = por %p50, %p51
    %p53 = scmp.ne.s32.totalorder %s44, %s45
    %p54 = scmp.eq.s32.totalorder %s13, 0
    %p55 = por %p53, %p54
    %p56 = scmp.ne.s32.totalorder %s44, %s45
    %p57 = scmp.eq.s32.totalorder %s14, 1
    %p58 = por %p56, %p57
    %p60 = scmp.ne.s32.totalorder %s45, %s59
    %p61 = scmp.eq.s32.totalorder %s14, 0
    %p62 = por %p60, %p61
    %s63 = ssub.s32 %s8, %s15
    %p64 = scmp.eq.s32.totalorder %s63, 0
    %s66 = sadd.s32 %s65, 1
    %s67 = scalar_select %p64, %s65, %s66
    %p70 = pneg %p64
    %p71 = scmp.eq.s32.totalorder %s8, 1
    %p72 = por %p70, %p71
    %p73 = scmp.ne.s32.totalorder %s65, %s68
    %p74 = scmp.eq.s32.totalorder %s8, 0
    %p75 = por %p73, %p74
    %p76 = scmp.ne.s32.totalorder %s65, %s68
    %p77 = scmp.eq.s32.totalorder %s13, 1
    %p78 = por %p76, %p77
    %p79 = scmp.ne.s32.totalorder %s68, %s69
    %p80 = scmp.eq.s32.totalorder %s13, 0
    %p81 = por %p79, %p80
    %p82 = scmp.ne.s32.totalorder %s68, %s69
    %p83 = scmp.eq.s32.totalorder %s14, 1
    %p84 = por %p82, %p83
    %p86 = scmp.ne.s32.totalorder %s69, %s85
    %p87 = scmp.eq.s32.totalorder %s14, 0
    %p88 = por %p86, %p87
    %p89 = scmp.le.s32.totalorder 1, %s8
    %p90 = scmp.lt.s32.totalorder %s8, 3
    %p91 = pnand %p89, %p90
    %p92 = pneg %p91
    // Predicated region
    $region9: #{_lambda_.15} parent=5 // pred_check
      _
    $region10: #{_lambda_.15} parent=5 // pred_check_branch
      %94 = sbr.rel (%p91) target = $region12
    $region11: #{_lambda_.15} parent=5 // pred_region
      %s95 = ssub.s32 %s8, 1
      // Predicated region
      $region13: #{_lambda_.15} parent=11 // pred_check
        %p96 = pneg %p55
      $region14: #{_lambda_.15} parent=11 // pred_check_branch
        %98 = sbr.rel (%p96) target = $region16
      $region15: #{_lambda_.15} parent=11 // pred_region
        _
      $region16: #{_lambda_.15} parent=11 // pred_fallthru
        _
    $region12: #{_lambda_.15} parent=5 // pred_fallthru
      _
    %p99 = scmp.lt.s32.totalorder %s8, 2
    // Predicated region
    $region17: #{_lambda_.15} parent=5 // pred_check
      %p100 = pneg %p99
    $region18: #{_lambda_.15} parent=5 // pred_check_branch
      %102 = sbr.rel (%p100) target = $region20
    $region19: #{_lambda_.15} parent=5 // pred_region
      // Predicated region
      $region21: #{_lambda_.15} parent=19 // pred_check
        %p103 = pneg %p28
      $region22: #{_lambda_.15} parent=19 // pred_check_branch
        %105 = sbr.rel (%p103) target = $region24
      $region23: #{_lambda_.15} parent=19 // pred_region
        %s106 = smul.u32 32, %s8
        %p107 = scmp.lt.s32.totalorder %s106, 63
        %s108 = scalar_select %p107, %s106, 63
        %s109 = smul.addr %s108, 4
        %s110 = scalar_lea.vmem %s0, %s109
        %s111 = smul.u32 32, %s8
      $region24: #{_lambda_.15} parent=19 // pred_fallthru
        _
    $region20: #{_lambda_.15} parent=5 // pred_fallthru
      _
    %p112 = scmp.le.s32.totalorder 1, %s8
    %p113 = scmp.lt.s32.totalorder %s8, 3
    %p114 = pnand %p112, %p113
    %p115 = pneg %p114
    // Predicated region
    $region25: #{_lambda_.15} parent=5 // pred_check
      _
    $region26: #{_lambda_.15} parent=5 // pred_check_branch
      %117 = sbr.rel (%p114) target = $region28
    $region27: #{_lambda_.15} parent=5 // pred_region
      %s118 = ssub.s32 %s8, 1
      %s119 = smul.u32 32, %s13
      %p120 = scmp.lt.s32.totalorder %s119, 63
      %s121 = scalar_select %p120, %s119, 63
      %s122 = smul.addr %s121, 4
      %s123 = scalar_lea.vmem %s0, %s122
      %p124 = pneg %p34
      %p125 = pneg %p31
      %p126 = pneg %p55
      %p127 = pneg %p52
      %p128 = pneg %p81
      %p129 = pneg %p78
      %s130 = smul.u32 32, %s13
      %p131 = scmp.lt.s32.totalorder %s130, 63
      %s132 = scalar_select %p131, %s130, 63
      %s133 = smul.addr %s132, 8
      %s134 = scalar_lea.vmem %s2, %s133
      %s135 = smul.u32 32, %s13
      %p136 = scmp.lt.s32.totalorder %s135, 63
      %s137 = scalar_select %p136, %s135, 63
      %s138 = smul.addr %s137, 4
      %s139 = scalar_lea.vmem %s0, %s138
      %s140 = smul.u32 32, %s13
      %s141 = smul.u32 32, %s13
      %p142 = scmp.lt.s32.totalorder %s141, 63
      %s143 = scalar_select %p142, %s141, 63
      %s144 = smul.addr %s143, 8
      %s145 = scalar_lea.vmem %s2, %s144
      %s146 = smul.u32 32, %s13
      %v148 = vld [vmem:[%s139] sm:$0xf]
      %v149 = vld [vmem:[%s139 + $0x4] sm:$0xf]
      %v150 = vld [vmem:[%s139 + $0x8] sm:$0xf]
      %v151 = vld [vmem:[%s139 + $0xc] sm:$0xf]
      %v152 = vld [vmem:[%s139 + $0x10] sm:$0xf]
      %v153 = vld [vmem:[%s139 + $0x14] sm:$0xf]
      %v154 = vld [vmem:[%s139 + $0x18] sm:$0xf]
      %v155 = vld [vmem:[%s139 + $0x1c] sm:$0xf]
      %v156 = vld [vmem:[%s139 + $0x20] sm:$0xf]
      %v157 = vld [vmem:[%s139 + $0x24] sm:$0xf]
      %v158 = vld [vmem:[%s139 + $0x28] sm:$0xf]
      %v159 = vld [vmem:[%s139 + $0x2c] sm:$0xf]
      %v160 = vld [vmem:[%s139 + $0x30] sm:$0xf]
      %v161 = vld [vmem:[%s139 + $0x34] sm:$0xf]
      %v162 = vld [vmem:[%s139 + $0x38] sm:$0xf]
      %v163 = vld [vmem:[%s139 + $0x3c] sm:$0xf]
      %v164 = vld [vmem:[%s139 + $0x40] sm:$0xf]
      %v165 = vld [vmem:[%s139 + $0x44] sm:$0xf]
      %v166 = vld [vmem:[%s139 + $0x48] sm:$0xf]
      %v167 = vld [vmem:[%s139 + $0x4c] sm:$0xf]
      %v168 = vld [vmem:[%s139 + $0x50] sm:$0xf]
      %v169 = vld [vmem:[%s139 + $0x54] sm:$0xf]
      %v170 = vld [vmem:[%s139 + $0x58] sm:$0xf]
      %v171 = vld [vmem:[%s139 + $0x5c] sm:$0xf]
      %v172 = vld [vmem:[%s139 + $0x60] sm:$0xf]
      %v173 = vld [vmem:[%s139 + $0x64] sm:$0xf]
      %v174 = vld [vmem:[%s139 + $0x68] sm:$0xf]
      %v175 = vld [vmem:[%s139 + $0x6c] sm:$0xf]
      %v176 = vld [vmem:[%s139 + $0x70] sm:$0xf]
      %v177 = vld [vmem:[%s139 + $0x74] sm:$0xf]
      %v178 = vld [vmem:[%s139 + $0x78] sm:$0xf]
      %v179 = vld [vmem:[%s139 + $0x7c] sm:$0xf]
      %v180 = vld [vmem:[%s1] sm:$0xf]
      %v213 = vunpack.c.l.b16 %v148
      %v214 = vunpack.c.l.b16 %v149
      %v215 = vunpack.c.l.b16 %v150
      %v216 = vunpack.c.l.b16 %v151
      %v217 = vunpack.c.l.b16 %v152
      %v218 = vunpack.c.l.b16 %v153
      %v219 = vunpack.c.l.b16 %v154
      %v220 = vunpack.c.l.b16 %v155
      %v221 = vunpack.c.l.b16 %v156
      %v222 = vunpack.c.l.b16 %v157
      %v223 = vunpack.c.l.b16 %v158
      %v224 = vunpack.c.l.b16 %v159
      %v225 = vunpack.c.l.b16 %v160
      %v226 = vunpack.c.l.b16 %v161
      %v227 = vunpack.c.l.b16 %v162
      %v228 = vunpack.c.l.b16 %v163
      %v229 = vunpack.c.l.b16 %v164
      %v230 = vunpack.c.l.b16 %v165
      %v231 = vunpack.c.l.b16 %v166
      %v232 = vunpack.c.l.b16 %v167
      %v233 = vunpack.c.l.b16 %v168
      %v234 = vunpack.c.l.b16 %v169
      %v235 = vunpack.c.l.b16 %v170
      %v236 = vunpack.c.l.b16 %v171
      %v237 = vunpack.c.l.b16 %v172
      %v238 = vunpack.c.l.b16 %v173
      %v239 = vunpack.c.l.b16 %v174
      %v240 = vunpack.c.l.b16 %v175
      %v241 = vunpack.c.l.b16 %v176
      %v242 = vunpack.c.l.b16 %v177
      %v243 = vunpack.c.l.b16 %v178
      %v244 = vunpack.c.l.b16 %v179
      %v245 = vpack.c.b16 %v214, %v213
      %v246 = vpack.c.b16 %v216, %v215
      %v247 = vpack.c.b16 %v218, %v217
      %v248 = vpack.c.b16 %v220, %v219
      %v249 = vpack.c.b16 %v222, %v221
      %v250 = vpack.c.b16 %v224, %v223
      %v251 = vpack.c.b16 %v226, %v225
      %v252 = vpack.c.b16 %v228, %v227
      %v253 = vpack.c.b16 %v230, %v229
      %v254 = vpack.c.b16 %v232, %v231
      %v255 = vpack.c.b16 %v234, %v233
      %v256 = vpack.c.b16 %v236, %v235
      %v257 = vpack.c.b16 %v238, %v237
      %v258 = vpack.c.b16 %v240, %v239
      %v259 = vpack.c.b16 %v242, %v241
      %v260 = vpack.c.b16 %v244, %v243
      %vm261 = vcmask 64512
      %v263 = vsel %vm261, %v245, 0
      %v266 = vsel %vm261, %v246, 0
      %v269 = vsel %vm261, %v247, 0
      %v272 = vsel %vm261, %v248, 0
      %v275 = vsel %vm261, %v249, 0
      %v278 = vsel %vm261, %v250, 0
      %v281 = vsel %vm261, %v251, 0
      %v284 = vsel %vm261, %v252, 0
      %v287 = vsel %vm261, %v253, 0
      %v290 = vsel %vm261, %v254, 0
      %v293 = vsel %vm261, %v255, 0
      %v296 = vsel %vm261, %v256, 0
      %v299 = vsel %vm261, %v257, 0
      %v302 = vsel %vm261, %v258, 0
      %v305 = vsel %vm261, %v259, 0
      %v308 = vsel %vm261, %v260, 0
      %vm310 = vcmask 1043456
      %v312 = vsel %vm310, %v180, 0
      %314 = vmatprep.subr.bf16.mxu0 0
      %315 = vmatpush1.bf16.msra.mxu0 %v312
      %316 = vmatprep.subr.bf16.mxu0 0
      %317 = vmatpush1.bf16.msra.mxu0 0
      %318 = vmatprep.subr.bf16.mxu0 0
      %319 = vmatpush1.bf16.msra.mxu0 0
      %320 = vmatprep.subr.bf16.mxu0 0
      %321 = vmatpush1.bf16.msra.mxu0 0
      %322 = vmatprep.subr.bf16.mxu0 0
      %323 = vmatpush1.bf16.msra.mxu0 0
      %324 = vmatprep.subr.bf16.mxu0 0
      %325 = vmatpush1.bf16.msra.mxu0 0
      %326 = vmatprep.subr.bf16.mxu0 0
      %327 = vmatpush1.bf16.msra.mxu0 0
      %328 = vmatprep.subr.bf16.mxu0 0
      %329 = vmatpush1.bf16.msra.mxu0 0
      %330 = vmatprep.subr.bf16.mxu0 0
      %331 = vmatpush1.bf16.msra.mxu0 0
      %332 = vmatprep.subr.bf16.mxu0 0
      %333 = vmatpush1.bf16.msra.mxu0 0
      %334 = vmatprep.subr.bf16.mxu0 0
      %335 = vmatpush1.bf16.msra.mxu0 0
      %336 = vmatprep.subr.bf16.mxu0 0
      %337 = vmatpush1.bf16.msra.mxu0 0
      %338 = vmatprep.subr.bf16.mxu0 0
      %339 = vmatpush1.bf16.msra.mxu0 0
      %340 = vmatprep.subr.bf16.mxu0 0
      %341 = vmatpush1.bf16.msra.mxu0 0
      %342 = vmatprep.subr.bf16.mxu0 0
      %343 = vmatpush1.bf16.msra.mxu0 0
      %344 = vmatprep.subr.bf16.mxu0 0
      %345 = vmatpush1.bf16.msra.mxu0 0
      %346 = vmatprep.mubr.bf16.mxu0 0
      %347 = vmatmul.mubr.bf16.gmra.mrb[0].mxu0 %v263
      %v348 = vpop.f32.mrb[0].mxu0
      %v349 = vadd.f32 0.0, %v348
      %v350 = vpop.f32.mrb[0].mxu0
      %v351 = vpop.f32.mrb[0].mxu0
      %v352 = vadd.f32 0.0, %v351
      %v353 = vpop.f32.mrb[0].mxu0
      %354 = vmatprep.mubr.bf16.mxu0 0
      %355 = vmatmul.mubr.bf16.gmra.mrb[0].mxu0 %v266
      %v356 = vpop.f32.mrb[0].mxu0
      %v357 = vadd.f32 0.0, %v356
      %v358 = vpop.f32.mrb[0].mxu0
      %v359 = vpop.f32.mrb[0].mxu0
      %v360 = vadd.f32 0.0, %v359
      %v361 = vpop.f32.mrb[0].mxu0
      %362 = vmatprep.mubr.bf16.mxu0 0
      %363 = vmatmul.mubr.bf16.gmra.mrb[0].mxu0 %v269
      %v364 = vpop.f32.mrb[0].mxu0
      %v365 = vadd.f32 0.0, %v364
      %v366 = vpop.f32.mrb[0].mxu0
      %v367 = vpop.f32.mrb[0].mxu0
      %v368 = vadd.f32 0.0, %v367
      %v369 = vpop.f32.mrb[0].mxu0
      %370 = vmatprep.mubr.bf16.mxu0 0
      %371 = vmatmul.mubr.bf16.gmra.mrb[0].mxu0 %v272
      %v372 = vpop.f32.mrb[0].mxu0
      %v373 = vadd.f32 0.0, %v372
      %v374 = vpop.f32.mrb[0].mxu0
      %v375 = vpop.f32.mrb[0].mxu0
      %v376 = vadd.f32 0.0, %v375
      %v377 = vpop.f32.mrb[0].mxu0
      %378 = vmatprep.mubr.bf16.mxu0 0
      %379 = vmatmul.mubr.bf16.gmra.mrb[0].mxu0 %v275
      %v380 = vpop.f32.mrb[0].mxu0
      %v381 = vadd.f32 0.0, %v380
      %v382 = vpop.f32.mrb[0].mxu0
      %v383 = vpop.f32.mrb[0].mxu0
      %v384 = vadd.f32 0.0, %v383
      %v385 = vpop.f32.mrb[0].mxu0
      %386 = vmatprep.mubr.bf16.mxu0 0
      %387 = vmatmul.mubr.bf16.gmra.mrb[0].mxu0 %v278
      %v388 = vpop.f32.mrb[0].mxu0
      %v389 = vadd.f32 0.0, %v388
      %v390 = vpop.f32.mrb[0].mxu0
      %v391 = vpop.f32.mrb[0].mxu0
      %v392 = vadd.f32 0.0, %v391
      %v393 = vpop.f32.mrb[0].mxu0
      %394 = vmatprep.mubr.bf16.mxu0 0
      %395 = vmatmul.mubr.bf16.gmra.mrb[0].mxu0 %v281
      %v396 = vpop.f32.mrb[0].mxu0
      %v397 = vadd.f32 0.0, %v396
      %v398 = vpop.f32.mrb[0].mxu0
      %v399 = vpop.f32.mrb[0].mxu0
      %v400 = vadd.f32 0.0, %v399
      %v401 = vpop.f32.mrb[0].mxu0
      %402 = vmatprep.mubr.bf16.mxu0 0
      %403 = vmatmul.mubr.bf16.gmra.mrb[0].mxu0 %v284
      %v404 = vpop.f32.mrb[0].mxu0
      %v405 = vadd.f32 0.0, %v404
      %v406 = vpop.f32.mrb[0].mxu0
      %v407 = vpop.f32.mrb[0].mxu0
      %v408 = vadd.f32 0.0, %v407
      %v409 = vpop.f32.mrb[0].mxu0
      %410 = vmatprep.mubr.bf16.mxu0 0
      %411 = vmatmul.mubr.bf16.gmra.mrb[0].mxu0 %v287
      %v412 = vpop.f32.mrb[0].mxu0
      %v413 = vadd.f32 0.0, %v412
      %v414 = vpop.f32.mrb[0].mxu0
      %v415 = vpop.f32.mrb[0].mxu0
      %v416 = vadd.f32 0.0, %v415
      %v417 = vpop.f32.mrb[0].mxu0
      %418 = vmatprep.mubr.bf16.mxu0 0
      %419 = vmatmul.mubr.bf16.gmra.mrb[0].mxu0 %v290
      %v420 = vpop.f32.mrb[0].mxu0
      %v421 = vadd.f32 0.0, %v420
      %v422 = vpop.f32.mrb[0].mxu0
      %v423 = vpop.f32.mrb[0].mxu0
      %v424 = vadd.f32 0.0, %v423
      %v425 = vpop.f32.mrb[0].mxu0
      %426 = vmatprep.mubr.bf16.mxu0 0
      %427 = vmatmul.mubr.bf16.gmra.mrb[0].mxu0 %v293
      %v428 = vpop.f32.mrb[0].mxu0
      %v429 = vadd.f32 0.0, %v428
      %v430 = vpop.f32.mrb[0].mxu0
      %v431 = vpop.f32.mrb[0].mxu0
      %v432 = vadd.f32 0.0, %v431
      %v433 = vpop.f32.mrb[0].mxu0
      %434 = vmatprep.mubr.bf16.mxu0 0
      %435 = vmatmul.mubr.bf16.gmra.mrb[0].mxu0 %v296
      %v436 = vpop.f32.mrb[0].mxu0
      %v437 = vadd.f32 0.0, %v436
      %v438 = vpop.f32.mrb[0].mxu0
      %v439 = vpop.f32.mrb[0].mxu0
      %v440 = vadd.f32 0.0, %v439
      %v441 = vpop.f32.mrb[0].mxu0
      %442 = vmatprep.mubr.bf16.mxu0 0
      %443 = vmatmul.mubr.bf16.gmra.mrb[0].mxu0 %v299
      %v444 = vpop.f32.mrb[0].mxu0
      %v445 = vadd.f32 0.0, %v444
      %v446 = vpop.f32.mrb[0].mxu0
      %v447 = vpop.f32.mrb[0].mxu0
      %v448 = vadd.f32 0.0, %v447
      %v449 = vpop.f32.mrb[0].mxu0
      %450 = vmatprep.mubr.bf16.mxu0 0
      %451 = vmatmul.mubr.bf16.gmra.mrb[0].mxu0 %v302
      %v452 = vpop.f32.mrb[0].mxu0
      %v453 = vadd.f32 0.0, %v452
      %v454 = vpop.f32.mrb[0].mxu0
      %v455 = vpop.f32.mrb[0].mxu0
      %v456 = vadd.f32 0.0, %v455
      %v457 = vpop.f32.mrb[0].mxu0
      %458 = vmatprep.mubr.bf16.mxu0 0
      %459 = vmatmul.mubr.bf16.gmra.mrb[0].mxu0 %v305
      %v460 = vpop.f32.mrb[0].mxu0
      %v461 = vadd.f32 0.0, %v460
      %v462 = vpop.f32.mrb[0].mxu0
      %v463 = vpop.f32.mrb[0].mxu0
      %v464 = vadd.f32 0.0, %v463
      %v465 = vpop.f32.mrb[0].mxu0
      %466 = vmatprep.mubr.bf16.mxu0 0
      %467 = vmatmul.mubr.bf16.gmra.mrb[0].mxu0 %v308
      %v468 = vpop.f32.mrb[0].mxu0
      %v469 = vadd.f32 0.0, %v468
      %v470 = vpop.f32.mrb[0].mxu0
      %v471 = vpop.f32.mrb[0].mxu0
      %v472 = vadd.f32 0.0, %v471
      %v473 = vpop.f32.mrb[0].mxu0
      %474 = vdwg.mxu0
      %v475 = vtanh.pop %v349
      %v476 = vtanh.pop %v352
      %v477 = vtanh.pop %v357
      %v478 = vtanh.pop %v360
      %v479 = vtanh.pop %v365
      %v480 = vtanh.pop %v368
      %v481 = vtanh.pop %v373
      %v482 = vtanh.pop %v376
      %v483 = vtanh.pop %v381
      %v484 = vtanh.pop %v384
      %v485 = vtanh.pop %v389
      %v486 = vtanh.pop %v392
      %v487 = vtanh.pop %v397
      %v488 = vtanh.pop %v400
      %v489 = vtanh.pop %v405
      %v490 = vtanh.pop %v408
      %v491 = vtanh.pop %v413
      %v492 = vtanh.pop %v416
      %v493 = vtanh.pop %v421
      %v494 = vtanh.pop %v424
      %v495 = vtanh.pop %v429
      %v496 = vtanh.pop %v432
      %v497 = vtanh.pop %v437
      %v498 = vtanh.pop %v440
      %v499 = vtanh.pop %v445
      %v500 = vtanh.pop %v448
      %v501 = vtanh.pop %v453
      %v502 = vtanh.pop %v456
      %v503 = vtanh.pop %v461
      %v504 = vtanh.pop %v464
      %v505 = vtanh.pop %v469
      %v506 = vtanh.pop %v472
      %507 = vst [vmem:[%s145] sm:$0xff] %v475
      %508 = vst [vmem:[%s145 + $0x8] sm:$0xff] %v476
      %509 = vst [vmem:[%s145 + $0x10] sm:$0xff] %v477
      %510 = vst [vmem:[%s145 + $0x18] sm:$0xff] %v478
      %511 = vst [vmem:[%s145 + $0x20] sm:$0xff] %v479
      %512 = vst [vmem:[%s145 + $0x28] sm:$0xff] %v480
      %513 = vst [vmem:[%s145 + $0x30] sm:$0xff] %v481
      %514 = vst [vmem:[%s145 + $0x38] sm:$0xff] %v482
      %515 = vst [vmem:[%s145 + $0x40] sm:$0xff] %v483
      %516 = vst [vmem:[%s145 + $0x48] sm:$0xff] %v484
      %517 = vst [vmem:[%s145 + $0x50] sm:$0xff] %v485
      %518 = vst [vmem:[%s145 + $0x58] sm:$0xff] %v486
      %519 = vst [vmem:[%s145 + $0x60] sm:$0xff] %v487
      %520 = vst [vmem:[%s145 + $0x68] sm:$0xff] %v488
      %521 = vst [vmem:[%s145 + $0x70] sm:$0xff] %v489
      %522 = vst [vmem:[%s145 + $0x78] sm:$0xff] %v490
      %523 = vst [vmem:[%s145 + $0x80] sm:$0xff] %v491
      %524 = vst [vmem:[%s145 + $0x88] sm:$0xff] %v492
      %525 = vst [vmem:[%s145 + $0x90] sm:$0xff] %v493
      %526 = vst [vmem:[%s145 + $0x98] sm:$0xff] %v494
      %527 = vst [vmem:[%s145 + $0xa0] sm:$0xff] %v495
      %528 = vst [vmem:[%s145 + $0xa8] sm:$0xff] %v496
      %529 = vst [vmem:[%s145 + $0xb0] sm:$0xff] %v497
      %530 = vst [vmem:[%s145 + $0xb8] sm:$0xff] %v498
      %531 = vst [vmem:[%s145 + $0xc0] sm:$0xff] %v499
      %532 = vst [vmem:[%s145 + $0xc8] sm:$0xff] %v500
      %533 = vst [vmem:[%s145 + $0xd0] sm:$0xff] %v501
      %534 = vst [vmem:[%s145 + $0xd8] sm:$0xff] %v502
      %535 = vst [vmem:[%s145 + $0xe0] sm:$0xff] %v503
      %536 = vst [vmem:[%s145 + $0xe8] sm:$0xff] %v504
      %537 = vst [vmem:[%s145 + $0xf0] sm:$0xff] %v505
      %538 = vst [vmem:[%s145 + $0xf8] sm:$0xff] %v506
      %s539 = smul.u32 32, %s13
      %p540 = scmp.lt.s32.totalorder %s539, 63
      %s541 = scalar_select %p540, %s539, 63
      %s542 = smul.addr %s541, 8
      %s543 = scalar_lea.vmem %s2, %s542
      // Predicated region
      $region29: #{_lambda_.15} parent=27 // pred_check
        %p544 = pneg %p78
      $region30: #{_lambda_.15} parent=27 // pred_check_branch
        %546 = sbr.rel (%p544) target = $region32
      $region31: #{_lambda_.15} parent=27 // pred_region
        %s547 = smul.u32 32, %s13
      $region32: #{_lambda_.15} parent=27 // pred_fallthru
        _
    $region28: #{_lambda_.15} parent=5 // pred_fallthru
      _
    %p548 = scmp.le.s32.totalorder 2, %s8
    // Predicated region
    $region33: #{_lambda_.15} parent=5 // pred_check
      %p549 = pneg %p548
    $region34: #{_lambda_.15} parent=5 // pred_check_branch
      %551 = sbr.rel (%p549) target = $region36
    $region35: #{_lambda_.15} parent=5 // pred_region
      %s552 = ssub.s32 %s8, 2
      // Predicated region
      $region37: #{_lambda_.15} parent=35 // pred_check
        %p553 = pneg %p84
      $region38: #{_lambda_.15} parent=35 // pred_check_branch
        %555 = sbr.rel (%p553) target = $region40
      $region39: #{_lambda_.15} parent=35 // pred_region
        %s556 = smul.u32 32, %s14
        %p557 = scmp.lt.s32.totalorder %s556, 63
        %s558 = scalar_select %p557, %s556, 63
        %s559 = smul.addr %s558, 8
        %s560 = scalar_lea.vmem %s2, %s559
      $region40: #{_lambda_.15} parent=35 // pred_fallthru
        _
    $region36: #{_lambda_.15} parent=5 // pred_fallthru
      _
  $region6: #{_lambda_.15} parent=0 // loop_footer
    %s12 = sadd.s32 1, %s8
  $region7: #{_lambda_.15} parent=0 // loop_footer_branch
    %7 = sbr.rel target = $region3
  $region8: #{_lambda_.15} parent=0 // loop_exit
    _

// kernel: _lambda_.14
$region0: #{_lambda_.14}
  #allocation0 [shape = 'u32[]', space=smem, size = 0x4, offset = 0x4, fixed_abs, tag = 'smem constant byte address 0x4 - core index']
  #allocation1 [shape = 'u32[144,128]{1,0:T(1,128)}', space=vmem, size = 0x12000, scoped, tag = 'internal scratch']
  %s0 = inlined_call_operand.vmem [shape: f32[512,8], index: 0, kind: input, shape index: {}]
  %s1 = inlined_call_operand.vmem [shape: f32[1,8], index: 1, kind: input, shape index: {}]
  %s2 = inlined_call_operand.vmem [shape: f32[1,8], index: 2, kind: input, shape index: {}]
  %s3 = inlined_call_operand.vmem [shape: bf16[512,8], index: 3, kind: output, shape index: {}]
  %s4 = sld [smem:[#allocation0]]
  $region45: #{_lambda_.14} parent=0
    _
  %s6 = ssub.s32 1, %s4
  %s7 = scalar_select 0, %s6, %s4
  loop: start=0, step=1, limit=4
  $region2: #{_lambda_.14} parent=0 // loop_pre_header
    _
  $region3: #{_lambda_.14} parent=0 // loop_header
    %s9 = sphi 0, %s13
    %p10 = scmp.ge.s32.totalorder %s9, 4
    %s19 = sphi 0, %s21
    %s22 = sphi 0, %s19
    %s23 = sphi 0, %s22
    %s39 = sphi 0, %s23
    %s43 = sphi 0, %s43
    %s45 = sphi 0, %s43
    %s46 = sphi 0, %s45
    %s60 = sphi 0, %s46
    %s64 = sphi 0, %s64
    %s66 = sphi 0, %s64
    %s67 = sphi 0, %s66
    %s81 = sphi 0, %s67
    %s87 = sphi 0, %s89
    %s90 = sphi 0, %s87
    %s91 = sphi 0, %s90
    %s107 = sphi 0, %s91
  $region4: #{_lambda_.14} parent=0 // loop_header_branch
    %12 = sbr.rel (%p10) target = $region8
  $region5: #{_lambda_.14} parent=0 // loop_body
    %s14 = ssub.s32 %s9, 1
    %s15 = ssub.s32 %s9, 2
    %s16 = sadd.s32 %s9, 1
    %s17 = ssub.s32 %s9, %s16
    %p18 = scmp.eq.s32.totalorder %s17, 0
    %s20 = sadd.s32 %s19, 1
    %s21 = scalar_select %p18, %s19, %s20
    %p24 = pneg %p18
    %p25 = scmp.eq.s32.totalorder %s9, 1
    %p26 = por %p24, %p25
    %p27 = scmp.ne.s32.totalorder %s19, %s22
    %p28 = scmp.eq.s32.totalorder %s9, 0
    %p29 = por %p27, %p28
    %p30 = scmp.ne.s32.totalorder %s19, %s22
    %p31 = scmp.eq.s32.totalorder %s14, 1
    %p32 = por %p30, %p31
    %p33 = scmp.ne.s32.totalorder %s22, %s23
    %p34 = scmp.eq.s32.totalorder %s14, 0
    %p35 = por %p33, %p34
    %p36 = scmp.ne.s32.totalorder %s22, %s23
    %p37 = scmp.eq.s32.totalorder %s15, 1
    %p38 = por %p36, %p37
    %p40 = scmp.ne.s32.totalorder %s23, %s39
    %p41 = scmp.eq.s32.totalorder %s15, 0
    %p42 = por %p40, %p41
    %s44 = sadd.s32 %s43, 1
    %p47 = scmp.eq.s32.totalorder %s9, 1
    %p48 = scmp.ne.s32.totalorder %s43, %s45
    %p49 = scmp.eq.s32.totalorder %s9, 0
    %p50 = por %p48, %p49
    %p51 = scmp.ne.s32.totalorder %s43, %s45
    %p52 = scmp.eq.s32.totalorder %s14, 1
    %p53 = por %p51, %p52
    %p54 = scmp.ne.s32.totalorder %s45, %s46
    %p55 = scmp.eq.s32.totalorder %s14, 0
    %p56 = por %p54, %p55
    %p57 = scmp.ne.s32.totalorder %s45, %s46
    %p58 = scmp.eq.s32.totalorder %s15, 1
    %p59 = por %p57, %p58
    %p61 = scmp.ne.s32.totalorder %s46, %s60
    %p62 = scmp.eq.s32.totalorder %s15, 0
    %p63 = por %p61, %p62
    %s65 = sadd.s32 %s64, 1
    %p68 = scmp.eq.s32.totalorder %s9, 1
    %p69 = scmp.ne.s32.totalorder %s64, %s66
    %p70 = scmp.eq.s32.totalorder %s9, 0
    %p71 = por %p69, %p70
    %p72 = scmp.ne.s32.totalorder %s64, %s66
    %p73 = scmp.eq.s32.totalorder %s14, 1
    %p74 = por %p72, %p73
    %p75 = scmp.ne.s32.totalorder %s66, %s67
    %p76 = scmp.eq.s32.totalorder %s14, 0
    %p77 = por %p75, %p76
    %p78 = scmp.ne.s32.totalorder %s66, %s67
    %p79 = scmp.eq.s32.totalorder %s15, 1
    %p80 = por %p78, %p79
    %p82 = scmp.ne.s32.totalorder %s67, %s81
    %p83 = scmp.eq.s32.totalorder %s15, 0
    %p84 = por %p82, %p83
    %s85 = ssub.s32 %s9, %s16
    %p86 = scmp.eq.s32.totalorder %s85, 0
    %s88 = sadd.s32 %s87, 1
    %s89 = scalar_select %p86, %s87, %s88
    %p92 = pneg %p86
    %p93 = scmp.eq.s32.totalorder %s9, 1
    %p94 = por %p92, %p93
    %p95 = scmp.ne.s32.totalorder %s87, %s90
    %p96 = scmp.eq.s32.totalorder %s9, 0
    %p97 = por %p95, %p96
    %p98 = scmp.ne.s32.totalorder %s87, %s90
    %p99 = scmp.eq.s32.totalorder %s14, 1
    %p100 = por %p98, %p99
    %p101 = scmp.ne.s32.totalorder %s90, %s91
    %p102 = scmp.eq.s32.totalorder %s14, 0
    %p103 = por %p101, %p102
    %p104 = scmp.ne.s32.totalorder %s90, %s91
    %p105 = scmp.eq.s32.totalorder %s15, 1
    %p106 = por %p104, %p105
    %p108 = scmp.ne.s32.totalorder %s91, %s107
    %p109 = scmp.eq.s32.totalorder %s15, 0
    %p110 = por %p108, %p109
    %p111 = scmp.le.s32.totalorder 1, %s9
    %p112 = scmp.lt.s32.totalorder %s9, 3
    %p113 = pnand %p111, %p112
    %p114 = pneg %p113
    // Predicated region
    $region9: #{_lambda_.14} parent=5 // pred_check
      _
    $region10: #{_lambda_.14} parent=5 // pred_check_branch
      %116 = sbr.rel (%p113) target = $region12
    $region11: #{_lambda_.14} parent=5 // pred_region
      %s117 = ssub.s32 %s9, 1
      // Predicated region
      $region13: #{_lambda_.14} parent=11 // pred_check
        %p118 = pneg %p56
      $region14: #{_lambda_.14} parent=11 // pred_check_branch
        %120 = sbr.rel (%p118) target = $region16
      $region15: #{_lambda_.14} parent=11 // pred_region
        _
      $region16: #{_lambda_.14} parent=11 // pred_fallthru
        _
      // Predicated region
      $region17: #{_lambda_.14} parent=11 // pred_check
        %p121 = pneg %p77
      $region18: #{_lambda_.14} parent=11 // pred_check_branch
        %123 = sbr.rel (%p121) target = $region20
      $region19: #{_lambda_.14} parent=11 // pred_region
        _
      $region20: #{_lambda_.14} parent=11 // pred_fallthru
        _
    $region12: #{_lambda_.14} parent=5 // pred_fallthru
      _
    %p124 = scmp.lt.s32.totalorder %s9, 2
    // Predicated region
    $region21: #{_lambda_.14} parent=5 // pred_check
      %p125 = pneg %p124
    $region22: #{_lambda_.14} parent=5 // pred_check_branch
      %127 = sbr.rel (%p125) target = $region24
    $region23: #{_lambda_.14} parent=5 // pred_region
      // Predicated region
      $region25: #{_lambda_.14} parent=23 // pred_check
        %p128 = pneg %p29
      $region26: #{_lambda_.14} parent=23 // pred_check_branch
        %130 = sbr.rel (%p128) target = $region28
      $region27: #{_lambda_.14} parent=23 // pred_region
        %s131 = smul.u32 32, %s9
        %p132 = scmp.lt.s32.totalorder %s131, 63
        %s133 = scalar_select %p132, %s131, 63
        %s134 = smul.addr %s133, 8
        %s135 = scalar_lea.vmem %s0, %s134
        %s136 = smul.u32 32, %s9
      $region28: #{_lambda_.14} parent=23 // pred_fallthru
        _
    $region24: #{_lambda_.14} parent=5 // pred_fallthru
      _
    %p137 = scmp.le.s32.totalorder 1, %s9
    %p138 = scmp.lt.s32.totalorder %s9, 3
    %p139 = pnand %p137, %p138
    %p140 = pneg %p139
    // Predicated region
    $region29: #{_lambda_.14} parent=5 // pred_check
      _
    $region30: #{_lambda_.14} parent=5 // pred_check_branch
      %142 = sbr.rel (%p139) target = $region32
    $region31: #{_lambda_.14} parent=5 // pred_region
      %s143 = ssub.s32 %s9, 1
      %s144 = smul.u32 32, %s14
      %p145 = scmp.lt.s32.totalorder %s144, 63
      %s146 = scalar_select %p145, %s144, 63
      %s147 = smul.addr %s146, 8
      %s148 = scalar_lea.vmem %s0, %s147
      %p149 = pneg %p35
      %p150 = pneg %p32
      %p151 = pneg %p56
      %p152 = pneg %p53
      %p153 = pneg %p77
      %p154 = pneg %p74
      %p155 = pneg %p103
      %p156 = pneg %p100
      %s157 = smul.u32 32, %s14
      %p158 = scmp.lt.s32.totalorder %s157, 63
      %s159 = scalar_select %p158, %s157, 63
      %s160 = smul.addr %s159, 4
      %s161 = scalar_lea.vmem %s3, %s160
      %s162 = smul.u32 32, %s14
      %p163 = scmp.lt.s32.totalorder %s162, 63
      %s164 = scalar_select %p163, %s162, 63
      %s165 = smul.addr %s164, 8
      %s166 = scalar_lea.vmem %s0, %s165
      %s167 = smul.u32 32, %s14
      %s168 = smul.u32 32, %s14
      %p169 = scmp.lt.s32.totalorder %s168, 63
      %s170 = scalar_select %p169, %s168, 63
      %s171 = smul.addr %s170, 4
      %s172 = scalar_lea.vmem %s3, %s171
      %s173 = smul.u32 32, %s14
      %v174 = vld [vmem:[%s166] sm:$0xff]
      %v175 = vld [vmem:[%s166 + $0x8] sm:$0xff]
      %v176 = vld [vmem:[%s166 + $0x10] sm:$0xff]
      %v177 = vld [vmem:[%s166 + $0x18] sm:$0xff]
      %v178 = vld [vmem:[%s166 + $0x20] sm:$0xff]
      %v179 = vld [vmem:[%s166 + $0x28] sm:$0xff]
      %v180 = vld [vmem:[%s166 + $0x30] sm:$0xff]
      %v181 = vld [vmem:[%s166 + $0x38] sm:$0xff]
      %v182 = vld [vmem:[%s166 + $0x40] sm:$0xff]
      %v183 = vld [vmem:[%s166 + $0x48] sm:$0xff]
      %v184 = vld [vmem:[%s166 + $0x50] sm:$0xff]
      %v185 = vld [vmem:[%s166 + $0x58] sm:$0xff]
      %v186 = vld [vmem:[%s166 + $0x60] sm:$0xff]
      %v187 = vld [vmem:[%s166 + $0x68] sm:$0xff]
      %v188 = vld [vmem:[%s166 + $0x70] sm:$0xff]
      %v189 = vld [vmem:[%s166 + $0x78] sm:$0xff]
      %v190 = vld [vmem:[%s166 + $0x80] sm:$0xff]
      %v191 = vld [vmem:[%s166 + $0x88] sm:$0xff]
      %v192 = vld [vmem:[%s166 + $0x90] sm:$0xff]
      %v193 = vld [vmem:[%s166 + $0x98] sm:$0xff]
      %v194 = vld [vmem:[%s166 + $0xa0] sm:$0xff]
      %v195 = vld [vmem:[%s166 + $0xa8] sm:$0xff]
      %v196 = vld [vmem:[%s166 + $0xb0] sm:$0xff]
      %v197 = vld [vmem:[%s166 + $0xb8] sm:$0xff]
      %v198 = vld [vmem:[%s166 + $0xc0] sm:$0xff]
      %v199 = vld [vmem:[%s166 + $0xc8] sm:$0xff]
      %v200 = vld [vmem:[%s166 + $0xd0] sm:$0xff]
      %v201 = vld [vmem:[%s166 + $0xd8] sm:$0xff]
      %v202 = vld [vmem:[%s166 + $0xe0] sm:$0xff]
      %v203 = vld [vmem:[%s166 + $0xe8] sm:$0xff]
      %v204 = vld [vmem:[%s166 + $0xf0] sm:$0xff]
      %v205 = vld [vmem:[%s166 + $0xf8] sm:$0xff]
      %v206 = vld [vmem:[%s1] sm:$0x1]
      %v208 = vlaneseq
      %v209 = vshrl.u32 %v208, 7
      %v210 = vsub.s32 0, %v209
      %v211 = vrot.slane %v206, %v210
      %v213 = vmul.f32 %v174, %v211
      %v214 = vmul.f32 %v175, %v211
      %v215 = vmul.f32 %v176, %v211
      %v216 = vmul.f32 %v177, %v211
      %v217 = vmul.f32 %v178, %v211
      %v218 = vmul.f32 %v179, %v211
      %v219 = vmul.f32 %v180, %v211
      %v220 = vmul.f32 %v181, %v211
      %v221 = vmul.f32 %v182, %v211
      %v222 = vmul.f32 %v183, %v211
      %v223 = vmul.f32 %v184, %v211
      %v224 = vmul.f32 %v185, %v211
      %v225 = vmul.f32 %v186, %v211
      %v226 = vmul.f32 %v187, %v211
      %v227 = vmul.f32 %v188, %v211
      %v228 = vmul.f32 %v189, %v211
      %v229 = vmul.f32 %v190, %v211
      %v230 = vmul.f32 %v191, %v211
      %v231 = vmul.f32 %v192, %v211
      %v232 = vmul.f32 %v193, %v211
      %v233 = vmul.f32 %v194, %v211
      %v234 = vmul.f32 %v195, %v211
      %v235 = vmul.f32 %v196, %v211
      %v236 = vmul.f32 %v197, %v211
      %v237 = vmul.f32 %v198, %v211
      %v238 = vmul.f32 %v199, %v211
      %v239 = vmul.f32 %v200, %v211
      %v240 = vmul.f32 %v201, %v211
      %v241 = vmul.f32 %v202, %v211
      %v242 = vmul.f32 %v203, %v211
      %v243 = vmul.f32 %v204, %v211
      %v244 = vmul.f32 %v205, %v211
      %v245 = vld [vmem:[%s2] sm:$0x1]
      %v247 = vlaneseq
      %v248 = vshrl.u32 %v247, 7
      %v249 = vsub.s32 0, %v248
      %v250 = vrot.slane %v245, %v249
      %v252 = vadd.f32 %v213, %v250
      %v253 = vadd.f32 %v214, %v250
      %v254 = vadd.f32 %v215, %v250
      %v255 = vadd.f32 %v216, %v250
      %v256 = vadd.f32 %v217, %v250
      %v257 = vadd.f32 %v218, %v250
      %v258 = vadd.f32 %v219, %v250
      %v259 = vadd.f32 %v220, %v250
      %v260 = vadd.f32 %v221, %v250
      %v261 = vadd.f32 %v222, %v250
      %v262 = vadd.f32 %v223, %v250
      %v263 = vadd.f32 %v224, %v250
      %v264 = vadd.f32 %v225, %v250
      %v265 = vadd.f32 %v226, %v250
      %v266 = vadd.f32 %v227, %v250
      %v267 = vadd.f32 %v228, %v250
      %v268 = vadd.f32 %v229, %v250
      %v269 = vadd.f32 %v230, %v250
      %v270 = vadd.f32 %v231, %v250
      %v271 = vadd.f32 %v232, %v250
      %v272 = vadd.f32 %v233, %v250
      %v273 = vadd.f32 %v234, %v250
      %v274 = vadd.f32 %v235, %v250
      %v275 = vadd.f32 %v236, %v250
      %v276 = vadd.f32 %v237, %v250
      %v277 = vadd.f32 %v238, %v250
      %v278 = vadd.f32 %v239, %v250
      %v279 = vadd.f32 %v240, %v250
      %v280 = vadd.f32 %v241, %v250
      %v281 = vadd.f32 %v242, %v250
      %v282 = vadd.f32 %v243, %v250
      %v283 = vadd.f32 %v244, %v250
      %v284 = vmax.f32 %v252, 0.0
      %v285 = vmax.f32 %v253, 0.0
      %v286 = vmax.f32 %v254, 0.0
      %v287 = vmax.f32 %v255, 0.0
      %v288 = vmax.f32 %v256, 0.0
      %v289 = vmax.f32 %v257, 0.0
      %v290 = vmax.f32 %v258, 0.0
      %v291 = vmax.f32 %v259, 0.0
      %v292 = vmax.f32 %v260, 0.0
      %v293 = vmax.f32 %v261, 0.0
      %v294 = vmax.f32 %v262, 0.0
      %v295 = vmax.f32 %v263, 0.0
      %v296 = vmax.f32 %v264, 0.0
      %v297 = vmax.f32 %v265, 0.0
      %v298 = vmax.f32 %v266, 0.0
      %v299 = vmax.f32 %v267, 0.0
      %v300 = vmax.f32 %v268, 0.0
      %v301 = vmax.f32 %v269, 0.0
      %v302 = vmax.f32 %v270, 0.0
      %v303 = vmax.f32 %v271, 0.0
      %v304 = vmax.f32 %v272, 0.0
      %v305 = vmax.f32 %v273, 0.0
      %v306 = vmax.f32 %v274, 0.0
      %v307 = vmax.f32 %v275, 0.0
      %v308 = vmax.f32 %v276, 0.0
      %v309 = vmax.f32 %v277, 0.0
      %v310 = vmax.f32 %v278, 0.0
      %v311 = vmax.f32 %v279, 0.0
      %v312 = vmax.f32 %v280, 0.0
      %v313 = vmax.f32 %v281, 0.0
      %v314 = vmax.f32 %v282, 0.0
      %v315 = vmax.f32 %v283, 0.0
      %v316 = vpack.c.bf16 %v285, %v284
      %v317 = vpack.c.bf16 %v287, %v286
      %v318 = vpack.c.bf16 %v289, %v288
      %v319 = vpack.c.bf16 %v291, %v290
      %v320 = vpack.c.bf16 %v293, %v292
      %v321 = vpack.c.bf16 %v295, %v294
      %v322 = vpack.c.bf16 %v297, %v296
      %v323 = vpack.c.bf16 %v299, %v298
      %v324 = vpack.c.bf16 %v301, %v300
      %v325 = vpack.c.bf16 %v303, %v302
      %v326 = vpack.c.bf16 %v305, %v304
      %v327 = vpack.c.bf16 %v307, %v306
      %v328 = vpack.c.bf16 %v309, %v308
      %v329 = vpack.c.bf16 %v311, %v310
      %v330 = vpack.c.bf16 %v313, %v312
      %v331 = vpack.c.bf16 %v315, %v314
      %v348 = vunpack.c.l.b16 %v316
      %v349 = vunpack.c.h.b16 %v316
      %v350 = vunpack.c.l.b16 %v317
      %v351 = vunpack.c.h.b16 %v317
      %v352 = vunpack.c.l.b16 %v318
      %v353 = vunpack.c.h.b16 %v318
      %v354 = vunpack.c.l.b16 %v319
      %v355 = vunpack.c.h.b16 %v319
      %v356 = vunpack.c.l.b16 %v320
      %v357 = vunpack.c.h.b16 %v320
      %v358 = vunpack.c.l.b16 %v321
      %v359 = vunpack.c.h.b16 %v321
      %v360 = vunpack.c.l.b16 %v322
      %v361 = vunpack.c.h.b16 %v322
      %v362 = vunpack.c.l.b16 %v323
      %v363 = vunpack.c.h.b16 %v323
      %v364 = vunpack.c.l.b16 %v324
      %v365 = vunpack.c.h.b16 %v324
      %v366 = vunpack.c.l.b16 %v325
      %v367 = vunpack.c.h.b16 %v325
      %v368 = vunpack.c.l.b16 %v326
      %v369 = vunpack.c.h.b16 %v326
      %v370 = vunpack.c.l.b16 %v327
      %v371 = vunpack.c.h.b16 %v327
      %v372 = vunpack.c.l.b16 %v328
      %v373 = vunpack.c.h.b16 %v328
      %v374 = vunpack.c.l.b16 %v329
      %v375 = vunpack.c.h.b16 %v329
      %v376 = vunpack.c.l.b16 %v330
      %v377 = vunpack.c.h.b16 %v330
      %v378 = vunpack.c.l.b16 %v331
      %v379 = vunpack.c.h.b16 %v331
      %v380 = vpack.c.b16 %v348, %v348
      %v381 = vpack.c.b16 %v349, %v349
      %v382 = vpack.c.b16 %v350, %v350
      %v383 = vpack.c.b16 %v351, %v351
      %v384 = vpack.c.b16 %v352, %v352
      %v385 = vpack.c.b16 %v353, %v353
      %v386 = vpack.c.b16 %v354, %v354
      %v387 = vpack.c.b16 %v355, %v355
      %v388 = vpack.c.b16 %v356, %v356
      %v389 = vpack.c.b16 %v357, %v357
      %v390 = vpack.c.b16 %v358, %v358
      %v391 = vpack.c.b16 %v359, %v359
      %v392 = vpack.c.b16 %v360, %v360
      %v393 = vpack.c.b16 %v361, %v361
      %v394 = vpack.c.b16 %v362, %v362
      %v395 = vpack.c.b16 %v363, %v363
      %v396 = vpack.c.b16 %v364, %v364
      %v397 = vpack.c.b16 %v365, %v365
      %v398 = vpack.c.b16 %v366, %v366
      %v399 = vpack.c.b16 %v367, %v367
      %v400 = vpack.c.b16 %v368, %v368
      %v401 = vpack.c.b16 %v369, %v369
      %v402 = vpack.c.b16 %v370, %v370
      %v403 = vpack.c.b16 %v371, %v371
      %v404 = vpack.c.b16 %v372, %v372
      %v405 = vpack.c.b16 %v373, %v373
      %v406 = vpack.c.b16 %v374, %v374
      %v407 = vpack.c.b16 %v375, %v375
      %v408 = vpack.c.b16 %v376, %v376
      %v409 = vpack.c.b16 %v377, %v377
      %v410 = vpack.c.b16 %v378, %v378
      %v411 = vpack.c.b16 %v379, %v379
      %vm444 = vcmask 60416
      %445 = vst.msk [vmem:[%s172] sm:$0xf] %vm444, %v380
      %446 = vst.msk [vmem:[%s172 + $0x4] sm:$0xf] %vm444, %v381
      %447 = vst.msk [vmem:[%s172 + $0x8] sm:$0xf] %vm444, %v382
      %448 = vst.msk [vmem:[%s172 + $0xc] sm:$0xf] %vm444, %v383
      %449 = vst.msk [vmem:[%s172 + $0x10] sm:$0xf] %vm444, %v384
      %450 = vst.msk [vmem:[%s172 + $0x14] sm:$0xf] %vm444, %v385
      %451 = vst.msk [vmem:[%s172 + $0x18] sm:$0xf] %vm444, %v386
      %452 = vst.msk [vmem:[%s172 + $0x1c] sm:$0xf] %vm444, %v387
      %453 = vst.msk [vmem:[%s172 + $0x20] sm:$0xf] %vm444, %v388
      %454 = vst.msk [vmem:[%s172 + $0x24] sm:$0xf] %vm444, %v389
      %455 = vst.msk [vmem:[%s172 + $0x28] sm:$0xf] %vm444, %v390
      %456 = vst.msk [vmem:[%s172 + $0x2c] sm:$0xf] %vm444, %v391
      %457 = vst.msk [vmem:[%s172 + $0x30] sm:$0xf] %vm444, %v392
      %458 = vst.msk [vmem:[%s172 + $0x34] sm:$0xf] %vm444, %v393
      %459 = vst.msk [vmem:[%s172 + $0x38] sm:$0xf] %vm444, %v394
      %460 = vst.msk [vmem:[%s172 + $0x3c] sm:$0xf] %vm444, %v395
      %461 = vst.msk [vmem:[%s172 + $0x40] sm:$0xf] %vm444, %v396
      %462 = vst.msk [vmem:[%s172 + $0x44] sm:$0xf] %vm444, %v397
      %463 = vst.msk [vmem:[%s172 + $0x48] sm:$0xf] %vm444, %v398
      %464 = vst.msk [vmem:[%s172 + $0x4c] sm:$0xf] %vm444, %v399
      %465 = vst.msk [vmem:[%s172 + $0x50] sm:$0xf] %vm444, %v400
      %466 = vst.msk [vmem:[%s172 + $0x54] sm:$0xf] %vm444, %v401
      %467 = vst.msk [vmem:[%s172 + $0x58] sm:$0xf] %vm444, %v402
      %468 = vst.msk [vmem:[%s172 + $0x5c] sm:$0xf] %vm444, %v403
      %469 = vst.msk [vmem:[%s172 + $0x60] sm:$0xf] %vm444, %v404
      %470 = vst.msk [vmem:[%s172 + $0x64] sm:$0xf] %vm444, %v405
      %471 = vst.msk [vmem:[%s172 + $0x68] sm:$0xf] %vm444, %v406
      %472 = vst.msk [vmem:[%s172 + $0x6c] sm:$0xf] %vm444, %v407
      %473 = vst.msk [vmem:[%s172 + $0x70] sm:$0xf] %vm444, %v408
      %474 = vst.msk [vmem:[%s172 + $0x74] sm:$0xf] %vm444, %v409
      %475 = vst.msk [vmem:[%s172 + $0x78] sm:$0xf] %vm444, %v410
      %476 = vst.msk [vmem:[%s172 + $0x7c] sm:$0xf] %vm444, %v411
      %s477 = smul.u32 32, %s14
      %p478 = scmp.lt.s32.totalorder %s477, 63
      %s479 = scalar_select %p478, %s477, 63
      %s480 = smul.addr %s479, 4
      %s481 = scalar_lea.vmem %s3, %s480
      // Predicated region
      $region33: #{_lambda_.14} parent=31 // pred_check
        %p482 = pneg %p100
      $region34: #{_lambda_.14} parent=31 // pred_check_branch
        %484 = sbr.rel (%p482) target = $region36
      $region35: #{_lambda_.14} parent=31 // pred_region
        %s485 = smul.u32 32, %s14
      $region36: #{_lambda_.14} parent=31 // pred_fallthru
        _
    $region32: #{_lambda_.14} parent=5 // pred_fallthru
      _
    %p486 = scmp.le.s32.totalorder 2, %s9
    // Predicated region
    $region37: #{_lambda_.14} parent=5 // pred_check
      %p487 = pneg %p486
    $region38: #{_lambda_.14} parent=5 // pred_check_branch
      %489 = sbr.rel (%p487) target = $region40
    $region39: #{_lambda_.14} parent=5 // pred_region
      %s490 = ssub.s32 %s9, 2
      // Predicated region
      $region41: #{_lambda_.14} parent=39 // pred_check
        %p491 = pneg %p106
      $region42: #{_lambda_.14} parent=39 // pred_check_branch
        %493 = sbr.rel (%p491) target = $region44
      $region43: #{_lambda_.14} parent=39 // pred_region
        %s494 = smul.u32 32, %s15
        %p495 = scmp.lt.s32.totalorder %s494, 63
        %s496 = scalar_select %p495, %s494, 63
        %s497 = smul.addr %s496, 4
        %s498 = scalar_lea.vmem %s3, %s497
      $region44: #{_lambda_.14} parent=39 // pred_fallthru
        _
    $region40: #{_lambda_.14} parent=5 // pred_fallthru
      _
  $region6: #{_lambda_.14} parent=0 // loop_footer
    %s13 = sadd.s32 1, %s9
  $region7: #{_lambda_.14} parent=0 // loop_footer_branch
    %8 = sbr.rel target = $region3
  $region8: #{_lambda_.14} parent=0 // loop_exit
    _

</llo_original>
